<compile_context>
chip_gen: v6e
topology: v6e:2x2x1
jax: 0.10.0
libtpu: 0.0.40
codegen_flags: <defaults>
</compile_context>

<pallas_src>
import jax
import jax.numpy as jnp
from jax.experimental import pallas as pl
from jax.experimental.pallas import tpu as pltpu


# ----------------------------- fused Pallas kernel ---------------------------

def _inception_kernel(x_ref,
                      w1_ref, b1_ref,
                      w2r_ref, b2r_ref, w2_ref, b2_ref,
                      w3r_ref, b3r_ref, w3a_ref, b3a_ref, w3b_ref, b3b_ref,
                      w4_ref, b4_ref,
                      o_ref):
    """One batch element of the Inception block.

    x_ref : (1, H, W, Cin) bf16 (NHWC)
    1x1 weights: (Cin, Cout) bf16 ; 3x3 weights: (3, 3*Cin, Cout) bf16
      (BN scale already folded into the weights)
    b*    : (1, Cout) f32 folded BN bias
    o_ref : (1, H, W, C1+C2+C3+C4) f32, channel order [b1 | b2 | b3 | b4]
    """
    _, H, W, Cin = x_ref.shape
    cdt = x_ref.dtype                      # bf16 compute dtype for MXU inputs
    x = x_ref[0]                           # (H, W, Cin)
    xm = x.reshape(H * W, Cin)             # (M, Cin)

    def mm_bias_relu(inp_m, w, b):
        # bf16 x bf16 -> f32 accumulate on the MXU; f32 epilogue.
        y = jnp.dot(inp_m, w, preferred_element_type=jnp.float32)
        return jnp.maximum(y + b, 0.0)     # (M, Cout) f32

    def conv3x3_bias_relu(t_hwc, w_ref, b_ref):
        # Same-padded 3x3 conv as 3 MXU matmuls with K = 3*C: pack the three
        # dx-shifted copies along the channel axis once; loop over the 3 dy
        # taps with slices along the (cheap) untiled leading axis.
        Hh, Ww, C = t_hwc.shape
        zc = jnp.zeros((Hh, 1, C), t_hwc.dtype)
        tw = jnp.concatenate([zc, t_hwc, zc], axis=1)                  # (H, W+2, C)
        xc = jnp.concatenate([tw[:, 0:Ww], tw[:, 1:Ww + 1], tw[:, 2:Ww + 2]],
                             axis=-1)                                  # (H, W, 3C)
        zr = jnp.zeros((1, Ww, 3 * C), t_hwc.dtype)
        xcp = jnp.concatenate([zr, xc, zr], axis=0)                    # (H+2, W, 3C)
        acc = jnp.dot(xcp[0:Hh].reshape(Hh * Ww, 3 * C), w_ref[0],
                      preferred_element_type=jnp.float32)
        for dy in (1, 2):                                              # static unroll
            acc = acc + jnp.dot(xcp[dy:dy + Hh].reshape(Hh * Ww, 3 * C),
                                w_ref[dy], preferred_element_type=jnp.float32)
        return jnp.maximum(acc + b_ref[...], 0.0)                      # (M, Cout) f32

    # Branch 1: 1x1 conv.
    y1 = mm_bias_relu(xm, w1_ref[...], b1_ref[...])

    # Branch 2: 1x1 reduce -> 3x3.
    t2 = mm_bias_relu(xm, w2r_ref[...], b2r_ref[...]).astype(cdt)
    y2 = conv3x3_bias_relu(t2.reshape(H, W, t2.shape[-1]), w2_ref, b2_ref)

    # Branch 3: 1x1 reduce -> 3x3 -> 3x3.
    t3 = mm_bias_relu(xm, w3r_ref[...], b3r_ref[...]).astype(cdt)
    t3 = conv3x3_bias_relu(t3.reshape(H, W, t3.shape[-1]),
                           w3a_ref, b3a_ref).astype(cdt)
    y3 = conv3x3_bias_relu(t3.reshape(H, W, t3.shape[-1]), w3b_ref, b3b_ref)

    # Branch 4: 3x3 max-pool (stride 1, pad 1; -inf pad, center tap is always
    # real data so the pooled values stay finite) -> 1x1 conv.
    ncol = jnp.full((H, 1, Cin), -jnp.inf, cdt)
    xw = jnp.concatenate([ncol, x, ncol], axis=1)                      # (H, W+2, Cin)
    mx = jnp.maximum(jnp.maximum(xw[:, 0:W], xw[:, 1:W + 1]), xw[:, 2:W + 2])
    nrow = jnp.full((1, W, Cin), -jnp.inf, cdt)
    mp = jnp.concatenate([nrow, mx, nrow], axis=0)                     # (H+2, W, Cin)
    pooled = jnp.maximum(jnp.maximum(mp[0:H], mp[1:H + 1]), mp[2:H + 2])
    y4 = mm_bias_relu(pooled.reshape(H * W, Cin), w4_ref[...], b4_ref[...])

    # Single channel-concatenated (lane-denser) store.
    y = jnp.concatenate([y1, y2, y3, y4], axis=-1)                     # (M, Ctot) f32
    o_ref[0] = y.reshape(H, W, y.shape[-1])


# ----------------------------- pallas_call wrapper ---------------------------

def _const_spec(arr):
    rank = arr.ndim
    return pl.BlockSpec(arr.shape, lambda b, _r=rank: (0,) * _r)


def _inception_pallas(x_nhwc_bf16, kp):
    N, H, W, Cin = x_nhwc_bf16.shape
    order = ("b1", "b2_red", "b2_3x3", "b3_red", "b3_3x3a", "b3_3x3b", "b4")
    flat = []
    for name in order:
        flat.extend(kp[name])                       # (weight, bias) per layer
    c_tot = (kp["b1"][0].shape[-1] + kp["b2_3x3"][0].shape[-1]
             + kp["b3_3x3b"][0].shape[-1] + kp["b4"][0].shape[-1])
    in_specs = [pl.BlockSpec((1, H, W, Cin), lambda b: (b, 0, 0, 0))]
    in_specs += [_const_spec(a) for a in flat]
    return pl.pallas_call(
        _inception_kernel,
        out_shape=jax.ShapeDtypeStruct((N, H, W, c_tot), jnp.float32),
        grid=(N,),
        in_specs=in_specs,
        out_specs=pl.BlockSpec((1, H, W, c_tot), lambda b: (b, 0, 0, 0)),
        compiler_params=pltpu.CompilerParams(
            dimension_semantics=("parallel",)),
    )(x_nhwc_bf16, *flat)


@jax.jit
def inception_forward(x_nchw, kparams):
    # NCHW in (PyTorch layout) -> NHWC internally -> NCHW out.
    x = jnp.transpose(x_nchw, (0, 2, 3, 1)).astype(jnp.bfloat16)
    y = _inception_pallas(x, kparams)
    return jnp.transpose(y, (0, 3, 1, 2))


# ----------------------------- parameters ------------------------------------

def make_conv_bn_raw(key, cin, cout, k):
    """Deterministic synthetic Conv2d(k x k) + BatchNorm2d parameters."""
    k1, k2, k3, k4, k5, k6 = jax.random.split(key, 6)
    return {
        "w": jax.random.normal(k1, (cout, cin, k, k), jnp.float32) * 0.1,  # OIHW
        "conv_b": jax.random.normal(k2, (cout,), jnp.float32) * 0.1,
        "gamma": jax.random.uniform(k3, (cout,), jnp.float32, 0.5, 1.5),
        "beta": jax.random.normal(k4, (cout,), jnp.float32) * 0.1,
        "mean": jax.random.normal(k5, (cout,), jnp.float32) * 0.1,
        "var": jax.random.uniform(k6, (cout,), jnp.float32, 0.5, 1.5),
    }


def fold_for_kernel(raw, eps=1e-5):
    """Fold BN (inference) into conv weight + bias; reshape for the kernel."""
    w, cb = raw["w"], raw["conv_b"]
    scale = raw["gamma"] / jnp.sqrt(raw["var"] + eps)                 # (Cout,)
    bias = (cb - raw["mean"]) * scale + raw["beta"]                   # (Cout,)
    wf = w * scale[:, None, None, None]                               # OIHW, scaled
    cout, cin, kh, kw = w.shape
    if kh == 1:
        wk = jnp.transpose(wf[:, :, 0, 0], (1, 0))                    # (Cin, Cout)
    else:
        wk = jnp.transpose(wf, (2, 3, 1, 0)).reshape(kh, kw * cin, cout)  # (3,3C,Cout)
    return wk.astype(jnp.bfloat16), bias.reshape(1, -1).astype(jnp.float32)


# ----------------------------- pure-JAX reference ----------------------------

def conv_bn_relu_ref(x_nhwc, raw, pad, eps=1e-5):
    w = jnp.transpose(raw["w"], (2, 3, 1, 0))                         # HWIO
    y = jax.lax.conv_general_dilated(
        x_nhwc, w, window_strides=(1, 1),
        padding=[(pad, pad), (pad, pad)],
        dimension_numbers=("NHWC", "HWIO", "NHWC"))
    y = y + raw["conv_b"]
    scale = raw["gamma"] / jnp.sqrt(raw["var"] + eps)
    y = (y - raw["mean"]) * scale + raw["beta"]
    return jnp.maximum(y, 0.0)


def inception_ref(x_nchw, raw):
    x = jnp.transpose(x_nchw, (0, 2, 3, 1))
    y1 = conv_bn_relu_ref(x, raw["b1"], 0)
    y2 = conv_bn_relu_ref(conv_bn_relu_ref(x, raw["b2_red"], 0), raw["b2_3x3"], 1)
    t3 = conv_bn_relu_ref(x, raw["b3_red"], 0)
    t3 = conv_bn_relu_ref(t3, raw["b3_3x3a"], 1)
    y3 = conv_bn_relu_ref(t3, raw["b3_3x3b"], 1)
    pooled = jax.lax.reduce_window(
        x, -jnp.inf, jax.lax.max, (1, 3, 3, 1), (1, 1, 1, 1),
        [(0, 0), (1, 1), (1, 1), (0, 0)])
    y4 = conv_bn_relu_ref(pooled, raw["b4"], 0)
    return jnp.transpose(jnp.concatenate([y1, y2, y3, y4], axis=-1), (0, 3, 1, 2))


# ----------------------------- main -------------------------------------------

if __name__ == "__main__":
    key = jax.random.PRNGKey(0)
    kx, kp = jax.random.split(key)

    # Small shapes consistent with the module.
    N, C_in, H, W = 2, 4, 16, 16
    n1x1, n3x3red, n3x3, n5x5red, n5x5, pool_planes = 8, 4, 8, 4, 8, 8

    x = jax.random.normal(kx, (N, C_in, H, W), jnp.float32)

    keys = jax.random.split(kp, 7)
    raw = {
        "b1":      make_conv_bn_raw(keys[0], C_in, n1x1, 1),
        "b2_red":  make_conv_bn_raw(keys[1], C_in, n3x3red, 1),
        "b2_3x3":  make_conv_bn_raw(keys[2], n3x3red, n3x3, 3),
        "b3_red":  make_conv_bn_raw(keys[3], C_in, n5x5red, 1),
        "b3_3x3a": make_conv_bn_raw(keys[4], n5x5red, n5x5, 3),
        "b3_3x3b": make_conv_bn_raw(keys[5], n5x5, n5x5, 3),
        "b4":      make_conv_bn_raw(keys[6], C_in, pool_planes, 1),
    }
    kparams = {name: fold_for_kernel(p) for name, p in raw.items()}

    out = jax.block_until_ready(inception_forward(x, kparams))

    expected_c = n1x1 + n3x3 + n5x5 + pool_planes
    assert out.shape == (N, expected_c, H, W), out.shape
    assert bool(jnp.all(jnp.isfinite(out)))

    # f32 XLA reference; kernel uses bf16 MXU inputs -> loose tolerance.
    ref = inception_ref(x, raw)
    max_err = float(jnp.max(jnp.abs(out - ref)))
    assert bool(jnp.allclose(out, ref, atol=5e-2, rtol=5e-2)), max_err

    print("KERNEL_OK")
</pallas_src>

<mosaic_0001>
module attributes {stable_mosaic.version = 11 : i64} {
  func.func @_inception_kernel(%arg0: i32, %arg1: memref<1x16x16x4xbf16, #tpu.memory_space<vmem>>, %arg2: memref<4x8xbf16, #tpu.memory_space<vmem>>, %arg3: memref<1x8xf32, #tpu.memory_space<vmem>>, %arg4: memref<4x4xbf16, #tpu.memory_space<vmem>>, %arg5: memref<1x4xf32, #tpu.memory_space<vmem>>, %arg6: memref<3x12x8xbf16, #tpu.memory_space<vmem>>, %arg7: memref<1x8xf32, #tpu.memory_space<vmem>>, %arg8: memref<4x4xbf16, #tpu.memory_space<vmem>>, %arg9: memref<1x4xf32, #tpu.memory_space<vmem>>, %arg10: memref<3x12x8xbf16, #tpu.memory_space<vmem>>, %arg11: memref<1x8xf32, #tpu.memory_space<vmem>>, %arg12: memref<3x24x8xbf16, #tpu.memory_space<vmem>>, %arg13: memref<1x8xf32, #tpu.memory_space<vmem>>, %arg14: memref<4x8xbf16, #tpu.memory_space<vmem>>, %arg15: memref<1x8xf32, #tpu.memory_space<vmem>>, %arg16: memref<1x16x16x32xf32, #tpu.memory_space<vmem>>) attributes {dimension_semantics = [#tpu.dimension_semantics<parallel>], iteration_bounds = array<i64: 2>, scalar_prefetch = 0 : i64, scratch_operands = 0 : i64, tpu.core_type = #tpu.core_type<tc>, window_params = [{transform_indices = @transform_0, window_bounds = array<i64: 1, 16, 16, 4>}, {pipeline_mode = #tpu.pipeline_mode<synchronous>, transform_indices = @transform_1, window_bounds = array<i64: 4, 8>}, {pipeline_mode = #tpu.pipeline_mode<synchronous>, transform_indices = @transform_2, window_bounds = array<i64: 1, 8>}, {pipeline_mode = #tpu.pipeline_mode<synchronous>, transform_indices = @transform_3, window_bounds = array<i64: 4, 4>}, {pipeline_mode = #tpu.pipeline_mode<synchronous>, transform_indices = @transform_4, window_bounds = array<i64: 1, 4>}, {pipeline_mode = #tpu.pipeline_mode<synchronous>, transform_indices = @transform_5, window_bounds = array<i64: 3, 12, 8>}, {pipeline_mode = #tpu.pipeline_mode<synchronous>, transform_indices = @transform_6, window_bounds = array<i64: 1, 8>}, {pipeline_mode = #tpu.pipeline_mode<synchronous>, transform_indices = @transform_7, window_bounds = array<i64: 4, 4>}, {pipeline_mode = #tpu.pipeline_mode<synchronous>, transform_indices = @transform_8, window_bounds = array<i64: 1, 4>}, {pipeline_mode = #tpu.pipeline_mode<synchronous>, transform_indices = @transform_9, window_bounds = array<i64: 3, 12, 8>}, {pipeline_mode = #tpu.pipeline_mode<synchronous>, transform_indices = @transform_10, window_bounds = array<i64: 1, 8>}, {pipeline_mode = #tpu.pipeline_mode<synchronous>, transform_indices = @transform_11, window_bounds = array<i64: 3, 24, 8>}, {pipeline_mode = #tpu.pipeline_mode<synchronous>, transform_indices = @transform_12, window_bounds = array<i64: 1, 8>}, {pipeline_mode = #tpu.pipeline_mode<synchronous>, transform_indices = @transform_13, window_bounds = array<i64: 4, 8>}, {pipeline_mode = #tpu.pipeline_mode<synchronous>, transform_indices = @transform_14, window_bounds = array<i64: 1, 8>}, {transform_indices = @transform_15, window_bounds = array<i64: 1, 16, 16, 32>}]} {
    %c0 = arith.constant 0 : index
    %c0_0 = arith.constant 0 : index
    %c0_1 = arith.constant 0 : index
    %c0_2 = arith.constant 0 : index
    %0 = vector.load %arg1[%c0, %c0_0, %c0_1, %c0_2] : memref<1x16x16x4xbf16, #tpu.memory_space<vmem>>, vector<1x16x16x4xbf16>
    %1 = vector.shape_cast %0 : vector<1x16x16x4xbf16> to vector<16x16x4xbf16>
    %2 = vector.shape_cast %1 : vector<16x16x4xbf16> to vector<256x4xbf16>
    %c0_3 = arith.constant 0 : index
    %c0_4 = arith.constant 0 : index
    %3 = vector.load %arg2[%c0_3, %c0_4] : memref<4x8xbf16, #tpu.memory_space<vmem>>, vector<4x8xbf16>
    %c0_5 = arith.constant 0 : index
    %c0_6 = arith.constant 0 : index
    %4 = vector.load %arg3[%c0_5, %c0_6] : memref<1x8xf32, #tpu.memory_space<vmem>>, vector<1x8xf32>
    %cst = arith.constant dense<0.000000e+00> : vector<256x8xf32>
    %5 = tpu.matmul %2, %3, %cst {dimension_numbers = #tpu.dot_dimension_numbers<[1], [0], [0], [1], [0, 0, 1, 1], [], []>} : vector<256x4xbf16>, vector<4x8xbf16>, vector<256x8xf32> -> vector<256x8xf32>
    %6 = vector.broadcast %4 : vector<1x8xf32> to vector<256x8xf32>
    %7 = arith.addf %5, %6 : vector<256x8xf32>
    %cst_7 = arith.constant 0.000000e+00 : f32
    %8 = vector.broadcast %cst_7 : f32 to vector<256x8xf32>
    %9 = arith.maximumf %7, %8 : vector<256x8xf32>
    %c0_8 = arith.constant 0 : index
    %c0_9 = arith.constant 0 : index
    %10 = vector.load %arg4[%c0_8, %c0_9] : memref<4x4xbf16, #tpu.memory_space<vmem>>, vector<4x4xbf16>
    %c0_10 = arith.constant 0 : index
    %c0_11 = arith.constant 0 : index
    %11 = vector.load %arg5[%c0_10, %c0_11] : memref<1x4xf32, #tpu.memory_space<vmem>>, vector<1x4xf32>
    %cst_12 = arith.constant dense<0.000000e+00> : vector<256x4xf32>
    %12 = tpu.matmul %2, %10, %cst_12 {dimension_numbers = #tpu.dot_dimension_numbers<[1], [0], [0], [1], [0, 0, 1, 1], [], []>} : vector<256x4xbf16>, vector<4x4xbf16>, vector<256x4xf32> -> vector<256x4xf32>
    %13 = vector.broadcast %11 : vector<1x4xf32> to vector<256x4xf32>
    %14 = arith.addf %12, %13 : vector<256x4xf32>
    %cst_13 = arith.constant 0.000000e+00 : f32
    %15 = vector.broadcast %cst_13 : f32 to vector<256x4xf32>
    %16 = arith.maximumf %14, %15 : vector<256x4xf32>
    %17 = arith.truncf %16 : vector<256x4xf32> to vector<256x4xbf16>
    %18 = vector.shape_cast %17 : vector<256x4xbf16> to vector<16x16x4xbf16>
    %cst_14 = arith.constant 0.000000e+00 : bf16
    %19 = vector.broadcast %cst_14 : bf16 to vector<16x1x4xbf16>
    %20 = tpu.concatenate %19, %18, %19 in 1 : vector<16x1x4xbf16>, vector<16x16x4xbf16>, vector<16x1x4xbf16> -> vector<16x18x4xbf16>
    %21 = vector.extract_strided_slice %20 {offsets = [0, 0, 0], sizes = [16, 16, 4], strides = [1, 1, 1]} : vector<16x18x4xbf16> to vector<16x16x4xbf16>
    %22 = vector.extract_strided_slice %20 {offsets = [0, 1, 0], sizes = [16, 16, 4], strides = [1, 1, 1]} : vector<16x18x4xbf16> to vector<16x16x4xbf16>
    %23 = vector.extract_strided_slice %20 {offsets = [0, 2, 0], sizes = [16, 16, 4], strides = [1, 1, 1]} : vector<16x18x4xbf16> to vector<16x16x4xbf16>
    %24 = tpu.concatenate %21, %22, %23 in 2 : vector<16x16x4xbf16>, vector<16x16x4xbf16>, vector<16x16x4xbf16> -> vector<16x16x12xbf16>
    %cst_15 = arith.constant 0.000000e+00 : bf16
    %25 = vector.broadcast %cst_15 : bf16 to vector<1x16x12xbf16>
    %26 = tpu.concatenate %25, %24, %25 in 0 : vector<1x16x12xbf16>, vector<16x16x12xbf16>, vector<1x16x12xbf16> -> vector<18x16x12xbf16>
    %27 = vector.extract_strided_slice %26 {offsets = [0, 0, 0], sizes = [16, 16, 12], strides = [1, 1, 1]} : vector<18x16x12xbf16> to vector<16x16x12xbf16>
    %28 = vector.shape_cast %27 : vector<16x16x12xbf16> to vector<256x12xbf16>
    %c0_16 = arith.constant 0 : index
    %c0_17 = arith.constant 0 : index
    %c0_18 = arith.constant 0 : index
    %29 = vector.load %arg6[%c0_16, %c0_17, %c0_18] : memref<3x12x8xbf16, #tpu.memory_space<vmem>>, vector<1x12x8xbf16>
    %30 = vector.shape_cast %29 : vector<1x12x8xbf16> to vector<12x8xbf16>
    %cst_19 = arith.constant dense<0.000000e+00> : vector<256x8xf32>
    %31 = tpu.matmul %28, %30, %cst_19 {dimension_numbers = #tpu.dot_dimension_numbers<[1], [0], [0], [1], [0, 0, 1, 1], [], []>} : vector<256x12xbf16>, vector<12x8xbf16>, vector<256x8xf32> -> vector<256x8xf32>
    %32 = vector.extract_strided_slice %26 {offsets = [1, 0, 0], sizes = [16, 16, 12], strides = [1, 1, 1]} : vector<18x16x12xbf16> to vector<16x16x12xbf16>
    %33 = vector.shape_cast %32 : vector<16x16x12xbf16> to vector<256x12xbf16>
    %c1 = arith.constant 1 : index
    %c0_20 = arith.constant 0 : index
    %c0_21 = arith.constant 0 : index
    %34 = vector.load %arg6[%c1, %c0_20, %c0_21] : memref<3x12x8xbf16, #tpu.memory_space<vmem>>, vector<1x12x8xbf16>
    %35 = vector.shape_cast %34 : vector<1x12x8xbf16> to vector<12x8xbf16>
    %cst_22 = arith.constant dense<0.000000e+00> : vector<256x8xf32>
    %36 = tpu.matmul %33, %35, %cst_22 {dimension_numbers = #tpu.dot_dimension_numbers<[1], [0], [0], [1], [0, 0, 1, 1], [], []>} : vector<256x12xbf16>, vector<12x8xbf16>, vector<256x8xf32> -> vector<256x8xf32>
    %37 = arith.addf %31, %36 : vector<256x8xf32>
    %38 = vector.extract_strided_slice %26 {offsets = [2, 0, 0], sizes = [16, 16, 12], strides = [1, 1, 1]} : vector<18x16x12xbf16> to vector<16x16x12xbf16>
    %39 = vector.shape_cast %38 : vector<16x16x12xbf16> to vector<256x12xbf16>
    %c2 = arith.constant 2 : index
    %c0_23 = arith.constant 0 : index
    %c0_24 = arith.constant 0 : index
    %40 = vector.load %arg6[%c2, %c0_23, %c0_24] : memref<3x12x8xbf16, #tpu.memory_space<vmem>>, vector<1x12x8xbf16>
    %41 = vector.shape_cast %40 : vector<1x12x8xbf16> to vector<12x8xbf16>
    %cst_25 = arith.constant dense<0.000000e+00> : vector<256x8xf32>
    %42 = tpu.matmul %39, %41, %cst_25 {dimension_numbers = #tpu.dot_dimension_numbers<[1], [0], [0], [1], [0, 0, 1, 1], [], []>} : vector<256x12xbf16>, vector<12x8xbf16>, vector<256x8xf32> -> vector<256x8xf32>
    %43 = arith.addf %37, %42 : vector<256x8xf32>
    %c0_26 = arith.constant 0 : index
    %c0_27 = arith.constant 0 : index
    %44 = vector.load %arg7[%c0_26, %c0_27] : memref<1x8xf32, #tpu.memory_space<vmem>>, vector<1x8xf32>
    %45 = vector.broadcast %44 : vector<1x8xf32> to vector<256x8xf32>
    %46 = arith.addf %43, %45 : vector<256x8xf32>
    %cst_28 = arith.constant 0.000000e+00 : f32
    %47 = vector.broadcast %cst_28 : f32 to vector<256x8xf32>
    %48 = arith.maximumf %46, %47 : vector<256x8xf32>
    %c0_29 = arith.constant 0 : index
    %c0_30 = arith.constant 0 : index
    %49 = vector.load %arg8[%c0_29, %c0_30] : memref<4x4xbf16, #tpu.memory_space<vmem>>, vector<4x4xbf16>
    %c0_31 = arith.constant 0 : index
    %c0_32 = arith.constant 0 : index
    %50 = vector.load %arg9[%c0_31, %c0_32] : memref<1x4xf32, #tpu.memory_space<vmem>>, vector<1x4xf32>
    %cst_33 = arith.constant dense<0.000000e+00> : vector<256x4xf32>
    %51 = tpu.matmul %2, %49, %cst_33 {dimension_numbers = #tpu.dot_dimension_numbers<[1], [0], [0], [1], [0, 0, 1, 1], [], []>} : vector<256x4xbf16>, vector<4x4xbf16>, vector<256x4xf32> -> vector<256x4xf32>
    %52 = vector.broadcast %50 : vector<1x4xf32> to vector<256x4xf32>
    %53 = arith.addf %51, %52 : vector<256x4xf32>
    %cst_34 = arith.constant 0.000000e+00 : f32
    %54 = vector.broadcast %cst_34 : f32 to vector<256x4xf32>
    %55 = arith.maximumf %53, %54 : vector<256x4xf32>
    %56 = arith.truncf %55 : vector<256x4xf32> to vector<256x4xbf16>
    %57 = vector.shape_cast %56 : vector<256x4xbf16> to vector<16x16x4xbf16>
    %cst_35 = arith.constant 0.000000e+00 : bf16
    %58 = vector.broadcast %cst_35 : bf16 to vector<16x1x4xbf16>
    %59 = tpu.concatenate %58, %57, %58 in 1 : vector<16x1x4xbf16>, vector<16x16x4xbf16>, vector<16x1x4xbf16> -> vector<16x18x4xbf16>
    %60 = vector.extract_strided_slice %59 {offsets = [0, 0, 0], sizes = [16, 16, 4], strides = [1, 1, 1]} : vector<16x18x4xbf16> to vector<16x16x4xbf16>
    %61 = vector.extract_strided_slice %59 {offsets = [0, 1, 0], sizes = [16, 16, 4], strides = [1, 1, 1]} : vector<16x18x4xbf16> to vector<16x16x4xbf16>
    %62 = vector.extract_strided_slice %59 {offsets = [0, 2, 0], sizes = [16, 16, 4], strides = [1, 1, 1]} : vector<16x18x4xbf16> to vector<16x16x4xbf16>
    %63 = tpu.concatenate %60, %61, %62 in 2 : vector<16x16x4xbf16>, vector<16x16x4xbf16>, vector<16x16x4xbf16> -> vector<16x16x12xbf16>
    %cst_36 = arith.constant 0.000000e+00 : bf16
    %64 = vector.broadcast %cst_36 : bf16 to vector<1x16x12xbf16>
    %65 = tpu.concatenate %64, %63, %64 in 0 : vector<1x16x12xbf16>, vector<16x16x12xbf16>, vector<1x16x12xbf16> -> vector<18x16x12xbf16>
    %66 = vector.extract_strided_slice %65 {offsets = [0, 0, 0], sizes = [16, 16, 12], strides = [1, 1, 1]} : vector<18x16x12xbf16> to vector<16x16x12xbf16>
    %67 = vector.shape_cast %66 : vector<16x16x12xbf16> to vector<256x12xbf16>
    %c0_37 = arith.constant 0 : index
    %c0_38 = arith.constant 0 : index
    %c0_39 = arith.constant 0 : index
    %68 = vector.load %arg10[%c0_37, %c0_38, %c0_39] : memref<3x12x8xbf16, #tpu.memory_space<vmem>>, vector<1x12x8xbf16>
    %69 = vector.shape_cast %68 : vector<1x12x8xbf16> to vector<12x8xbf16>
    %cst_40 = arith.constant dense<0.000000e+00> : vector<256x8xf32>
    %70 = tpu.matmul %67, %69, %cst_40 {dimension_numbers = #tpu.dot_dimension_numbers<[1], [0], [0], [1], [0, 0, 1, 1], [], []>} : vector<256x12xbf16>, vector<12x8xbf16>, vector<256x8xf32> -> vector<256x8xf32>
    %71 = vector.extract_strided_slice %65 {offsets = [1, 0, 0], sizes = [16, 16, 12], strides = [1, 1, 1]} : vector<18x16x12xbf16> to vector<16x16x12xbf16>
    %72 = vector.shape_cast %71 : vector<16x16x12xbf16> to vector<256x12xbf16>
    %c1_41 = arith.constant 1 : index
    %c0_42 = arith.constant 0 : index
    %c0_43 = arith.constant 0 : index
    %73 = vector.load %arg10[%c1_41, %c0_42, %c0_43] : memref<3x12x8xbf16, #tpu.memory_space<vmem>>, vector<1x12x8xbf16>
    %74 = vector.shape_cast %73 : vector<1x12x8xbf16> to vector<12x8xbf16>
    %cst_44 = arith.constant dense<0.000000e+00> : vector<256x8xf32>
    %75 = tpu.matmul %72, %74, %cst_44 {dimension_numbers = #tpu.dot_dimension_numbers<[1], [0], [0], [1], [0, 0, 1, 1], [], []>} : vector<256x12xbf16>, vector<12x8xbf16>, vector<256x8xf32> -> vector<256x8xf32>
    %76 = arith.addf %70, %75 : vector<256x8xf32>
    %77 = vector.extract_strided_slice %65 {offsets = [2, 0, 0], sizes = [16, 16, 12], strides = [1, 1, 1]} : vector<18x16x12xbf16> to vector<16x16x12xbf16>
    %78 = vector.shape_cast %77 : vector<16x16x12xbf16> to vector<256x12xbf16>
    %c2_45 = arith.constant 2 : index
    %c0_46 = arith.constant 0 : index
    %c0_47 = arith.constant 0 : index
    %79 = vector.load %arg10[%c2_45, %c0_46, %c0_47] : memref<3x12x8xbf16, #tpu.memory_space<vmem>>, vector<1x12x8xbf16>
    %80 = vector.shape_cast %79 : vector<1x12x8xbf16> to vector<12x8xbf16>
    %cst_48 = arith.constant dense<0.000000e+00> : vector<256x8xf32>
    %81 = tpu.matmul %78, %80, %cst_48 {dimension_numbers = #tpu.dot_dimension_numbers<[1], [0], [0], [1], [0, 0, 1, 1], [], []>} : vector<256x12xbf16>, vector<12x8xbf16>, vector<256x8xf32> -> vector<256x8xf32>
    %82 = arith.addf %76, %81 : vector<256x8xf32>
    %c0_49 = arith.constant 0 : index
    %c0_50 = arith.constant 0 : index
    %83 = vector.load %arg11[%c0_49, %c0_50] : memref<1x8xf32, #tpu.memory_space<vmem>>, vector<1x8xf32>
    %84 = vector.broadcast %83 : vector<1x8xf32> to vector<256x8xf32>
    %85 = arith.addf %82, %84 : vector<256x8xf32>
    %cst_51 = arith.constant 0.000000e+00 : f32
    %86 = vector.broadcast %cst_51 : f32 to vector<256x8xf32>
    %87 = arith.maximumf %85, %86 : vector<256x8xf32>
    %88 = arith.truncf %87 : vector<256x8xf32> to vector<256x8xbf16>
    %89 = vector.shape_cast %88 : vector<256x8xbf16> to vector<16x16x8xbf16>
    %cst_52 = arith.constant 0.000000e+00 : bf16
    %90 = vector.broadcast %cst_52 : bf16 to vector<16x1x8xbf16>
    %91 = tpu.concatenate %90, %89, %90 in 1 : vector<16x1x8xbf16>, vector<16x16x8xbf16>, vector<16x1x8xbf16> -> vector<16x18x8xbf16>
    %92 = vector.extract_strided_slice %91 {offsets = [0, 0, 0], sizes = [16, 16, 8], strides = [1, 1, 1]} : vector<16x18x8xbf16> to vector<16x16x8xbf16>
    %93 = vector.extract_strided_slice %91 {offsets = [0, 1, 0], sizes = [16, 16, 8], strides = [1, 1, 1]} : vector<16x18x8xbf16> to vector<16x16x8xbf16>
    %94 = vector.extract_strided_slice %91 {offsets = [0, 2, 0], sizes = [16, 16, 8], strides = [1, 1, 1]} : vector<16x18x8xbf16> to vector<16x16x8xbf16>
    %95 = tpu.concatenate %92, %93, %94 in 2 : vector<16x16x8xbf16>, vector<16x16x8xbf16>, vector<16x16x8xbf16> -> vector<16x16x24xbf16>
    %cst_53 = arith.constant 0.000000e+00 : bf16
    %96 = vector.broadcast %cst_53 : bf16 to vector<1x16x24xbf16>
    %97 = tpu.concatenate %96, %95, %96 in 0 : vector<1x16x24xbf16>, vector<16x16x24xbf16>, vector<1x16x24xbf16> -> vector<18x16x24xbf16>
    %98 = vector.extract_strided_slice %97 {offsets = [0, 0, 0], sizes = [16, 16, 24], strides = [1, 1, 1]} : vector<18x16x24xbf16> to vector<16x16x24xbf16>
    %99 = vector.shape_cast %98 : vector<16x16x24xbf16> to vector<256x24xbf16>
    %c0_54 = arith.constant 0 : index
    %c0_55 = arith.constant 0 : index
    %c0_56 = arith.constant 0 : index
    %100 = vector.load %arg12[%c0_54, %c0_55, %c0_56] : memref<3x24x8xbf16, #tpu.memory_space<vmem>>, vector<1x24x8xbf16>
    %101 = vector.shape_cast %100 : vector<1x24x8xbf16> to vector<24x8xbf16>
    %cst_57 = arith.constant dense<0.000000e+00> : vector<256x8xf32>
    %102 = tpu.matmul %99, %101, %cst_57 {dimension_numbers = #tpu.dot_dimension_numbers<[1], [0], [0], [1], [0, 0, 1, 1], [], []>} : vector<256x24xbf16>, vector<24x8xbf16>, vector<256x8xf32> -> vector<256x8xf32>
    %103 = vector.extract_strided_slice %97 {offsets = [1, 0, 0], sizes = [16, 16, 24], strides = [1, 1, 1]} : vector<18x16x24xbf16> to vector<16x16x24xbf16>
    %104 = vector.shape_cast %103 : vector<16x16x24xbf16> to vector<256x24xbf16>
    %c1_58 = arith.constant 1 : index
    %c0_59 = arith.constant 0 : index
    %c0_60 = arith.constant 0 : index
    %105 = vector.load %arg12[%c1_58, %c0_59, %c0_60] : memref<3x24x8xbf16, #tpu.memory_space<vmem>>, vector<1x24x8xbf16>
    %106 = vector.shape_cast %105 : vector<1x24x8xbf16> to vector<24x8xbf16>
    %cst_61 = arith.constant dense<0.000000e+00> : vector<256x8xf32>
    %107 = tpu.matmul %104, %106, %cst_61 {dimension_numbers = #tpu.dot_dimension_numbers<[1], [0], [0], [1], [0, 0, 1, 1], [], []>} : vector<256x24xbf16>, vector<24x8xbf16>, vector<256x8xf32> -> vector<256x8xf32>
    %108 = arith.addf %102, %107 : vector<256x8xf32>
    %109 = vector.extract_strided_slice %97 {offsets = [2, 0, 0], sizes = [16, 16, 24], strides = [1, 1, 1]} : vector<18x16x24xbf16> to vector<16x16x24xbf16>
    %110 = vector.shape_cast %109 : vector<16x16x24xbf16> to vector<256x24xbf16>
    %c2_62 = arith.constant 2 : index
    %c0_63 = arith.constant 0 : index
    %c0_64 = arith.constant 0 : index
    %111 = vector.load %arg12[%c2_62, %c0_63, %c0_64] : memref<3x24x8xbf16, #tpu.memory_space<vmem>>, vector<1x24x8xbf16>
    %112 = vector.shape_cast %111 : vector<1x24x8xbf16> to vector<24x8xbf16>
    %cst_65 = arith.constant dense<0.000000e+00> : vector<256x8xf32>
    %113 = tpu.matmul %110, %112, %cst_65 {dimension_numbers = #tpu.dot_dimension_numbers<[1], [0], [0], [1], [0, 0, 1, 1], [], []>} : vector<256x24xbf16>, vector<24x8xbf16>, vector<256x8xf32> -> vector<256x8xf32>
    %114 = arith.addf %108, %113 : vector<256x8xf32>
    %c0_66 = arith.constant 0 : index
    %c0_67 = arith.constant 0 : index
    %115 = vector.load %arg13[%c0_66, %c0_67] : memref<1x8xf32, #tpu.memory_space<vmem>>, vector<1x8xf32>
    %116 = vector.broadcast %115 : vector<1x8xf32> to vector<256x8xf32>
    %117 = arith.addf %114, %116 : vector<256x8xf32>
    %cst_68 = arith.constant 0.000000e+00 : f32
    %118 = vector.broadcast %cst_68 : f32 to vector<256x8xf32>
    %119 = arith.maximumf %117, %118 : vector<256x8xf32>
    %cst_69 = arith.constant 0xFF80 : bf16
    %120 = vector.broadcast %cst_69 : bf16 to vector<16x1x4xbf16>
    %121 = tpu.concatenate %120, %1, %120 in 1 : vector<16x1x4xbf16>, vector<16x16x4xbf16>, vector<16x1x4xbf16> -> vector<16x18x4xbf16>
    %122 = vector.extract_strided_slice %121 {offsets = [0, 0, 0], sizes = [16, 16, 4], strides = [1, 1, 1]} : vector<16x18x4xbf16> to vector<16x16x4xbf16>
    %123 = vector.extract_strided_slice %121 {offsets = [0, 1, 0], sizes = [16, 16, 4], strides = [1, 1, 1]} : vector<16x18x4xbf16> to vector<16x16x4xbf16>
    %124 = arith.maximumf %122, %123 : vector<16x16x4xbf16>
    %125 = vector.extract_strided_slice %121 {offsets = [0, 2, 0], sizes = [16, 16, 4], strides = [1, 1, 1]} : vector<16x18x4xbf16> to vector<16x16x4xbf16>
    %126 = arith.maximumf %124, %125 : vector<16x16x4xbf16>
    %cst_70 = arith.constant 0xFF80 : bf16
    %127 = vector.broadcast %cst_70 : bf16 to vector<1x16x4xbf16>
    %128 = tpu.concatenate %127, %126, %127 in 0 : vector<1x16x4xbf16>, vector<16x16x4xbf16>, vector<1x16x4xbf16> -> vector<18x16x4xbf16>
    %129 = vector.extract_strided_slice %128 {offsets = [0, 0, 0], sizes = [16, 16, 4], strides = [1, 1, 1]} : vector<18x16x4xbf16> to vector<16x16x4xbf16>
    %130 = vector.extract_strided_slice %128 {offsets = [1, 0, 0], sizes = [16, 16, 4], strides = [1, 1, 1]} : vector<18x16x4xbf16> to vector<16x16x4xbf16>
    %131 = arith.maximumf %129, %130 : vector<16x16x4xbf16>
    %132 = vector.extract_strided_slice %128 {offsets = [2, 0, 0], sizes = [16, 16, 4], strides = [1, 1, 1]} : vector<18x16x4xbf16> to vector<16x16x4xbf16>
    %133 = arith.maximumf %131, %132 : vector<16x16x4xbf16>
    %134 = vector.shape_cast %133 : vector<16x16x4xbf16> to vector<256x4xbf16>
    %c0_71 = arith.constant 0 : index
    %c0_72 = arith.constant 0 : index
    %135 = vector.load %arg14[%c0_71, %c0_72] : memref<4x8xbf16, #tpu.memory_space<vmem>>, vector<4x8xbf16>
    %c0_73 = arith.constant 0 : index
    %c0_74 = arith.constant 0 : index
    %136 = vector.load %arg15[%c0_73, %c0_74] : memref<1x8xf32, #tpu.memory_space<vmem>>, vector<1x8xf32>
    %cst_75 = arith.constant dense<0.000000e+00> : vector<256x8xf32>
    %137 = tpu.matmul %134, %135, %cst_75 {dimension_numbers = #tpu.dot_dimension_numbers<[1], [0], [0], [1], [0, 0, 1, 1], [], []>} : vector<256x4xbf16>, vector<4x8xbf16>, vector<256x8xf32> -> vector<256x8xf32>
    %138 = vector.broadcast %136 : vector<1x8xf32> to vector<256x8xf32>
    %139 = arith.addf %137, %138 : vector<256x8xf32>
    %cst_76 = arith.constant 0.000000e+00 : f32
    %140 = vector.broadcast %cst_76 : f32 to vector<256x8xf32>
    %141 = arith.maximumf %139, %140 : vector<256x8xf32>
    %142 = tpu.concatenate %9, %48, %119, %141 in 1 : vector<256x8xf32>, vector<256x8xf32>, vector<256x8xf32>, vector<256x8xf32> -> vector<256x32xf32>
    %143 = vector.shape_cast %142 : vector<256x32xf32> to vector<16x16x32xf32>
    %c0_77 = arith.constant 0 : index
    %c0_78 = arith.constant 0 : index
    %c0_79 = arith.constant 0 : index
    %c0_80 = arith.constant 0 : index
    %144 = vector.load %arg16[%c0_77, %c0_78, %c0_79, %c0_80] : memref<1x16x16x32xf32, #tpu.memory_space<vmem>>, vector<1x16x16x32xf32>
    %145 = vector.shape_cast %144 : vector<1x16x16x32xf32> to vector<16x16x32xf32>
    %146 = vector.shape_cast %143 : vector<16x16x32xf32> to vector<1x16x16x32xf32>
    tpu.vector_store %arg16[%c0_77, %c0_78, %c0_79, %c0_80], %146 {strides = array<i32>} : memref<1x16x16x32xf32, #tpu.memory_space<vmem>>, vector<1x16x16x32xf32>,
    return
  }
  func.func @transform_0(%arg0: i32) -> (i32, i32, i32, i32) {
    %c0_i32 = arith.constant 0 : i32
    %c0_i32_0 = arith.constant 0 : i32
    %c0_i32_1 = arith.constant 0 : i32
    %c0_i32_2 = arith.constant 0 : i32
    return %arg0, %c0_i32, %c0_i32_0, %c0_i32_1 : i32, i32, i32, i32
  }
  func.func @transform_1(%arg0: i32) -> (i32, i32) {
    %c0_i32 = arith.constant 0 : i32
    %c0_i32_0 = arith.constant 0 : i32
    %c0_i32_1 = arith.constant 0 : i32
    return %c0_i32, %c0_i32_0 : i32, i32
  }
  func.func @transform_2(%arg0: i32) -> (i32, i32) {
    %c0_i32 = arith.constant 0 : i32
    %c0_i32_0 = arith.constant 0 : i32
    %c0_i32_1 = arith.constant 0 : i32
    return %c0_i32, %c0_i32_0 : i32, i32
  }
  func.func @transform_3(%arg0: i32) -> (i32, i32) {
    %c0_i32 = arith.constant 0 : i32
    %c0_i32_0 = arith.constant 0 : i32
    %c0_i32_1 = arith.constant 0 : i32
    return %c0_i32, %c0_i32_0 : i32, i32
  }
  func.func @transform_4(%arg0: i32) -> (i32, i32) {
    %c0_i32 = arith.constant 0 : i32
    %c0_i32_0 = arith.constant 0 : i32
    %c0_i32_1 = arith.constant 0 : i32
    return %c0_i32, %c0_i32_0 : i32, i32
  }
  func.func @transform_5(%arg0: i32) -> (i32, i32, i32) {
    %c0_i32 = arith.constant 0 : i32
    %c0_i32_0 = arith.constant 0 : i32
    %c0_i32_1 = arith.constant 0 : i32
    %c0_i32_2 = arith.constant 0 : i32
    return %c0_i32, %c0_i32_0, %c0_i32_1 : i32, i32, i32
  }
  func.func @transform_6(%arg0: i32) -> (i32, i32) {
    %c0_i32 = arith.constant 0 : i32
    %c0_i32_0 = arith.constant 0 : i32
    %c0_i32_1 = arith.constant 0 : i32
    return %c0_i32, %c0_i32_0 : i32, i32
  }
  func.func @transform_7(%arg0: i32) -> (i32, i32) {
    %c0_i32 = arith.constant 0 : i32
    %c0_i32_0 = arith.constant 0 : i32
    %c0_i32_1 = arith.constant 0 : i32
    return %c0_i32, %c0_i32_0 : i32, i32
  }
  func.func @transform_8(%arg0: i32) -> (i32, i32) {
    %c0_i32 = arith.constant 0 : i32
    %c0_i32_0 = arith.constant 0 : i32
    %c0_i32_1 = arith.constant 0 : i32
    return %c0_i32, %c0_i32_0 : i32, i32
  }
  func.func @transform_9(%arg0: i32) -> (i32, i32, i32) {
    %c0_i32 = arith.constant 0 : i32
    %c0_i32_0 = arith.constant 0 : i32
    %c0_i32_1 = arith.constant 0 : i32
    %c0_i32_2 = arith.constant 0 : i32
    return %c0_i32, %c0_i32_0, %c0_i32_1 : i32, i32, i32
  }
  func.func @transform_10(%arg0: i32) -> (i32, i32) {
    %c0_i32 = arith.constant 0 : i32
    %c0_i32_0 = arith.constant 0 : i32
    %c0_i32_1 = arith.constant 0 : i32
    return %c0_i32, %c0_i32_0 : i32, i32
  }
  func.func @transform_11(%arg0: i32) -> (i32, i32, i32) {
    %c0_i32 = arith.constant 0 : i32
    %c0_i32_0 = arith.constant 0 : i32
    %c0_i32_1 = arith.constant 0 : i32
    %c0_i32_2 = arith.constant 0 : i32
    return %c0_i32, %c0_i32_0, %c0_i32_1 : i32, i32, i32
  }
  func.func @transform_12(%arg0: i32) -> (i32, i32) {
    %c0_i32 = arith.constant 0 : i32
    %c0_i32_0 = arith.constant 0 : i32
    %c0_i32_1 = arith.constant 0 : i32
    return %c0_i32, %c0_i32_0 : i32, i32
  }
  func.func @transform_13(%arg0: i32) -> (i32, i32) {
    %c0_i32 = arith.constant 0 : i32
    %c0_i32_0 = arith.constant 0 : i32
    %c0_i32_1 = arith.constant 0 : i32
    return %c0_i32, %c0_i32_0 : i32, i32
  }
  func.func @transform_14(%arg0: i32) -> (i32, i32) {
    %c0_i32 = arith.constant 0 : i32
    %c0_i32_0 = arith.constant 0 : i32
    %c0_i32_1 = arith.constant 0 : i32
    return %c0_i32, %c0_i32_0 : i32, i32
  }
  func.func @transform_15(%arg0: i32) -> (i32, i32, i32, i32) {
    %c0_i32 = arith.constant 0 : i32
    %c0_i32_0 = arith.constant 0 : i32
    %c0_i32_1 = arith.constant 0 : i32
    %c0_i32_2 = arith.constant 0 : i32
    return %arg0, %c0_i32, %c0_i32_0, %c0_i32_1 : i32, i32, i32, i32
  }
}

</mosaic_0001>

<llo_original>
// kernel: inception_forward.1
$region0: #{inception_forward.1}
  #allocation0 [shape = 'u32[]', space=smem, size = 0x4, offset = 0x4, fixed_abs, tag = 'smem constant byte address 0x4 - core index']
  #allocation1 [shape = 'u32[144,128]{1,0:T(1,128)}', space=vmem, size = 0x12000, scoped, tag = 'internal scratch']
  %s0 = inlined_call_operand.vmem [shape: bf16[2,16,16,4], index: 0, kind: input, shape index: {}]
  %s1 = inlined_call_operand.vmem [shape: bf16[4,8], index: 1, kind: input, shape index: {}]
  %s2 = inlined_call_operand.vmem [shape: f32[1,8], index: 2, kind: input, shape index: {}]
  %s3 = inlined_call_operand.vmem [shape: bf16[4,4], index: 3, kind: input, shape index: {}]
  %s4 = inlined_call_operand.vmem [shape: f32[1,4], index: 4, kind: input, shape index: {}]
  %s5 = inlined_call_operand.vmem [shape: bf16[3,12,8], index: 5, kind: input, shape index: {}]
  %s6 = inlined_call_operand.vmem [shape: f32[1,8], index: 6, kind: input, shape index: {}]
  %s7 = inlined_call_operand.vmem [shape: bf16[4,4], index: 7, kind: input, shape index: {}]
  %s8 = inlined_call_operand.vmem [shape: f32[1,4], index: 8, kind: input, shape index: {}]
  %s9 = inlined_call_operand.vmem [shape: bf16[3,12,8], index: 9, kind: input, shape index: {}]
  %s10 = inlined_call_operand.vmem [shape: f32[1,8], index: 10, kind: input, shape index: {}]
  %s11 = inlined_call_operand.vmem [shape: bf16[3,24,8], index: 11, kind: input, shape index: {}]
  %s12 = inlined_call_operand.vmem [shape: f32[1,8], index: 12, kind: input, shape index: {}]
  %s13 = inlined_call_operand.vmem [shape: bf16[4,8], index: 13, kind: input, shape index: {}]
  %s14 = inlined_call_operand.vmem [shape: f32[1,8], index: 14, kind: input, shape index: {}]
  %s15 = inlined_call_operand.hbm [shape: f32[2,16,16,32], index: 15, kind: output, shape index: {}]
  %s16 = sld [smem:[#allocation0]]
  $region93: #{inception_forward.1} parent=0
    _
  %s18 = ssub.s32 1, %s16
  %s19 = scalar_select 0, %s18, %s16
  $region1: #{inception_forward.1} parent=0
    #allocation2 [shape = 'u8[262144]{0}', space=vmem, size = 0x40000, scoped, tag = 'output window, operand 0']
    #allocation3 [shape = 's32[2]{0}', space=sflag, size = 0x8, scoped, tag = 'scoped memory for inception_forward.1']
    %20 = vsyncpa [#allocation3], 0
    %s21 = scalar_lea.sflag [#allocation3], 1
    %22 = vsyncpa %s21, 0
    loop: start=0, step=1, limit=4
    $region2: #{inception_forward.1} parent=1 // loop_pre_header
      _
    $region3: #{inception_forward.1} parent=1 // loop_header
      %s24 = sphi 0, %s28
      %p25 = scmp.ge.s32.totalorder %s24, 4
      %s34 = sphi 0, %s36
      %s37 = sphi 0, %s34
      %s38 = sphi 0, %s37
      %s54 = sphi 0, %s38
      %s58 = sphi 0, %s58
      %s60 = sphi 0, %s58
      %s61 = sphi 0, %s60
      %s75 = sphi 0, %s61
      %s79 = sphi 0, %s79
      %s81 = sphi 0, %s79
      %s82 = sphi 0, %s81
      %s96 = sphi 0, %s82
      %s100 = sphi 0, %s100
      %s102 = sphi 0, %s100
      %s103 = sphi 0, %s102
      %s117 = sphi 0, %s103
      %s121 = sphi 0, %s121
      %s123 = sphi 0, %s121
      %s124 = sphi 0, %s123
      %s138 = sphi 0, %s124
      %s142 = sphi 0, %s142
      %s144 = sphi 0, %s142
      %s145 = sphi 0, %s144
      %s159 = sphi 0, %s145
      %s163 = sphi 0, %s163
      %s165 = sphi 0, %s163
      %s166 = sphi 0, %s165
      %s180 = sphi 0, %s166
      %s184 = sphi 0, %s184
      %s186 = sphi 0, %s184
      %s187 = sphi 0, %s186
      %s201 = sphi 0, %s187
      %s205 = sphi 0, %s205
      %s207 = sphi 0, %s205
      %s208 = sphi 0, %s207
      %s222 = sphi 0, %s208
      %s226 = sphi 0, %s226
      %s228 = sphi 0, %s226
      %s229 = sphi 0, %s228
      %s243 = sphi 0, %s229
      %s247 = sphi 0, %s247
      %s249 = sphi 0, %s247
      %s250 = sphi 0, %s249
      %s264 = sphi 0, %s250
      %s268 = sphi 0, %s268
      %s270 = sphi 0, %s268
      %s271 = sphi 0, %s270
      %s285 = sphi 0, %s271
      %s289 = sphi 0, %s289
      %s291 = sphi 0, %s289
      %s292 = sphi 0, %s291
      %s306 = sphi 0, %s292
      %s310 = sphi 0, %s310
      %s312 = sphi 0, %s310
      %s313 = sphi 0, %s312
      %s327 = sphi 0, %s313
      %s331 = sphi 0, %s331
      %s333 = sphi 0, %s331
      %s334 = sphi 0, %s333
      %s348 = sphi 0, %s334
      %s354 = sphi 0, %s356
      %s357 = sphi 0, %s354
      %s358 = sphi 0, %s357
      %s374 = sphi 0, %s358
    $region4: #{inception_forward.1} parent=1 // loop_header_branch
      %27 = sbr.rel (%p25) target = $region8
    $region5: #{inception_forward.1} parent=1 // loop_body
      %s29 = ssub.s32 %s24, 1
      %s30 = ssub.s32 %s24, 2
      %s31 = sadd.s32 %s24, 1
      %s32 = ssub.s32 %s24, %s31
      %p33 = scmp.eq.s32.totalorder %s32, 0
      %s35 = sadd.s32 %s34, 1
      %s36 = scalar_select %p33, %s34, %s35
      %p39 = pneg %p33
      %p40 = scmp.eq.s32.totalorder %s24, 1
      %p41 = por %p39, %p40
      %p42 = scmp.ne.s32.totalorder %s34, %s37
      %p43 = scmp.eq.s32.totalorder %s24, 0
      %p44 = por %p42, %p43
      %p45 = scmp.ne.s32.totalorder %s34, %s37
      %p46 = scmp.eq.s32.totalorder %s29, 1
      %p47 = por %p45, %p46
      %p48 = scmp.ne.s32.totalorder %s37, %s38
      %p49 = scmp.eq.s32.totalorder %s29, 0
      %p50 = por %p48, %p49
      %p51 = scmp.ne.s32.totalorder %s37, %s38
      %p52 = scmp.eq.s32.totalorder %s30, 1
      %p53 = por %p51, %p52
      %p55 = scmp.ne.s32.totalorder %s38, %s54
      %p56 = scmp.eq.s32.totalorder %s30, 0
      %p57 = por %p55, %p56
      %s59 = sadd.s32 %s58, 1
      %p62 = scmp.eq.s32.totalorder %s24, 1
      %p63 = scmp.ne.s32.totalorder %s58, %s60
      %p64 = scmp.eq.s32.totalorder %s24, 0
      %p65 = por %p63, %p64
      %p66 = scmp.ne.s32.totalorder %s58, %s60
      %p67 = scmp.eq.s32.totalorder %s29, 1
      %p68 = por %p66, %p67
      %p69 = scmp.ne.s32.totalorder %s60, %s61
      %p70 = scmp.eq.s32.totalorder %s29, 0
      %p71 = por %p69, %p70
      %p72 = scmp.ne.s32.totalorder %s60, %s61
      %p73 = scmp.eq.s32.totalorder %s30, 1
      %p74 = por %p72, %p73
      %p76 = scmp.ne.s32.totalorder %s61, %s75
      %p77 = scmp.eq.s32.totalorder %s30, 0
      %p78 = por %p76, %p77
      %s80 = sadd.s32 %s79, 1
      %p83 = scmp.eq.s32.totalorder %s24, 1
      %p84 = scmp.ne.s32.totalorder %s79, %s81
      %p85 = scmp.eq.s32.totalorder %s24, 0
      %p86 = por %p84, %p85
      %p87 = scmp.ne.s32.totalorder %s79, %s81
      %p88 = scmp.eq.s32.totalorder %s29, 1
      %p89 = por %p87, %p88
      %p90 = scmp.ne.s32.totalorder %s81, %s82
      %p91 = scmp.eq.s32.totalorder %s29, 0
      %p92 = por %p90, %p91
      %p93 = scmp.ne.s32.totalorder %s81, %s82
      %p94 = scmp.eq.s32.totalorder %s30, 1
      %p95 = por %p93, %p94
      %p97 = scmp.ne.s32.totalorder %s82, %s96
      %p98 = scmp.eq.s32.totalorder %s30, 0
      %p99 = por %p97, %p98
      %s101 = sadd.s32 %s100, 1
      %p104 = scmp.eq.s32.totalorder %s24, 1
      %p105 = scmp.ne.s32.totalorder %s100, %s102
      %p106 = scmp.eq.s32.totalorder %s24, 0
      %p107 = por %p105, %p106
      %p108 = scmp.ne.s32.totalorder %s100, %s102
      %p109 = scmp.eq.s32.totalorder %s29, 1
      %p110 = por %p108, %p109
      %p111 = scmp.ne.s32.totalorder %s102, %s103
      %p112 = scmp.eq.s32.totalorder %s29, 0
      %p113 = por %p111, %p112
      %p114 = scmp.ne.s32.totalorder %s102, %s103
      %p115 = scmp.eq.s32.totalorder %s30, 1
      %p116 = por %p114, %p115
      %p118 = scmp.ne.s32.totalorder %s103, %s117
      %p119 = scmp.eq.s32.totalorder %s30, 0
      %p120 = por %p118, %p119
      %s122 = sadd.s32 %s121, 1
      %p125 = scmp.eq.s32.totalorder %s24, 1
      %p126 = scmp.ne.s32.totalorder %s121, %s123
      %p127 = scmp.eq.s32.totalorder %s24, 0
      %p128 = por %p126, %p127
      %p129 = scmp.ne.s32.totalorder %s121, %s123
      %p130 = scmp.eq.s32.totalorder %s29, 1
      %p131 = por %p129, %p130
      %p132 = scmp.ne.s32.totalorder %s123, %s124
      %p133 = scmp.eq.s32.totalorder %s29, 0
      %p134 = por %p132, %p133
      %p135 = scmp.ne.s32.totalorder %s123, %s124
      %p136 = scmp.eq.s32.totalorder %s30, 1
      %p137 = por %p135, %p136
      %p139 = scmp.ne.s32.totalorder %s124, %s138
      %p140 = scmp.eq.s32.totalorder %s30, 0
      %p141 = por %p139, %p140
      %s143 = sadd.s32 %s142, 1
      %p146 = scmp.eq.s32.totalorder %s24, 1
      %p147 = scmp.ne.s32.totalorder %s142, %s144
      %p148 = scmp.eq.s32.totalorder %s24, 0
      %p149 = por %p147, %p148
      %p150 = scmp.ne.s32.totalorder %s142, %s144
      %p151 = scmp.eq.s32.totalorder %s29, 1
      %p152 = por %p150, %p151
      %p153 = scmp.ne.s32.totalorder %s144, %s145
      %p154 = scmp.eq.s32.totalorder %s29, 0
      %p155 = por %p153, %p154
      %p156 = scmp.ne.s32.totalorder %s144, %s145
      %p157 = scmp.eq.s32.totalorder %s30, 1
      %p158 = por %p156, %p157
      %p160 = scmp.ne.s32.totalorder %s145, %s159
      %p161 = scmp.eq.s32.totalorder %s30, 0
      %p162 = por %p160, %p161
      %s164 = sadd.s32 %s163, 1
      %p167 = scmp.eq.s32.totalorder %s24, 1
      %p168 = scmp.ne.s32.totalorder %s163, %s165
      %p169 = scmp.eq.s32.totalorder %s24, 0
      %p170 = por %p168, %p169
      %p171 = scmp.ne.s32.totalorder %s163, %s165
      %p172 = scmp.eq.s32.totalorder %s29, 1
      %p173 = por %p171, %p172
      %p174 = scmp.ne.s32.totalorder %s165, %s166
      %p175 = scmp.eq.s32.totalorder %s29, 0
      %p176 = por %p174, %p175
      %p177 = scmp.ne.s32.totalorder %s165, %s166
      %p178 = scmp.eq.s32.totalorder %s30, 1
      %p179 = por %p177, %p178
      %p181 = scmp.ne.s32.totalorder %s166, %s180
      %p182 = scmp.eq.s32.totalorder %s30, 0
      %p183 = por %p181, %p182
      %s185 = sadd.s32 %s184, 1
      %p188 = scmp.eq.s32.totalorder %s24, 1
      %p189 = scmp.ne.s32.totalorder %s184, %s186
      %p190 = scmp.eq.s32.totalorder %s24, 0
      %p191 = por %p189, %p190
      %p192 = scmp.ne.s32.totalorder %s184, %s186
      %p193 = scmp.eq.s32.totalorder %s29, 1
      %p194 = por %p192, %p193
      %p195 = scmp.ne.s32.totalorder %s186, %s187
      %p196 = scmp.eq.s32.totalorder %s29, 0
      %p197 = por %p195, %p196
      %p198 = scmp.ne.s32.totalorder %s186, %s187
      %p199 = scmp.eq.s32.totalorder %s30, 1
      %p200 = por %p198, %p199
      %p202 = scmp.ne.s32.totalorder %s187, %s201
      %p203 = scmp.eq.s32.totalorder %s30, 0
      %p204 = por %p202, %p203
      %s206 = sadd.s32 %s205, 1
      %p209 = scmp.eq.s32.totalorder %s24, 1
      %p210 = scmp.ne.s32.totalorder %s205, %s207
      %p211 = scmp.eq.s32.totalorder %s24, 0
      %p212 = por %p210, %p211
      %p213 = scmp.ne.s32.totalorder %s205, %s207
      %p214 = scmp.eq.s32.totalorder %s29, 1
      %p215 = por %p213, %p214
      %p216 = scmp.ne.s32.totalorder %s207, %s208
      %p217 = scmp.eq.s32.totalorder %s29, 0
      %p218 = por %p216, %p217
      %p219 = scmp.ne.s32.totalorder %s207, %s208
      %p220 = scmp.eq.s32.totalorder %s30, 1
      %p221 = por %p219, %p220
      %p223 = scmp.ne.s32.totalorder %s208, %s222
      %p224 = scmp.eq.s32.totalorder %s30, 0
      %p225 = por %p223, %p224
      %s227 = sadd.s32 %s226, 1
      %p230 = scmp.eq.s32.totalorder %s24, 1
      %p231 = scmp.ne.s32.totalorder %s226, %s228
      %p232 = scmp.eq.s32.totalorder %s24, 0
      %p233 = por %p231, %p232
      %p234 = scmp.ne.s32.totalorder %s226, %s228
      %p235 = scmp.eq.s32.totalorder %s29, 1
      %p236 = por %p234, %p235
      %p237 = scmp.ne.s32.totalorder %s228, %s229
      %p238 = scmp.eq.s32.totalorder %s29, 0
      %p239 = por %p237, %p238
      %p240 = scmp.ne.s32.totalorder %s228, %s229
      %p241 = scmp.eq.s32.totalorder %s30, 1
      %p242 = por %p240, %p241
      %p244 = scmp.ne.s32.totalorder %s229, %s243
      %p245 = scmp.eq.s32.totalorder %s30, 0
      %p246 = por %p244, %p245
      %s248 = sadd.s32 %s247, 1
      %p251 = scmp.eq.s32.totalorder %s24, 1
      %p252 = scmp.ne.s32.totalorder %s247, %s249
      %p253 = scmp.eq.s32.totalorder %s24, 0
      %p254 = por %p252, %p253
      %p255 = scmp.ne.s32.totalorder %s247, %s249
      %p256 = scmp.eq.s32.totalorder %s29, 1
      %p257 = por %p255, %p256
      %p258 = scmp.ne.s32.totalorder %s249, %s250
      %p259 = scmp.eq.s32.totalorder %s29, 0
      %p260 = por %p258, %p259
      %p261 = scmp.ne.s32.totalorder %s249, %s250
      %p262 = scmp.eq.s32.totalorder %s30, 1
      %p263 = por %p261, %p262
      %p265 = scmp.ne.s32.totalorder %s250, %s264
      %p266 = scmp.eq.s32.totalorder %s30, 0
      %p267 = por %p265, %p266
      %s269 = sadd.s32 %s268, 1
      %p272 = scmp.eq.s32.totalorder %s24, 1
      %p273 = scmp.ne.s32.totalorder %s268, %s270
      %p274 = scmp.eq.s32.totalorder %s24, 0
      %p275 = por %p273, %p274
      %p276 = scmp.ne.s32.totalorder %s268, %s270
      %p277 = scmp.eq.s32.totalorder %s29, 1
      %p278 = por %p276, %p277
      %p279 = scmp.ne.s32.totalorder %s270, %s271
      %p280 = scmp.eq.s32.totalorder %s29, 0
      %p281 = por %p279, %p280
      %p282 = scmp.ne.s32.totalorder %s270, %s271
      %p283 = scmp.eq.s32.totalorder %s30, 1
      %p284 = por %p282, %p283
      %p286 = scmp.ne.s32.totalorder %s271, %s285
      %p287 = scmp.eq.s32.totalorder %s30, 0
      %p288 = por %p286, %p287
      %s290 = sadd.s32 %s289, 1
      %p293 = scmp.eq.s32.totalorder %s24, 1
      %p294 = scmp.ne.s32.totalorder %s289, %s291
      %p295 = scmp.eq.s32.totalorder %s24, 0
      %p296 = por %p294, %p295
      %p297 = scmp.ne.s32.totalorder %s289, %s291
      %p298 = scmp.eq.s32.totalorder %s29, 1
      %p299 = por %p297, %p298
      %p300 = scmp.ne.s32.totalorder %s291, %s292
      %p301 = scmp.eq.s32.totalorder %s29, 0
      %p302 = por %p300, %p301
      %p303 = scmp.ne.s32.totalorder %s291, %s292
      %p304 = scmp.eq.s32.totalorder %s30, 1
      %p305 = por %p303, %p304
      %p307 = scmp.ne.s32.totalorder %s292, %s306
      %p308 = scmp.eq.s32.totalorder %s30, 0
      %p309 = por %p307, %p308
      %s311 = sadd.s32 %s310, 1
      %p314 = scmp.eq.s32.totalorder %s24, 1
      %p315 = scmp.ne.s32.totalorder %s310, %s312
      %p316 = scmp.eq.s32.totalorder %s24, 0
      %p317 = por %p315, %p316
      %p318 = scmp.ne.s32.totalorder %s310, %s312
      %p319 = scmp.eq.s32.totalorder %s29, 1
      %p320 = por %p318, %p319
      %p321 = scmp.ne.s32.totalorder %s312, %s313
      %p322 = scmp.eq.s32.totalorder %s29, 0
      %p323 = por %p321, %p322
      %p324 = scmp.ne.s32.totalorder %s312, %s313
      %p325 = scmp.eq.s32.totalorder %s30, 1
      %p326 = por %p324, %p325
      %p328 = scmp.ne.s32.totalorder %s313, %s327
      %p329 = scmp.eq.s32.totalorder %s30, 0
      %p330 = por %p328, %p329
      %s332 = sadd.s32 %s331, 1
      %p335 = scmp.eq.s32.totalorder %s24, 1
      %p336 = scmp.ne.s32.totalorder %s331, %s333
      %p337 = scmp.eq.s32.totalorder %s24, 0
      %p338 = por %p336, %p337
      %p339 = scmp.ne.s32.totalorder %s331, %s333
      %p340 = scmp.eq.s32.totalorder %s29, 1
      %p341 = por %p339, %p340
      %p342 = scmp.ne.s32.totalorder %s333, %s334
      %p343 = scmp.eq.s32.totalorder %s29, 0
      %p344 = por %p342, %p343
      %p345 = scmp.ne.s32.totalorder %s333, %s334
      %p346 = scmp.eq.s32.totalorder %s30, 1
      %p347 = por %p345, %p346
      %p349 = scmp.ne.s32.totalorder %s334, %s348
      %p350 = scmp.eq.s32.totalorder %s30, 0
      %p351 = por %p349, %p350
      %s352 = ssub.s32 %s24, %s31
      %p353 = scmp.eq.s32.totalorder %s352, 0
      %s355 = sadd.s32 %s354, 1
      %s356 = scalar_select %p353, %s354, %s355
      %p359 = pneg %p353
      %p360 = scmp.eq.s32.totalorder %s24, 1
      %p361 = por %p359, %p360
      %p362 = scmp.ne.s32.totalorder %s354, %s357
      %p363 = scmp.eq.s32.totalorder %s24, 0
      %p364 = por %p362, %p363
      %p365 = scmp.ne.s32.totalorder %s354, %s357
      %p366 = scmp.eq.s32.totalorder %s29, 1
      %p367 = por %p365, %p366
      %p368 = scmp.ne.s32.totalorder %s357, %s358
      %p369 = scmp.eq.s32.totalorder %s29, 0
      %p370 = por %p368, %p369
      %p371 = scmp.ne.s32.totalorder %s357, %s358
      %p372 = scmp.eq.s32.totalorder %s30, 1
      %p373 = por %p371, %p372
      %p375 = scmp.ne.s32.totalorder %s358, %s374
      %p376 = scmp.eq.s32.totalorder %s30, 0
      %p377 = por %p375, %p376
      %p378 = scmp.le.s32.totalorder 1, %s24
      %p379 = scmp.lt.s32.totalorder %s24, 3
      %p380 = pnand %p378, %p379
      %p381 = pneg %p380
      // Predicated region
      $region9: #{inception_forward.1} parent=5 // pred_check
        _
      $region10: #{inception_forward.1} parent=5 // pred_check_branch
        %383 = sbr.rel (%p380) target = $region12
      $region11: #{inception_forward.1} parent=5 // pred_region
        %s384 = ssub.s32 %s24, 1
        // Predicated region
        $region13: #{inception_forward.1} parent=11 // pred_check
          %p385 = pneg %p71
        $region14: #{inception_forward.1} parent=11 // pred_check_branch
          %387 = sbr.rel (%p385) target = $region16
        $region15: #{inception_forward.1} parent=11 // pred_region
          _
        $region16: #{inception_forward.1} parent=11 // pred_fallthru
          _
        // Predicated region
        $region17: #{inception_forward.1} parent=11 // pred_check
          %p388 = pneg %p92
        $region18: #{inception_forward.1} parent=11 // pred_check_branch
          %390 = sbr.rel (%p388) target = $region20
        $region19: #{inception_forward.1} parent=11 // pred_region
          _
        $region20: #{inception_forward.1} parent=11 // pred_fallthru
          _
        // Predicated region
        $region21: #{inception_forward.1} parent=11 // pred_check
          %p391 = pneg %p113
        $region22: #{inception_forward.1} parent=11 // pred_check_branch
          %393 = sbr.rel (%p391) target = $region24
        $region23: #{inception_forward.1} parent=11 // pred_region
          _
        $region24: #{inception_forward.1} parent=11 // pred_fallthru
          _
        // Predicated region
        $region25: #{inception_forward.1} parent=11 // pred_check
          %p394 = pneg %p134
        $region26: #{inception_forward.1} parent=11 // pred_check_branch
          %396 = sbr.rel (%p394) target = $region28
        $region27: #{inception_forward.1} parent=11 // pred_region
          _
        $region28: #{inception_forward.1} parent=11 // pred_fallthru
          _
        // Predicated region
        $region29: #{inception_forward.1} parent=11 // pred_check
          %p397 = pneg %p155
        $region30: #{inception_forward.1} parent=11 // pred_check_branch
          %399 = sbr.rel (%p397) target = $region32
        $region31: #{inception_forward.1} parent=11 // pred_region
          _
        $region32: #{inception_forward.1} parent=11 // pred_fallthru
          _
        // Predicated region
        $region33: #{inception_forward.1} parent=11 // pred_check
          %p400 = pneg %p176
        $region34: #{inception_forward.1} parent=11 // pred_check_branch
          %402 = sbr.rel (%p400) target = $region36
        $region35: #{inception_forward.1} parent=11 // pred_region
          _
        $region36: #{inception_forward.1} parent=11 // pred_fallthru
          _
        // Predicated region
        $region37: #{inception_forward.1} parent=11 // pred_check
          %p403 = pneg %p197
        $region38: #{inception_forward.1} parent=11 // pred_check_branch
          %405 = sbr.rel (%p403) target = $region40
        $region39: #{inception_forward.1} parent=11 // pred_region
          _
        $region40: #{inception_forward.1} parent=11 // pred_fallthru
          _
        // Predicated region
        $region41: #{inception_forward.1} parent=11 // pred_check
          %p406 = pneg %p218
        $region42: #{inception_forward.1} parent=11 // pred_check_branch
          %408 = sbr.rel (%p406) target = $region44
        $region43: #{inception_forward.1} parent=11 // pred_region
          _
        $region44: #{inception_forward.1} parent=11 // pred_fallthru
          _
        // Predicated region
        $region45: #{inception_forward.1} parent=11 // pred_check
          %p409 = pneg %p239
        $region46: #{inception_forward.1} parent=11 // pred_check_branch
          %411 = sbr.rel (%p409) target = $region48
        $region47: #{inception_forward.1} parent=11 // pred_region
          _
        $region48: #{inception_forward.1} parent=11 // pred_fallthru
          _
        // Predicated region
        $region49: #{inception_forward.1} parent=11 // pred_check
          %p412 = pneg %p260
        $region50: #{inception_forward.1} parent=11 // pred_check_branch
          %414 = sbr.rel (%p412) target = $region52
        $region51: #{inception_forward.1} parent=11 // pred_region
          _
        $region52: #{inception_forward.1} parent=11 // pred_fallthru
          _
        // Predicated region
        $region53: #{inception_forward.1} parent=11 // pred_check
          %p415 = pneg %p281
        $region54: #{inception_forward.1} parent=11 // pred_check_branch
          %417 = sbr.rel (%p415) target = $region56
        $region55: #{inception_forward.1} parent=11 // pred_region
          _
        $region56: #{inception_forward.1} parent=11 // pred_fallthru
          _
        // Predicated region
        $region57: #{inception_forward.1} parent=11 // pred_check
          %p418 = pneg %p302
        $region58: #{inception_forward.1} parent=11 // pred_check_branch
          %420 = sbr.rel (%p418) target = $region60
        $region59: #{inception_forward.1} parent=11 // pred_region
          _
        $region60: #{inception_forward.1} parent=11 // pred_fallthru
          _
        // Predicated region
        $region61: #{inception_forward.1} parent=11 // pred_check
          %p421 = pneg %p323
        $region62: #{inception_forward.1} parent=11 // pred_check_branch
          %423 = sbr.rel (%p421) target = $region64
        $region63: #{inception_forward.1} parent=11 // pred_region
          _
        $region64: #{inception_forward.1} parent=11 // pred_fallthru
          _
        // Predicated region
        $region65: #{inception_forward.1} parent=11 // pred_check
          %p424 = pneg %p344
        $region66: #{inception_forward.1} parent=11 // pred_check_branch
          %426 = sbr.rel (%p424) target = $region68
        $region67: #{inception_forward.1} parent=11 // pred_region
          _
        $region68: #{inception_forward.1} parent=11 // pred_fallthru
          _
      $region12: #{inception_forward.1} parent=5 // pred_fallthru
        _
      %p427 = scmp.lt.s32.totalorder %s24, 2
      // Predicated region
      $region69: #{inception_forward.1} parent=5 // pred_check
        %p428 = pneg %p427
      $region70: #{inception_forward.1} parent=5 // pred_check_branch
        %430 = sbr.rel (%p428) target = $region72
      $region71: #{inception_forward.1} parent=5 // pred_region
        // Predicated region
        $region73: #{inception_forward.1} parent=71 // pred_check
          %p431 = pneg %p44
        $region74: #{inception_forward.1} parent=71 // pred_check_branch
          %433 = sbr.rel (%p431) target = $region76
        $region75: #{inception_forward.1} parent=71 // pred_region
          %p434 = scmp.lt.s32.totalorder %s24, 1
          %s435 = scalar_select %p434, %s24, 1
          %s436 = smul.addr %s435, 32
          %s437 = smul.addr %s436, 4
          %s438 = scalar_lea.vmem %s0, %s437
        $region76: #{inception_forward.1} parent=71 // pred_fallthru
          _
      $region72: #{inception_forward.1} parent=5 // pred_fallthru
        _
      %p439 = scmp.le.s32.totalorder 1, %s24
      %p440 = scmp.lt.s32.totalorder %s24, 3
      %p441 = pnand %p439, %p440
      %p442 = pneg %p441
      // Predicated region
      $region77: #{inception_forward.1} parent=5 // pred_check
        _
      $region78: #{inception_forward.1} parent=5 // pred_check_branch
        %444 = sbr.rel (%p441) target = $region80
      $region79: #{inception_forward.1} parent=5 // pred_region
        %s445 = ssub.s32 %s24, 1
        %p446 = scmp.lt.s32.totalorder %s29, 1
        %s447 = scalar_select %p446, %s29, 1
        %s448 = smul.addr %s447, 32
        %s449 = smul.addr %s448, 4
        %s450 = scalar_lea.vmem %s0, %s449
        %p451 = pneg %p50
        %p452 = pneg %p47
        %p453 = pneg %p71
        %p454 = pneg %p68
        %p455 = pneg %p92
        %p456 = pneg %p89
        %p457 = pneg %p113
        %p458 = pneg %p110
        %p459 = pneg %p134
        %p460 = pneg %p131
        %p461 = pneg %p155
        %p462 = pneg %p152
        %p463 = pneg %p176
        %p464 = pneg %p173
        %p465 = pneg %p197
        %p466 = pneg %p194
        %p467 = pneg %p218
        %p468 = pneg %p215
        %p469 = pneg %p239
        %p470 = pneg %p236
        %p471 = pneg %p260
        %p472 = pneg %p257
        %p473 = pneg %p281
        %p474 = pneg %p278
        %p475 = pneg %p302
        %p476 = pneg %p299
        %p477 = pneg %p323
        %p478 = pneg %p320
        %p479 = pneg %p344
        %p480 = pneg %p341
        %p481 = pneg %p370
        %p482 = pneg %p367
        %s483 = sand.u32 %s357, 1
        %s484 = scalar_lea.sflag [#allocation3], %s483
        %s485 = sand.u32 %s357, 1
        %s486 = smul.addr %s485, 256
        %s487 = scalar_lea.vmem [#allocation2], %s486
        %p488 = scmp.lt.s32.totalorder %s29, 1
        %s489 = scalar_select %p488, %s29, 1
        %s490 = smul.addr %s489, 32
        %s491 = smul.addr %s490, 4
        %s492 = scalar_lea.vmem %s0, %s491
        %v495 = vld [vmem:[%s492] sm:$0xf]
        %v496 = vld [vmem:[%s492 + $0x4] sm:$0xf]
        %v497 = vld [vmem:[%s492 + $0x8] sm:$0xf]
        %v498 = vld [vmem:[%s492 + $0xc] sm:$0xf]
        %v499 = vld [vmem:[%s492 + $0x10] sm:$0xf]
        %v500 = vld [vmem:[%s492 + $0x14] sm:$0xf]
        %v501 = vld [vmem:[%s492 + $0x18] sm:$0xf]
        %v502 = vld [vmem:[%s492 + $0x1c] sm:$0xf]
        %v503 = vld [vmem:[%s492 + $0x20] sm:$0xf]
        %v504 = vld [vmem:[%s492 + $0x24] sm:$0xf]
        %v505 = vld [vmem:[%s492 + $0x28] sm:$0xf]
        %v506 = vld [vmem:[%s492 + $0x2c] sm:$0xf]
        %v507 = vld [vmem:[%s492 + $0x30] sm:$0xf]
        %v508 = vld [vmem:[%s492 + $0x34] sm:$0xf]
        %v509 = vld [vmem:[%s492 + $0x38] sm:$0xf]
        %v510 = vld [vmem:[%s492 + $0x3c] sm:$0xf]
        %v511 = vld [vmem:[%s492 + $0x40] sm:$0xf]
        %v512 = vld [vmem:[%s492 + $0x44] sm:$0xf]
        %v513 = vld [vmem:[%s492 + $0x48] sm:$0xf]
        %v514 = vld [vmem:[%s492 + $0x4c] sm:$0xf]
        %v515 = vld [vmem:[%s492 + $0x50] sm:$0xf]
        %v516 = vld [vmem:[%s492 + $0x54] sm:$0xf]
        %v517 = vld [vmem:[%s492 + $0x58] sm:$0xf]
        %v518 = vld [vmem:[%s492 + $0x5c] sm:$0xf]
        %v519 = vld [vmem:[%s492 + $0x60] sm:$0xf]
        %v520 = vld [vmem:[%s492 + $0x64] sm:$0xf]
        %v521 = vld [vmem:[%s492 + $0x68] sm:$0xf]
        %v522 = vld [vmem:[%s492 + $0x6c] sm:$0xf]
        %v523 = vld [vmem:[%s492 + $0x70] sm:$0xf]
        %v524 = vld [vmem:[%s492 + $0x74] sm:$0xf]
        %v525 = vld [vmem:[%s492 + $0x78] sm:$0xf]
        %v526 = vld [vmem:[%s492 + $0x7c] sm:$0xf]
        %v527 = vld [vmem:[%s1] sm:$0x3]
        %v528 = vld [vmem:[%s2] sm:$0x1]
        %v530 = vlaneseq
        %v531 = vshrl.u32 %v530, 7
        %v532 = vsub.s32 0, %v531
        %v533 = vrot.slane %v528, %v532
        %v567 = vunpack.c.l.b16 %v495
        %v568 = vunpack.c.l.b16 %v496
        %v569 = vunpack.c.l.b16 %v497
        %v570 = vunpack.c.l.b16 %v498
        %v571 = vunpack.c.l.b16 %v499
        %v572 = vunpack.c.l.b16 %v500
        %v573 = vunpack.c.l.b16 %v501
        %v574 = vunpack.c.l.b16 %v502
        %v575 = vunpack.c.l.b16 %v503
        %v576 = vunpack.c.l.b16 %v504
        %v577 = vunpack.c.l.b16 %v505
        %v578 = vunpack.c.l.b16 %v506
        %v579 = vunpack.c.l.b16 %v507
        %v580 = vunpack.c.l.b16 %v508
        %v581 = vunpack.c.l.b16 %v509
        %v582 = vunpack.c.l.b16 %v510
        %v583 = vunpack.c.l.b16 %v511
        %v584 = vunpack.c.l.b16 %v512
        %v585 = vunpack.c.l.b16 %v513
        %v586 = vunpack.c.l.b16 %v514
        %v587 = vunpack.c.l.b16 %v515
        %v588 = vunpack.c.l.b16 %v516
        %v589 = vunpack.c.l.b16 %v517
        %v590 = vunpack.c.l.b16 %v518
        %v591 = vunpack.c.l.b16 %v519
        %v592 = vunpack.c.l.b16 %v520
        %v593 = vunpack.c.l.b16 %v521
        %v594 = vunpack.c.l.b16 %v522
        %v595 = vunpack.c.l.b16 %v523
        %v596 = vunpack.c.l.b16 %v524
        %v597 = vunpack.c.l.b16 %v525
        %v598 = vunpack.c.l.b16 %v526
        %v599 = vpack.c.b16 %v568, %v567
        %v600 = vpack.c.b16 %v570, %v569
        %v601 = vpack.c.b16 %v572, %v571
        %v602 = vpack.c.b16 %v574, %v573
        %v603 = vpack.c.b16 %v576, %v575
        %v604 = vpack.c.b16 %v578, %v577
        %v605 = vpack.c.b16 %v580, %v579
        %v606 = vpack.c.b16 %v582, %v581
        %v607 = vpack.c.b16 %v584, %v583
        %v608 = vpack.c.b16 %v586, %v585
        %v609 = vpack.c.b16 %v588, %v587
        %v610 = vpack.c.b16 %v590, %v589
        %v611 = vpack.c.b16 %v592, %v591
        %v612 = vpack.c.b16 %v594, %v593
        %v613 = vpack.c.b16 %v596, %v595
        %v614 = vpack.c.b16 %v598, %v597
        %vm615 = vcmask 31744
        %v617 = vsel %vm615, %v599, 0
        %v620 = vsel %vm615, %v600, 0
        %v623 = vsel %vm615, %v601, 0
        %v626 = vsel %vm615, %v602, 0
        %v629 = vsel %vm615, %v603, 0
        %v632 = vsel %vm615, %v604, 0
        %v635 = vsel %vm615, %v605, 0
        %v638 = vsel %vm615, %v606, 0
        %v641 = vsel %vm615, %v607, 0
        %v644 = vsel %vm615, %v608, 0
        %v647 = vsel %vm615, %v609, 0
        %v650 = vsel %vm615, %v610, 0
        %v653 = vsel %vm615, %v611, 0
        %v656 = vsel %vm615, %v612, 0
        %v659 = vsel %vm615, %v613, 0
        %v662 = vsel %vm615, %v614, 0
        %vm664 = vcmask 1041408
        %v666 = vsel %vm664, %v527, 0
        %668 = vmatprep.subr.bf16.mxu0 0
        %669 = vmatpush1.bf16.msra.mxu0 0
        %670 = vmatprep.subr.bf16.mxu0 0
        %671 = vmatpush1.bf16.msra.mxu0 0
        %672 = vmatprep.subr.bf16.mxu0 0
        %673 = vmatpush1.bf16.msra.mxu0 0
        %674 = vmatprep.subr.bf16.mxu0 0
        %675 = vmatpush1.bf16.msra.mxu0 0
        %676 = vmatprep.subr.bf16.mxu0 0
        %677 = vmatpush1.bf16.msra.mxu0 0
        %678 = vmatprep.subr.bf16.mxu0 0
        %679 = vmatpush1.bf16.msra.mxu0 0
        %680 = vmatprep.subr.bf16.mxu0 0
        %681 = vmatpush1.bf16.msra.mxu0 0
        %682 = vmatprep.subr.bf16.mxu0 0
        %683 = vmatpush1.bf16.msra.mxu0 %v666
        %684 = vmatprep.subr.bf16.mxu0 0
        %685 = vmatpush2.bf16.msra.mxu0 0
        %686 = vmatprep.subr.bf16.mxu0 0
        %687 = vmatpush2.bf16.msra.mxu0 0
        %688 = vmatprep.subr.bf16.mxu0 0
        %689 = vmatpush2.bf16.msra.mxu0 0
        %690 = vmatprep.subr.bf16.mxu0 0
        %691 = vmatpush2.bf16.msra.mxu0 0
        %692 = vmatprep.subr.bf16.mxu0 0
        %693 = vmatpush2.bf16.msra.mxu0 0
        %694 = vmatprep.subr.bf16.mxu0 0
        %695 = vmatpush2.bf16.msra.mxu0 0
        %696 = vmatprep.subr.bf16.mxu0 0
        %697 = vmatpush2.bf16.msra.mxu0 0
        %698 = vmatprep.subr.bf16.mxu0 0
        %699 = vmatpush2.bf16.msra.mxu0 0
        %700 = vmatprep.mubr.bf16.mxu0 0
        %701 = vmatmul.mubr.bf16.gmra.mxu0 %v617
        %v702 = vpop.f32.mrf.mxu0
        %v703 = vadd.f32 %v533, %v702
        %v704 = vpop.f32.mrf.mxu0
        %v705 = vpop.f32.mrf.mxu0
        %v706 = vadd.f32 %v533, %v705
        %v707 = vpop.f32.mrf.mxu0
        %708 = vmatprep.mubr.bf16.mxu0 0
        %709 = vmatmul.mubr.bf16.gmra.mxu0 %v620
        %v710 = vpop.f32.mrf.mxu0
        %v711 = vadd.f32 %v533, %v710
        %v712 = vpop.f32.mrf.mxu0
        %v713 = vpop.f32.mrf.mxu0
        %v714 = vadd.f32 %v533, %v713
        %v715 = vpop.f32.mrf.mxu0
        %716 = vmatprep.mubr.bf16.mxu0 0
        %717 = vmatmul.mubr.bf16.gmra.mxu0 %v623
        %v718 = vpop.f32.mrf.mxu0
        %v719 = vadd.f32 %v533, %v718
        %v720 = vpop.f32.mrf.mxu0
        %v721 = vpop.f32.mrf.mxu0
        %v722 = vadd.f32 %v533, %v721
        %v723 = vpop.f32.mrf.mxu0
        %724 = vmatprep.mubr.bf16.mxu0 0
        %725 = vmatmul.mubr.bf16.gmra.mxu0 %v626
        %v726 = vpop.f32.mrf.mxu0
        %v727 = vadd.f32 %v533, %v726
        %v728 = vpop.f32.mrf.mxu0
        %v729 = vpop.f32.mrf.mxu0
        %v730 = vadd.f32 %v533, %v729
        %v731 = vpop.f32.mrf.mxu0
        %732 = vmatprep.mubr.bf16.mxu0 0
        %733 = vmatmul.mubr.bf16.gmra.mxu0 %v629
        %v734 = vpop.f32.mrf.mxu0
        %v735 = vadd.f32 %v533, %v734
        %v736 = vpop.f32.mrf.mxu0
        %v737 = vpop.f32.mrf.mxu0
        %v738 = vadd.f32 %v533, %v737
        %v739 = vpop.f32.mrf.mxu0
        %740 = vmatprep.mubr.bf16.mxu0 0
        %741 = vmatmul.mubr.bf16.gmra.mxu0 %v632
        %v742 = vpop.f32.mrf.mxu0
        %v743 = vadd.f32 %v533, %v742
        %v744 = vpop.f32.mrf.mxu0
        %v745 = vpop.f32.mrf.mxu0
        %v746 = vadd.f32 %v533, %v745
        %v747 = vpop.f32.mrf.mxu0
        %748 = vmatprep.mubr.bf16.mxu0 0
        %749 = vmatmul.mubr.bf16.gmra.mxu0 %v635
        %v750 = vpop.f32.mrf.mxu0
        %v751 = vadd.f32 %v533, %v750
        %v752 = vpop.f32.mrf.mxu0
        %v753 = vpop.f32.mrf.mxu0
        %v754 = vadd.f32 %v533, %v753
        %v755 = vpop.f32.mrf.mxu0
        %756 = vmatprep.mubr.bf16.mxu0 0
        %757 = vmatmul.mubr.bf16.gmra.mxu0 %v638
        %v758 = vpop.f32.mrf.mxu0
        %v759 = vadd.f32 %v533, %v758
        %v760 = vpop.f32.mrf.mxu0
        %v761 = vpop.f32.mrf.mxu0
        %v762 = vadd.f32 %v533, %v761
        %v763 = vpop.f32.mrf.mxu0
        %764 = vmatprep.mubr.bf16.mxu0 0
        %765 = vmatmul.mubr.bf16.gmra.mxu0 %v641
        %v766 = vpop.f32.mrf.mxu0
        %v767 = vadd.f32 %v533, %v766
        %v768 = vpop.f32.mrf.mxu0
        %v769 = vpop.f32.mrf.mxu0
        %v770 = vadd.f32 %v533, %v769
        %v771 = vpop.f32.mrf.mxu0
        %772 = vmatprep.mubr.bf16.mxu0 0
        %773 = vmatmul.mubr.bf16.gmra.mxu0 %v644
        %v774 = vpop.f32.mrf.mxu0
        %v775 = vadd.f32 %v533, %v774
        %v776 = vpop.f32.mrf.mxu0
        %v777 = vpop.f32.mrf.mxu0
        %v778 = vadd.f32 %v533, %v777
        %v779 = vpop.f32.mrf.mxu0
        %780 = vmatprep.mubr.bf16.mxu0 0
        %781 = vmatmul.mubr.bf16.gmra.mxu0 %v647
        %v782 = vpop.f32.mrf.mxu0
        %v783 = vadd.f32 %v533, %v782
        %v784 = vpop.f32.mrf.mxu0
        %v785 = vpop.f32.mrf.mxu0
        %v786 = vadd.f32 %v533, %v785
        %v787 = vpop.f32.mrf.mxu0
        %788 = vmatprep.mubr.bf16.mxu0 0
        %789 = vmatmul.mubr.bf16.gmra.mxu0 %v650
        %v790 = vpop.f32.mrf.mxu0
        %v791 = vadd.f32 %v533, %v790
        %v792 = vpop.f32.mrf.mxu0
        %v793 = vpop.f32.mrf.mxu0
        %v794 = vadd.f32 %v533, %v793
        %v795 = vpop.f32.mrf.mxu0
        %796 = vmatprep.mubr.bf16.mxu0 0
        %797 = vmatmul.mubr.bf16.gmra.mxu0 %v653
        %v798 = vpop.f32.mrf.mxu0
        %v799 = vadd.f32 %v533, %v798
        %v800 = vpop.f32.mrf.mxu0
        %v801 = vpop.f32.mrf.mxu0
        %v802 = vadd.f32 %v533, %v801
        %v803 = vpop.f32.mrf.mxu0
        %804 = vmatprep.mubr.bf16.mxu0 0
        %805 = vmatmul.mubr.bf16.gmra.mxu0 %v656
        %v806 = vpop.f32.mrf.mxu0
        %v807 = vadd.f32 %v533, %v806
        %v808 = vpop.f32.mrf.mxu0
        %v809 = vpop.f32.mrf.mxu0
        %v810 = vadd.f32 %v533, %v809
        %v811 = vpop.f32.mrf.mxu0
        %812 = vmatprep.mubr.bf16.mxu0 0
        %813 = vmatmul.mubr.bf16.gmra.mxu0 %v659
        %v814 = vpop.f32.mrf.mxu0
        %v815 = vadd.f32 %v533, %v814
        %v816 = vpop.f32.mrf.mxu0
        %v817 = vpop.f32.mrf.mxu0
        %v818 = vadd.f32 %v533, %v817
        %v819 = vpop.f32.mrf.mxu0
        %820 = vmatprep.mubr.bf16.mxu0 0
        %821 = vmatmul.mubr.bf16.gmra.mxu0 %v662
        %v822 = vpop.f32.mrf.mxu0
        %v823 = vadd.f32 %v533, %v822
        %v824 = vpop.f32.mrf.mxu0
        %v825 = vpop.f32.mrf.mxu0
        %v826 = vadd.f32 %v533, %v825
        %v827 = vpop.f32.mrf.mxu0
        %828 = vdwg.mxu0
        %v829 = vmax.f32 %v703, 0.0
        %v830 = vmax.f32 %v706, 0.0
        %v831 = vmax.f32 %v711, 0.0
        %v832 = vmax.f32 %v714, 0.0
        %v833 = vmax.f32 %v719, 0.0
        %v834 = vmax.f32 %v722, 0.0
        %v835 = vmax.f32 %v727, 0.0
        %v836 = vmax.f32 %v730, 0.0
        %v837 = vmax.f32 %v735, 0.0
        %v838 = vmax.f32 %v738, 0.0
        %v839 = vmax.f32 %v743, 0.0
        %v840 = vmax.f32 %v746, 0.0
        %v841 = vmax.f32 %v751, 0.0
        %v842 = vmax.f32 %v754, 0.0
        %v843 = vmax.f32 %v759, 0.0
        %v844 = vmax.f32 %v762, 0.0
        %v845 = vmax.f32 %v767, 0.0
        %v846 = vmax.f32 %v770, 0.0
        %v847 = vmax.f32 %v775, 0.0
        %v848 = vmax.f32 %v778, 0.0
        %v849 = vmax.f32 %v783, 0.0
        %v850 = vmax.f32 %v786, 0.0
        %v851 = vmax.f32 %v791, 0.0
        %v852 = vmax.f32 %v794, 0.0
        %v853 = vmax.f32 %v799, 0.0
        %v854 = vmax.f32 %v802, 0.0
        %v855 = vmax.f32 %v807, 0.0
        %v856 = vmax.f32 %v810, 0.0
        %v857 = vmax.f32 %v815, 0.0
        %v858 = vmax.f32 %v818, 0.0
        %v859 = vmax.f32 %v823, 0.0
        %v860 = vmax.f32 %v826, 0.0
        %v861 = vld [vmem:[%s3] sm:$0x3]
        %v862 = vld [vmem:[%s4] sm:$0x1]
        %v864 = vlaneseq
        %v865 = vshrl.u32 %v864, 7
        %v866 = vsub.s32 0, %v865
        %v867 = vrot.slane %v862, %v866
        %v870 = vsel %vm664, %v861, 0
        %872 = vmatprep.subr.bf16.mxu0 0
        %873 = vmatpush1.bf16.msra.mxu0 0
        %874 = vmatprep.subr.bf16.mxu0 0
        %875 = vmatpush1.bf16.msra.mxu0 0
        %876 = vmatprep.subr.bf16.mxu0 0
        %877 = vmatpush1.bf16.msra.mxu0 0
        %878 = vmatprep.subr.bf16.mxu0 0
        %879 = vmatpush1.bf16.msra.mxu0 0
        %880 = vmatprep.subr.bf16.mxu0 0
        %881 = vmatpush1.bf16.msra.mxu0 0
        %882 = vmatprep.subr.bf16.mxu0 0
        %883 = vmatpush1.bf16.msra.mxu0 0
        %884 = vmatprep.subr.bf16.mxu0 0
        %885 = vmatpush1.bf16.msra.mxu0 0
        %886 = vmatprep.subr.bf16.mxu0 0
        %887 = vmatpush1.bf16.msra.mxu0 %v870
        %888 = vmatprep.subr.bf16.mxu0 0
        %889 = vmatpush2.bf16.msra.mxu0 0
        %890 = vmatprep.subr.bf16.mxu0 0
        %891 = vmatpush2.bf16.msra.mxu0 0
        %892 = vmatprep.subr.bf16.mxu0 0
        %893 = vmatpush2.bf16.msra.mxu0 0
        %894 = vmatprep.subr.bf16.mxu0 0
        %895 = vmatpush2.bf16.msra.mxu0 0
        %896 = vmatprep.subr.bf16.mxu0 0
        %897 = vmatpush2.bf16.msra.mxu0 0
        %898 = vmatprep.subr.bf16.mxu0 0
        %899 = vmatpush2.bf16.msra.mxu0 0
        %900 = vmatprep.subr.bf16.mxu0 0
        %901 = vmatpush2.bf16.msra.mxu0 0
        %902 = vmatprep.subr.bf16.mxu0 0
        %903 = vmatpush2.bf16.msra.mxu0 0
        %904 = vmatprep.mubr.bf16.mxu0 0
        %905 = vmatmul.mubr.bf16.gmra.mxu0 %v617
        %v906 = vpop.f32.mrf.mxu0
        %v907 = vadd.f32 %v867, %v906
        %v908 = vpop.f32.mrf.mxu0
        %v909 = vpop.f32.mrf.mxu0
        %v910 = vadd.f32 %v867, %v909
        %v911 = vpop.f32.mrf.mxu0
        %912 = vmatprep.mubr.bf16.mxu0 0
        %913 = vmatmul.mubr.bf16.gmra.mxu0 %v620
        %v914 = vpop.f32.mrf.mxu0
        %v915 = vadd.f32 %v867, %v914
        %v916 = vpop.f32.mrf.mxu0
        %v917 = vpop.f32.mrf.mxu0
        %v918 = vadd.f32 %v867, %v917
        %v919 = vpop.f32.mrf.mxu0
        %920 = vmatprep.mubr.bf16.mxu0 0
        %921 = vmatmul.mubr.bf16.gmra.mxu0 %v623
        %v922 = vpop.f32.mrf.mxu0
        %v923 = vadd.f32 %v867, %v922
        %v924 = vpop.f32.mrf.mxu0
        %v925 = vpop.f32.mrf.mxu0
        %v926 = vadd.f32 %v867, %v925
        %v927 = vpop.f32.mrf.mxu0
        %928 = vmatprep.mubr.bf16.mxu0 0
        %929 = vmatmul.mubr.bf16.gmra.mxu0 %v626
        %v930 = vpop.f32.mrf.mxu0
        %v931 = vadd.f32 %v867, %v930
        %v932 = vpop.f32.mrf.mxu0
        %v933 = vpop.f32.mrf.mxu0
        %v934 = vadd.f32 %v867, %v933
        %v935 = vpop.f32.mrf.mxu0
        %936 = vmatprep.mubr.bf16.mxu0 0
        %937 = vmatmul.mubr.bf16.gmra.mxu0 %v629
        %v938 = vpop.f32.mrf.mxu0
        %v939 = vadd.f32 %v867, %v938
        %v940 = vpop.f32.mrf.mxu0
        %v941 = vpop.f32.mrf.mxu0
        %v942 = vadd.f32 %v867, %v941
        %v943 = vpop.f32.mrf.mxu0
        %944 = vmatprep.mubr.bf16.mxu0 0
        %945 = vmatmul.mubr.bf16.gmra.mxu0 %v632
        %v946 = vpop.f32.mrf.mxu0
        %v947 = vadd.f32 %v867, %v946
        %v948 = vpop.f32.mrf.mxu0
        %v949 = vpop.f32.mrf.mxu0
        %v950 = vadd.f32 %v867, %v949
        %v951 = vpop.f32.mrf.mxu0
        %952 = vmatprep.mubr.bf16.mxu0 0
        %953 = vmatmul.mubr.bf16.gmra.mxu0 %v635
        %v954 = vpop.f32.mrf.mxu0
        %v955 = vadd.f32 %v867, %v954
        %v956 = vpop.f32.mrf.mxu0
        %v957 = vpop.f32.mrf.mxu0
        %v958 = vadd.f32 %v867, %v957
        %v959 = vpop.f32.mrf.mxu0
        %960 = vmatprep.mubr.bf16.mxu0 0
        %961 = vmatmul.mubr.bf16.gmra.mxu0 %v638
        %v962 = vpop.f32.mrf.mxu0
        %v963 = vadd.f32 %v867, %v962
        %v964 = vpop.f32.mrf.mxu0
        %v965 = vpop.f32.mrf.mxu0
        %v966 = vadd.f32 %v867, %v965
        %v967 = vpop.f32.mrf.mxu0
        %968 = vmatprep.mubr.bf16.mxu0 0
        %969 = vmatmul.mubr.bf16.gmra.mxu0 %v641
        %v970 = vpop.f32.mrf.mxu0
        %v971 = vadd.f32 %v867, %v970
        %v972 = vpop.f32.mrf.mxu0
        %v973 = vpop.f32.mrf.mxu0
        %v974 = vadd.f32 %v867, %v973
        %v975 = vpop.f32.mrf.mxu0
        %976 = vmatprep.mubr.bf16.mxu0 0
        %977 = vmatmul.mubr.bf16.gmra.mxu0 %v644
        %v978 = vpop.f32.mrf.mxu0
        %v979 = vadd.f32 %v867, %v978
        %v980 = vpop.f32.mrf.mxu0
        %v981 = vpop.f32.mrf.mxu0
        %v982 = vadd.f32 %v867, %v981
        %v983 = vpop.f32.mrf.mxu0
        %984 = vmatprep.mubr.bf16.mxu0 0
        %985 = vmatmul.mubr.bf16.gmra.mxu0 %v647
        %v986 = vpop.f32.mrf.mxu0
        %v987 = vadd.f32 %v867, %v986
        %v988 = vpop.f32.mrf.mxu0
        %v989 = vpop.f32.mrf.mxu0
        %v990 = vadd.f32 %v867, %v989
        %v991 = vpop.f32.mrf.mxu0
        %992 = vmatprep.mubr.bf16.mxu0 0
        %993 = vmatmul.mubr.bf16.gmra.mxu0 %v650
        %v994 = vpop.f32.mrf.mxu0
        %v995 = vadd.f32 %v867, %v994
        %v996 = vpop.f32.mrf.mxu0
        %v997 = vpop.f32.mrf.mxu0
        %v998 = vadd.f32 %v867, %v997
        %v999 = vpop.f32.mrf.mxu0
        %1000 = vmatprep.mubr.bf16.mxu0 0
        %1001 = vmatmul.mubr.bf16.gmra.mxu0 %v653
        %v1002 = vpop.f32.mrf.mxu0
        %v1003 = vadd.f32 %v867, %v1002
        %v1004 = vpop.f32.mrf.mxu0
        %v1005 = vpop.f32.mrf.mxu0
        %v1006 = vadd.f32 %v867, %v1005
        %v1007 = vpop.f32.mrf.mxu0
        %1008 = vmatprep.mubr.bf16.mxu0 0
        %1009 = vmatmul.mubr.bf16.gmra.mxu0 %v656
        %v1010 = vpop.f32.mrf.mxu0
        %v1011 = vadd.f32 %v867, %v1010
        %v1012 = vpop.f32.mrf.mxu0
        %v1013 = vpop.f32.mrf.mxu0
        %v1014 = vadd.f32 %v867, %v1013
        %v1015 = vpop.f32.mrf.mxu0
        %1016 = vmatprep.mubr.bf16.mxu0 0
        %1017 = vmatmul.mubr.bf16.gmra.mxu0 %v659
        %v1018 = vpop.f32.mrf.mxu0
        %v1019 = vadd.f32 %v867, %v1018
        %v1020 = vpop.f32.mrf.mxu0
        %v1021 = vpop.f32.mrf.mxu0
        %v1022 = vadd.f32 %v867, %v1021
        %v1023 = vpop.f32.mrf.mxu0
        %1024 = vmatprep.mubr.bf16.mxu0 0
        %1025 = vmatmul.mubr.bf16.gmra.mxu0 %v662
        %v1026 = vpop.f32.mrf.mxu0
        %v1027 = vadd.f32 %v867, %v1026
        %v1028 = vpop.f32.mrf.mxu0
        %v1029 = vpop.f32.mrf.mxu0
        %v1030 = vadd.f32 %v867, %v1029
        %v1031 = vpop.f32.mrf.mxu0
        %1032 = vdwg.mxu0
        %v1033 = vmax.f32 %v907, 0.0
        %v1034 = vmax.f32 %v910, 0.0
        %v1035 = vmax.f32 %v915, 0.0
        %v1036 = vmax.f32 %v918, 0.0
        %v1037 = vmax.f32 %v923, 0.0
        %v1038 = vmax.f32 %v926, 0.0
        %v1039 = vmax.f32 %v931, 0.0
        %v1040 = vmax.f32 %v934, 0.0
        %v1041 = vmax.f32 %v939, 0.0
        %v1042 = vmax.f32 %v942, 0.0
        %v1043 = vmax.f32 %v947, 0.0
        %v1044 = vmax.f32 %v950, 0.0
        %v1045 = vmax.f32 %v955, 0.0
        %v1046 = vmax.f32 %v958, 0.0
        %v1047 = vmax.f32 %v963, 0.0
        %v1048 = vmax.f32 %v966, 0.0
        %v1049 = vmax.f32 %v971, 0.0
        %v1050 = vmax.f32 %v974, 0.0
        %v1051 = vmax.f32 %v979, 0.0
        %v1052 = vmax.f32 %v982, 0.0
        %v1053 = vmax.f32 %v987, 0.0
        %v1054 = vmax.f32 %v990, 0.0
        %v1055 = vmax.f32 %v995, 0.0
        %v1056 = vmax.f32 %v998, 0.0
        %v1057 = vmax.f32 %v1003, 0.0
        %v1058 = vmax.f32 %v1006, 0.0
        %v1059 = vmax.f32 %v1011, 0.0
        %v1060 = vmax.f32 %v1014, 0.0
        %v1061 = vmax.f32 %v1019, 0.0
        %v1062 = vmax.f32 %v1022, 0.0
        %v1063 = vmax.f32 %v1027, 0.0
        %v1064 = vmax.f32 %v1030, 0.0
        %v1065 = vpack.c.bf16 %v1034, %v1033
        %v1066 = vpack.c.bf16 %v1036, %v1035
        %v1067 = vpack.c.bf16 %v1038, %v1037
        %v1068 = vpack.c.bf16 %v1040, %v1039
        %v1069 = vpack.c.bf16 %v1042, %v1041
        %v1070 = vpack.c.bf16 %v1044, %v1043
        %v1071 = vpack.c.bf16 %v1046, %v1045
        %v1072 = vpack.c.bf16 %v1048, %v1047
        %v1073 = vpack.c.bf16 %v1050, %v1049
        %v1074 = vpack.c.bf16 %v1052, %v1051
        %v1075 = vpack.c.bf16 %v1054, %v1053
        %v1076 = vpack.c.bf16 %v1056, %v1055
        %v1077 = vpack.c.bf16 %v1058, %v1057
        %v1078 = vpack.c.bf16 %v1060, %v1059
        %v1079 = vpack.c.bf16 %v1062, %v1061
        %v1080 = vpack.c.bf16 %v1064, %v1063
        %v1082 = vshrl.u32 %v1065, 16
        %v1084 = vrot.slane %v1082, 7
        %v1085 = vshll.u32 %v1065, 16
        %v1087 = vor.u32 %v1084, %v1085
        %v1089 = vshrl.u32 %v1066, 16
        %v1091 = vrot.slane %v1089, 7
        %v1092 = vshll.u32 %v1066, 16
        %v1094 = vor.u32 %v1091, %v1092
        %v1096 = vshrl.u32 %v1067, 16
        %v1098 = vrot.slane %v1096, 7
        %v1099 = vshll.u32 %v1067, 16
        %v1101 = vor.u32 %v1098, %v1099
        %v1103 = vshrl.u32 %v1068, 16
        %v1105 = vrot.slane %v1103, 7
        %v1106 = vshll.u32 %v1068, 16
        %v1108 = vor.u32 %v1105, %v1106
        %v1110 = vshrl.u32 %v1069, 16
        %v1112 = vrot.slane %v1110, 7
        %v1113 = vshll.u32 %v1069, 16
        %v1115 = vor.u32 %v1112, %v1113
        %v1117 = vshrl.u32 %v1070, 16
        %v1119 = vrot.slane %v1117, 7
        %v1120 = vshll.u32 %v1070, 16
        %v1122 = vor.u32 %v1119, %v1120
        %v1124 = vshrl.u32 %v1071, 16
        %v1126 = vrot.slane %v1124, 7
        %v1127 = vshll.u32 %v1071, 16
        %v1129 = vor.u32 %v1126, %v1127
        %v1131 = vshrl.u32 %v1072, 16
        %v1133 = vrot.slane %v1131, 7
        %v1134 = vshll.u32 %v1072, 16
        %v1136 = vor.u32 %v1133, %v1134
        %v1138 = vshrl.u32 %v1073, 16
        %v1140 = vrot.slane %v1138, 7
        %v1141 = vshll.u32 %v1073, 16
        %v1143 = vor.u32 %v1140, %v1141
        %v1145 = vshrl.u32 %v1074, 16
        %v1147 = vrot.slane %v1145, 7
        %v1148 = vshll.u32 %v1074, 16
        %v1150 = vor.u32 %v1147, %v1148
        %v1152 = vshrl.u32 %v1075, 16
        %v1154 = vrot.slane %v1152, 7
        %v1155 = vshll.u32 %v1075, 16
        %v1157 = vor.u32 %v1154, %v1155
        %v1159 = vshrl.u32 %v1076, 16
        %v1161 = vrot.slane %v1159, 7
        %v1162 = vshll.u32 %v1076, 16
        %v1164 = vor.u32 %v1161, %v1162
        %v1166 = vshrl.u32 %v1077, 16
        %v1168 = vrot.slane %v1166, 7
        %v1169 = vshll.u32 %v1077, 16
        %v1171 = vor.u32 %v1168, %v1169
        %v1173 = vshrl.u32 %v1078, 16
        %v1175 = vrot.slane %v1173, 7
        %v1176 = vshll.u32 %v1078, 16
        %v1178 = vor.u32 %v1175, %v1176
        %v1180 = vshrl.u32 %v1079, 16
        %v1182 = vrot.slane %v1180, 7
        %v1183 = vshll.u32 %v1079, 16
        %v1185 = vor.u32 %v1182, %v1183
        %v1187 = vshrl.u32 %v1080, 16
        %v1189 = vrot.slane %v1187, 7
        %v1190 = vshll.u32 %v1080, 16
        %v1192 = vor.u32 %v1189, %v1190
        %vm1225 = vcmask 1040384
        %vm1226 = vsmask.f32 256
        %vm1227 = vmand %vm1225, %vm1226
        %v1228 = vsel %vm1227, 0, %v1087
        %v1229 = vsel %vm1227, 0, %v1094
        %v1230 = vsel %vm1227, 0, %v1101
        %v1231 = vsel %vm1227, 0, %v1108
        %v1232 = vsel %vm1227, 0, %v1115
        %v1233 = vsel %vm1227, 0, %v1122
        %v1234 = vsel %vm1227, 0, %v1129
        %v1235 = vsel %vm1227, 0, %v1136
        %v1236 = vsel %vm1227, 0, %v1143
        %v1237 = vsel %vm1227, 0, %v1150
        %v1238 = vsel %vm1227, 0, %v1157
        %v1239 = vsel %vm1227, 0, %v1164
        %v1240 = vsel %vm1227, 0, %v1171
        %v1241 = vsel %vm1227, 0, %v1178
        %v1242 = vsel %vm1227, 0, %v1185
        %v1243 = vsel %vm1227, 0, %v1192
        %v1244 = vsel %vm1227, %v1084, 0
        %v1245 = vsel %vm1227, %v1091, 0
        %v1246 = vsel %vm1227, %v1098, 0
        %v1247 = vsel %vm1227, %v1105, 0
        %v1248 = vsel %vm1227, %v1112, 0
        %v1249 = vsel %vm1227, %v1119, 0
        %v1250 = vsel %vm1227, %v1126, 0
        %v1251 = vsel %vm1227, %v1133, 0
        %v1252 = vsel %vm1227, %v1140, 0
        %v1253 = vsel %vm1227, %v1147, 0
        %v1254 = vsel %vm1227, %v1154, 0
        %v1255 = vsel %vm1227, %v1161, 0
        %v1256 = vsel %vm1227, %v1168, 0
        %v1257 = vsel %vm1227, %v1175, 0
        %v1258 = vsel %vm1227, %v1182, 0
        %v1259 = vsel %vm1227, %v1189, 0
        %vm1260 = vsmask.f32 7424
        %v1262 = vshrl.u32 %v1228, 16
        %v1264 = vshll.u32 %v1228, 16
        %v1266 = vrot.slane %v1264, 1
        %v1267 = vor.u32 %v1262, %v1266
        %v1269 = vshll.u32 %v1244, 16
        %v1271 = vrot.slane %v1269, 1
        %v1272 = vsel %vm1260, %v1267, %v1271
        %v1274 = vshrl.u32 %v1229, 16
        %v1276 = vshll.u32 %v1229, 16
        %v1278 = vrot.slane %v1276, 1
        %v1279 = vor.u32 %v1274, %v1278
        %v1281 = vshll.u32 %v1245, 16
        %v1283 = vrot.slane %v1281, 1
        %v1284 = vsel %vm1260, %v1279, %v1283
        %v1286 = vshrl.u32 %v1230, 16
        %v1288 = vshll.u32 %v1230, 16
        %v1290 = vrot.slane %v1288, 1
        %v1291 = vor.u32 %v1286, %v1290
        %v1293 = vshll.u32 %v1246, 16
        %v1295 = vrot.slane %v1293, 1
        %v1296 = vsel %vm1260, %v1291, %v1295
        %v1298 = vshrl.u32 %v1231, 16
        %v1300 = vshll.u32 %v1231, 16
        %v1302 = vrot.slane %v1300, 1
        %v1303 = vor.u32 %v1298, %v1302
        %v1305 = vshll.u32 %v1247, 16
        %v1307 = vrot.slane %v1305, 1
        %v1308 = vsel %vm1260, %v1303, %v1307
        %v1310 = vshrl.u32 %v1232, 16
        %v1312 = vshll.u32 %v1232, 16
        %v1314 = vrot.slane %v1312, 1
        %v1315 = vor.u32 %v1310, %v1314
        %v1317 = vshll.u32 %v1248, 16
        %v1319 = vrot.slane %v1317, 1
        %v1320 = vsel %vm1260, %v1315, %v1319
        %v1322 = vshrl.u32 %v1233, 16
        %v1324 = vshll.u32 %v1233, 16
        %v1326 = vrot.slane %v1324, 1
        %v1327 = vor.u32 %v1322, %v1326
        %v1329 = vshll.u32 %v1249, 16
        %v1331 = vrot.slane %v1329, 1
        %v1332 = vsel %vm1260, %v1327, %v1331
        %v1334 = vshrl.u32 %v1234, 16
        %v1336 = vshll.u32 %v1234, 16
        %v1338 = vrot.slane %v1336, 1
        %v1339 = vor.u32 %v1334, %v1338
        %v1341 = vshll.u32 %v1250, 16
        %v1343 = vrot.slane %v1341, 1
        %v1344 = vsel %vm1260, %v1339, %v1343
        %v1346 = vshrl.u32 %v1235, 16
        %v1348 = vshll.u32 %v1235, 16
        %v1350 = vrot.slane %v1348, 1
        %v1351 = vor.u32 %v1346, %v1350
        %v1353 = vshll.u32 %v1251, 16
        %v1355 = vrot.slane %v1353, 1
        %v1356 = vsel %vm1260, %v1351, %v1355
        %v1358 = vshrl.u32 %v1236, 16
        %v1360 = vshll.u32 %v1236, 16
        %v1362 = vrot.slane %v1360, 1
        %v1363 = vor.u32 %v1358, %v1362
        %v1365 = vshll.u32 %v1252, 16
        %v1367 = vrot.slane %v1365, 1
        %v1368 = vsel %vm1260, %v1363, %v1367
        %v1370 = vshrl.u32 %v1237, 16
        %v1372 = vshll.u32 %v1237, 16
        %v1374 = vrot.slane %v1372, 1
        %v1375 = vor.u32 %v1370, %v1374
        %v1377 = vshll.u32 %v1253, 16
        %v1379 = vrot.slane %v1377, 1
        %v1380 = vsel %vm1260, %v1375, %v1379
        %v1382 = vshrl.u32 %v1238, 16
        %v1384 = vshll.u32 %v1238, 16
        %v1386 = vrot.slane %v1384, 1
        %v1387 = vor.u32 %v1382, %v1386
        %v1389 = vshll.u32 %v1254, 16
        %v1391 = vrot.slane %v1389, 1
        %v1392 = vsel %vm1260, %v1387, %v1391
        %v1394 = vshrl.u32 %v1239, 16
        %v1396 = vshll.u32 %v1239, 16
        %v1398 = vrot.slane %v1396, 1
        %v1399 = vor.u32 %v1394, %v1398
        %v1401 = vshll.u32 %v1255, 16
        %v1403 = vrot.slane %v1401, 1
        %v1404 = vsel %vm1260, %v1399, %v1403
        %v1406 = vshrl.u32 %v1240, 16
        %v1408 = vshll.u32 %v1240, 16
        %v1410 = vrot.slane %v1408, 1
        %v1411 = vor.u32 %v1406, %v1410
        %v1413 = vshll.u32 %v1256, 16
        %v1415 = vrot.slane %v1413, 1
        %v1416 = vsel %vm1260, %v1411, %v1415
        %v1418 = vshrl.u32 %v1241, 16
        %v1420 = vshll.u32 %v1241, 16
        %v1422 = vrot.slane %v1420, 1
        %v1423 = vor.u32 %v1418, %v1422
        %v1425 = vshll.u32 %v1257, 16
        %v1427 = vrot.slane %v1425, 1
        %v1428 = vsel %vm1260, %v1423, %v1427
        %v1430 = vshrl.u32 %v1242, 16
        %v1432 = vshll.u32 %v1242, 16
        %v1434 = vrot.slane %v1432, 1
        %v1435 = vor.u32 %v1430, %v1434
        %v1437 = vshll.u32 %v1258, 16
        %v1439 = vrot.slane %v1437, 1
        %v1440 = vsel %vm1260, %v1435, %v1439
        %v1442 = vshrl.u32 %v1243, 16
        %v1444 = vshll.u32 %v1243, 16
        %v1446 = vrot.slane %v1444, 1
        %v1447 = vor.u32 %v1442, %v1446
        %v1449 = vshll.u32 %v1259, 16
        %v1451 = vrot.slane %v1449, 1
        %v1452 = vsel %vm1260, %v1447, %v1451
        %1453 = vrot.lane.b32.xlu0 %v1272, 4
        %v1454 = vpop.permute.xlu0 %1453
        %1455 = vrot.lane.b32.xlu0 %v1284, 4
        %v1456 = vpop.permute.xlu0 %1455
        %1457 = vrot.lane.b32.xlu0 %v1296, 4
        %v1458 = vpop.permute.xlu0 %1457
        %1459 = vrot.lane.b32.xlu0 %v1308, 4
        %v1460 = vpop.permute.xlu0 %1459
        %1461 = vrot.lane.b32.xlu0 %v1320, 4
        %v1462 = vpop.permute.xlu0 %1461
        %1463 = vrot.lane.b32.xlu0 %v1332, 4
        %v1464 = vpop.permute.xlu0 %1463
        %1465 = vrot.lane.b32.xlu0 %v1344, 4
        %v1466 = vpop.permute.xlu0 %1465
        %1467 = vrot.lane.b32.xlu0 %v1356, 4
        %v1468 = vpop.permute.xlu0 %1467
        %1469 = vrot.lane.b32.xlu0 %v1368, 4
        %v1470 = vpop.permute.xlu0 %1469
        %1471 = vrot.lane.b32.xlu0 %v1380, 4
        %v1472 = vpop.permute.xlu0 %1471
        %1473 = vrot.lane.b32.xlu0 %v1392, 4
        %v1474 = vpop.permute.xlu0 %1473
        %1475 = vrot.lane.b32.xlu0 %v1404, 4
        %v1476 = vpop.permute.xlu0 %1475
        %1477 = vrot.lane.b32.xlu0 %v1416, 4
        %v1478 = vpop.permute.xlu0 %1477
        %1479 = vrot.lane.b32.xlu0 %v1428, 4
        %v1480 = vpop.permute.xlu0 %1479
        %1481 = vrot.lane.b32.xlu0 %v1440, 4
        %v1482 = vpop.permute.xlu0 %1481
        %1483 = vrot.lane.b32.xlu0 %v1452, 4
        %v1484 = vpop.permute.xlu0 %1483
        %vm1517 = vcmask 1046528
        %v1518 = vrot.slane %v1228, 1
        %v1519 = vrot.slane %v1244, 1
        %v1520 = vsel %vm1517, %v1518, %v1519
        %v1521 = vrot.slane %v1229, 1
        %v1522 = vrot.slane %v1245, 1
        %v1523 = vsel %vm1517, %v1521, %v1522
        %v1524 = vrot.slane %v1230, 1
        %v1525 = vrot.slane %v1246, 1
        %v1526 = vsel %vm1517, %v1524, %v1525
        %v1527 = vrot.slane %v1231, 1
        %v1528 = vrot.slane %v1247, 1
        %v1529 = vsel %vm1517, %v1527, %v1528
        %v1530 = vrot.slane %v1232, 1
        %v1531 = vrot.slane %v1248, 1
        %v1532 = vsel %vm1517, %v1530, %v1531
        %v1533 = vrot.slane %v1233, 1
        %v1534 = vrot.slane %v1249, 1
        %v1535 = vsel %vm1517, %v1533, %v1534
        %v1536 = vrot.slane %v1234, 1
        %v1537 = vrot.slane %v1250, 1
        %v1538 = vsel %vm1517, %v1536, %v1537
        %v1539 = vrot.slane %v1235, 1
        %v1540 = vrot.slane %v1251, 1
        %v1541 = vsel %vm1517, %v1539, %v1540
        %v1542 = vrot.slane %v1236, 1
        %v1543 = vrot.slane %v1252, 1
        %v1544 = vsel %vm1517, %v1542, %v1543
        %v1545 = vrot.slane %v1237, 1
        %v1546 = vrot.slane %v1253, 1
        %v1547 = vsel %vm1517, %v1545, %v1546
        %v1548 = vrot.slane %v1238, 1
        %v1549 = vrot.slane %v1254, 1
        %v1550 = vsel %vm1517, %v1548, %v1549
        %v1551 = vrot.slane %v1239, 1
        %v1552 = vrot.slane %v1255, 1
        %v1553 = vsel %vm1517, %v1551, %v1552
        %v1554 = vrot.slane %v1240, 1
        %v1555 = vrot.slane %v1256, 1
        %v1556 = vsel %vm1517, %v1554, %v1555
        %v1557 = vrot.slane %v1241, 1
        %v1558 = vrot.slane %v1257, 1
        %v1559 = vsel %vm1517, %v1557, %v1558
        %v1560 = vrot.slane %v1242, 1
        %v1561 = vrot.slane %v1258, 1
        %v1562 = vsel %vm1517, %v1560, %v1561
        %v1563 = vrot.slane %v1243, 1
        %v1564 = vrot.slane %v1259, 1
        %v1565 = vsel %vm1517, %v1563, %v1564
        %1566 = vrot.lane.b32.xlu0 %v1520, 8
        %v1567 = vpop.permute.xlu0 %1566
        %1568 = vrot.lane.b32.xlu0 %v1523, 8
        %v1569 = vpop.permute.xlu0 %1568
        %1570 = vrot.lane.b32.xlu0 %v1526, 8
        %v1571 = vpop.permute.xlu0 %1570
        %1572 = vrot.lane.b32.xlu0 %v1529, 8
        %v1573 = vpop.permute.xlu0 %1572
        %1574 = vrot.lane.b32.xlu0 %v1532, 8
        %v1575 = vpop.permute.xlu0 %1574
        %1576 = vrot.lane.b32.xlu0 %v1535, 8
        %v1577 = vpop.permute.xlu0 %1576
        %1578 = vrot.lane.b32.xlu0 %v1538, 8
        %v1579 = vpop.permute.xlu0 %1578
        %1580 = vrot.lane.b32.xlu0 %v1541, 8
        %v1581 = vpop.permute.xlu0 %1580
        %1582 = vrot.lane.b32.xlu0 %v1544, 8
        %v1583 = vpop.permute.xlu0 %1582
        %1584 = vrot.lane.b32.xlu0 %v1547, 8
        %v1585 = vpop.permute.xlu0 %1584
        %1586 = vrot.lane.b32.xlu0 %v1550, 8
        %v1587 = vpop.permute.xlu0 %1586
        %1588 = vrot.lane.b32.xlu0 %v1553, 8
        %v1589 = vpop.permute.xlu0 %1588
        %1590 = vrot.lane.b32.xlu0 %v1556, 8
        %v1591 = vpop.permute.xlu0 %1590
        %1592 = vrot.lane.b32.xlu0 %v1559, 8
        %v1593 = vpop.permute.xlu0 %1592
        %1594 = vrot.lane.b32.xlu0 %v1562, 8
        %v1595 = vpop.permute.xlu0 %1594
        %1596 = vrot.lane.b32.xlu0 %v1565, 8
        %v1597 = vpop.permute.xlu0 %1596
        %v1599 = vsel %vm615, %v1228, %v1454
        %v1601 = vsel %vm615, %v1229, %v1456
        %v1603 = vsel %vm615, %v1230, %v1458
        %v1605 = vsel %vm615, %v1231, %v1460
        %v1607 = vsel %vm615, %v1232, %v1462
        %v1609 = vsel %vm615, %v1233, %v1464
        %v1611 = vsel %vm615, %v1234, %v1466
        %v1613 = vsel %vm615, %v1235, %v1468
        %v1615 = vsel %vm615, %v1236, %v1470
        %v1617 = vsel %vm615, %v1237, %v1472
        %v1619 = vsel %vm615, %v1238, %v1474
        %v1621 = vsel %vm615, %v1239, %v1476
        %v1623 = vsel %vm615, %v1240, %v1478
        %v1625 = vsel %vm615, %v1241, %v1480
        %v1627 = vsel %vm615, %v1242, %v1482
        %v1629 = vsel %vm615, %v1243, %v1484
        %vm1630 = vcmask 64512
        %v1632 = vsel %vm1630, %v1599, %v1567
        %v1634 = vsel %vm1630, %v1601, %v1569
        %v1636 = vsel %vm1630, %v1603, %v1571
        %v1638 = vsel %vm1630, %v1605, %v1573
        %v1640 = vsel %vm1630, %v1607, %v1575
        %v1642 = vsel %vm1630, %v1609, %v1577
        %v1644 = vsel %vm1630, %v1611, %v1579
        %v1646 = vsel %vm1630, %v1613, %v1581
        %v1648 = vsel %vm1630, %v1615, %v1583
        %v1650 = vsel %vm1630, %v1617, %v1585
        %v1652 = vsel %vm1630, %v1619, %v1587
        %v1654 = vsel %vm1630, %v1621, %v1589
        %v1656 = vsel %vm1630, %v1623, %v1591
        %v1658 = vsel %vm1630, %v1625, %v1593
        %v1660 = vsel %vm1630, %v1627, %v1595
        %v1662 = vsel %vm1630, %v1629, %v1597
        %v1663 = vld [vmem:[%s5] sm:$0xf]
        %v1664 = vld [vmem:[%s5 + $0x4] sm:$0x3]
        %s1665 = scalar_lea.vmem %s5, 8
        %v1666 = vld [vmem:[%s1665] sm:$0xf]
        %v1667 = vld [vmem:[%s1665 + $0x4] sm:$0x3]
        %v1670 = vunpack.c.l.b16 %v1666
        %v1671 = vunpack.c.l.b16 %v1667
        %v1672 = vpack.c.b16 %v1671, %v1670
        %vm1673 = vcmask 97280
        %v1674 = vsel %vm1673, %v1632, 0
        %v1676 = vsel %vm1673, %v1634, 0
        %v1678 = vsel %vm1673, %v1636, 0
        %v1680 = vsel %vm1673, %v1638, 0
        %v1682 = vsel %vm1673, %v1640, 0
        %v1684 = vsel %vm1673, %v1642, 0
        %v1686 = vsel %vm1673, %v1644, 0
        %v1688 = vsel %vm1673, %v1646, 0
        %v1690 = vsel %vm1673, %v1648, 0
        %v1692 = vsel %vm1673, %v1650, 0
        %v1694 = vsel %vm1673, %v1652, 0
        %v1696 = vsel %vm1673, %v1654, 0
        %v1698 = vsel %vm1673, %v1656, 0
        %v1700 = vsel %vm1673, %v1658, 0
        %v1702 = vsel %vm1673, %v1660, 0
        %v1704 = vsel %vm1673, %v1662, 0
        %vm1706 = vcmask 1045504
        %v1708 = vsel %vm1706, %v1672, 0
        %1710 = vmatprep.subr.bf16.mxu0 0
        %1711 = vmatpush1.bf16.msra.mxu0 0
        %1712 = vmatprep.subr.bf16.mxu0 0
        %1713 = vmatpush1.bf16.msra.mxu0 0
        %1714 = vmatprep.subr.bf16.mxu0 0
        %1715 = vmatpush1.bf16.msra.mxu0 0
        %1716 = vmatprep.subr.bf16.mxu0 0
        %1717 = vmatpush1.bf16.msra.mxu0 0
        %1718 = vmatprep.subr.bf16.mxu0 0
        %1719 = vmatpush1.bf16.msra.mxu0 0
        %1720 = vmatprep.subr.bf16.mxu0 0
        %1721 = vmatpush1.bf16.msra.mxu0 0
        %1722 = vmatprep.subr.bf16.mxu0 0
        %1723 = vmatpush1.bf16.msra.mxu0 0
        %1724 = vmatprep.subr.bf16.mxu0 0
        %1725 = vmatpush1.bf16.msra.mxu0 %v1708
        %1726 = vmatprep.subr.bf16.mxu0 0
        %1727 = vmatpush2.bf16.msra.mxu0 0
        %1728 = vmatprep.subr.bf16.mxu0 0
        %1729 = vmatpush2.bf16.msra.mxu0 0
        %1730 = vmatprep.subr.bf16.mxu0 0
        %1731 = vmatpush2.bf16.msra.mxu0 0
        %1732 = vmatprep.subr.bf16.mxu0 0
        %1733 = vmatpush2.bf16.msra.mxu0 0
        %1734 = vmatprep.subr.bf16.mxu0 0
        %1735 = vmatpush2.bf16.msra.mxu0 0
        %1736 = vmatprep.subr.bf16.mxu0 0
        %1737 = vmatpush2.bf16.msra.mxu0 0
        %1738 = vmatprep.subr.bf16.mxu0 0
        %1739 = vmatpush2.bf16.msra.mxu0 0
        %1740 = vmatprep.subr.bf16.mxu0 0
        %1741 = vmatpush2.bf16.msra.mxu0 0
        %1742 = vmatprep.mubr.bf16.mxu0 0
        %1743 = vmatmul.mubr.bf16.gmra.mxu0 %v1674
        %v1744 = vpop.f32.mrf.mxu0
        %v1745 = vadd.f32 0.0, %v1744
        %v1746 = vpop.f32.mrf.mxu0
        %v1747 = vpop.f32.mrf.mxu0
        %v1748 = vadd.f32 0.0, %v1747
        %v1749 = vpop.f32.mrf.mxu0
        %1750 = vmatprep.mubr.bf16.mxu0 0
        %1751 = vmatmul.mubr.bf16.gmra.mxu0 %v1676
        %v1752 = vpop.f32.mrf.mxu0
        %v1753 = vadd.f32 0.0, %v1752
        %v1754 = vpop.f32.mrf.mxu0
        %v1755 = vpop.f32.mrf.mxu0
        %v1756 = vadd.f32 0.0, %v1755
        %v1757 = vpop.f32.mrf.mxu0
        %1758 = vmatprep.mubr.bf16.mxu0 0
        %1759 = vmatmul.mubr.bf16.gmra.mxu0 %v1678
        %v1760 = vpop.f32.mrf.mxu0
        %v1761 = vadd.f32 0.0, %v1760
        %v1762 = vpop.f32.mrf.mxu0
        %v1763 = vpop.f32.mrf.mxu0
        %v1764 = vadd.f32 0.0, %v1763
        %v1765 = vpop.f32.mrf.mxu0
        %1766 = vmatprep.mubr.bf16.mxu0 0
        %1767 = vmatmul.mubr.bf16.gmra.mxu0 %v1680
        %v1768 = vpop.f32.mrf.mxu0
        %v1769 = vadd.f32 0.0, %v1768
        %v1770 = vpop.f32.mrf.mxu0
        %v1771 = vpop.f32.mrf.mxu0
        %v1772 = vadd.f32 0.0, %v1771
        %v1773 = vpop.f32.mrf.mxu0
        %1774 = vmatprep.mubr.bf16.mxu0 0
        %1775 = vmatmul.mubr.bf16.gmra.mxu0 %v1682
        %v1776 = vpop.f32.mrf.mxu0
        %v1777 = vadd.f32 0.0, %v1776
        %v1778 = vpop.f32.mrf.mxu0
        %v1779 = vpop.f32.mrf.mxu0
        %v1780 = vadd.f32 0.0, %v1779
        %v1781 = vpop.f32.mrf.mxu0
        %1782 = vmatprep.mubr.bf16.mxu0 0
        %1783 = vmatmul.mubr.bf16.gmra.mxu0 %v1684
        %v1784 = vpop.f32.mrf.mxu0
        %v1785 = vadd.f32 0.0, %v1784
        %v1786 = vpop.f32.mrf.mxu0
        %v1787 = vpop.f32.mrf.mxu0
        %v1788 = vadd.f32 0.0, %v1787
        %v1789 = vpop.f32.mrf.mxu0
        %1790 = vmatprep.mubr.bf16.mxu0 0
        %1791 = vmatmul.mubr.bf16.gmra.mxu0 %v1686
        %v1792 = vpop.f32.mrf.mxu0
        %v1793 = vadd.f32 0.0, %v1792
        %v1794 = vpop.f32.mrf.mxu0
        %v1795 = vpop.f32.mrf.mxu0
        %v1796 = vadd.f32 0.0, %v1795
        %v1797 = vpop.f32.mrf.mxu0
        %1798 = vmatprep.mubr.bf16.mxu0 0
        %1799 = vmatmul.mubr.bf16.gmra.mxu0 %v1688
        %v1800 = vpop.f32.mrf.mxu0
        %v1801 = vadd.f32 0.0, %v1800
        %v1802 = vpop.f32.mrf.mxu0
        %v1803 = vpop.f32.mrf.mxu0
        %v1804 = vadd.f32 0.0, %v1803
        %v1805 = vpop.f32.mrf.mxu0
        %1806 = vmatprep.mubr.bf16.mxu0 0
        %1807 = vmatmul.mubr.bf16.gmra.mxu0 %v1690
        %v1808 = vpop.f32.mrf.mxu0
        %v1809 = vadd.f32 0.0, %v1808
        %v1810 = vpop.f32.mrf.mxu0
        %v1811 = vpop.f32.mrf.mxu0
        %v1812 = vadd.f32 0.0, %v1811
        %v1813 = vpop.f32.mrf.mxu0
        %1814 = vmatprep.mubr.bf16.mxu0 0
        %1815 = vmatmul.mubr.bf16.gmra.mxu0 %v1692
        %v1816 = vpop.f32.mrf.mxu0
        %v1817 = vadd.f32 0.0, %v1816
        %v1818 = vpop.f32.mrf.mxu0
        %v1819 = vpop.f32.mrf.mxu0
        %v1820 = vadd.f32 0.0, %v1819
        %v1821 = vpop.f32.mrf.mxu0
        %1822 = vmatprep.mubr.bf16.mxu0 0
        %1823 = vmatmul.mubr.bf16.gmra.mxu0 %v1694
        %v1824 = vpop.f32.mrf.mxu0
        %v1825 = vadd.f32 0.0, %v1824
        %v1826 = vpop.f32.mrf.mxu0
        %v1827 = vpop.f32.mrf.mxu0
        %v1828 = vadd.f32 0.0, %v1827
        %v1829 = vpop.f32.mrf.mxu0
        %1830 = vmatprep.mubr.bf16.mxu0 0
        %1831 = vmatmul.mubr.bf16.gmra.mxu0 %v1696
        %v1832 = vpop.f32.mrf.mxu0
        %v1833 = vadd.f32 0.0, %v1832
        %v1834 = vpop.f32.mrf.mxu0
        %v1835 = vpop.f32.mrf.mxu0
        %v1836 = vadd.f32 0.0, %v1835
        %v1837 = vpop.f32.mrf.mxu0
        %1838 = vmatprep.mubr.bf16.mxu0 0
        %1839 = vmatmul.mubr.bf16.gmra.mxu0 %v1698
        %v1840 = vpop.f32.mrf.mxu0
        %v1841 = vadd.f32 0.0, %v1840
        %v1842 = vpop.f32.mrf.mxu0
        %v1843 = vpop.f32.mrf.mxu0
        %v1844 = vadd.f32 0.0, %v1843
        %v1845 = vpop.f32.mrf.mxu0
        %1846 = vmatprep.mubr.bf16.mxu0 0
        %1847 = vmatmul.mubr.bf16.gmra.mxu0 %v1700
        %v1848 = vpop.f32.mrf.mxu0
        %v1849 = vadd.f32 0.0, %v1848
        %v1850 = vpop.f32.mrf.mxu0
        %v1851 = vpop.f32.mrf.mxu0
        %v1852 = vadd.f32 0.0, %v1851
        %v1853 = vpop.f32.mrf.mxu0
        %1854 = vmatprep.mubr.bf16.mxu0 0
        %1855 = vmatmul.mubr.bf16.gmra.mxu0 %v1702
        %v1856 = vpop.f32.mrf.mxu0
        %v1857 = vadd.f32 0.0, %v1856
        %v1858 = vpop.f32.mrf.mxu0
        %v1859 = vpop.f32.mrf.mxu0
        %v1860 = vadd.f32 0.0, %v1859
        %v1861 = vpop.f32.mrf.mxu0
        %1862 = vmatprep.mubr.bf16.mxu0 0
        %1863 = vmatmul.mubr.bf16.gmra.mxu0 %v1704
        %v1864 = vpop.f32.mrf.mxu0
        %v1865 = vadd.f32 0.0, %v1864
        %v1866 = vpop.f32.mrf.mxu0
        %v1867 = vpop.f32.mrf.mxu0
        %v1868 = vadd.f32 0.0, %v1867
        %v1869 = vpop.f32.mrf.mxu0
        %1870 = vdwg.mxu0
        %v1873 = vunpack.c.l.b16 %v1663
        %v1874 = vunpack.c.l.b16 %v1664
        %v1875 = vpack.c.b16 %v1874, %v1873
        %v1877 = vsel %vm1673, 0, 0
        %v1880 = vsel %vm1706, %v1875, 0
        %1882 = vmatprep.subr.bf16.mxu0 0
        %1883 = vmatpush1.bf16.msra.mxu0 0
        %1884 = vmatprep.subr.bf16.mxu0 0
        %1885 = vmatpush1.bf16.msra.mxu0 0
        %1886 = vmatprep.subr.bf16.mxu0 0
        %1887 = vmatpush1.bf16.msra.mxu0 0
        %1888 = vmatprep.subr.bf16.mxu0 0
        %1889 = vmatpush1.bf16.msra.mxu0 0
        %1890 = vmatprep.subr.bf16.mxu0 0
        %1891 = vmatpush1.bf16.msra.mxu0 0
        %1892 = vmatprep.subr.bf16.mxu0 0
        %1893 = vmatpush1.bf16.msra.mxu0 0
        %1894 = vmatprep.subr.bf16.mxu0 0
        %1895 = vmatpush1.bf16.msra.mxu0 0
        %1896 = vmatprep.subr.bf16.mxu0 0
        %1897 = vmatpush1.bf16.msra.mxu0 %v1880
        %1898 = vmatprep.subr.bf16.mxu0 0
        %1899 = vmatpush2.bf16.msra.mxu0 0
        %1900 = vmatprep.subr.bf16.mxu0 0
        %1901 = vmatpush2.bf16.msra.mxu0 0
        %1902 = vmatprep.subr.bf16.mxu0 0
        %1903 = vmatpush2.bf16.msra.mxu0 0
        %1904 = vmatprep.subr.bf16.mxu0 0
        %1905 = vmatpush2.bf16.msra.mxu0 0
        %1906 = vmatprep.subr.bf16.mxu0 0
        %1907 = vmatpush2.bf16.msra.mxu0 0
        %1908 = vmatprep.subr.bf16.mxu0 0
        %1909 = vmatpush2.bf16.msra.mxu0 0
        %1910 = vmatprep.subr.bf16.mxu0 0
        %1911 = vmatpush2.bf16.msra.mxu0 0
        %1912 = vmatprep.subr.bf16.mxu0 0
        %1913 = vmatpush2.bf16.msra.mxu0 0
        %1914 = vmatprep.mubr.bf16.mxu0 0
        %1915 = vmatmul.mubr.bf16.gmra.mxu0 %v1877
        %v1916 = vpop.f32.mrf.mxu0
        %v1917 = vadd.f32 %v1745, %v1916
        %v1918 = vpop.f32.mrf.mxu0
        %v1919 = vpop.f32.mrf.mxu0
        %v1920 = vadd.f32 %v1748, %v1919
        %v1921 = vpop.f32.mrf.mxu0
        %1922 = vmatprep.mubr.bf16.mxu0 0
        %1923 = vmatmul.mubr.bf16.gmra.mxu0 %v1674
        %v1924 = vpop.f32.mrf.mxu0
        %v1925 = vadd.f32 %v1753, %v1924
        %v1926 = vpop.f32.mrf.mxu0
        %v1927 = vpop.f32.mrf.mxu0
        %v1928 = vadd.f32 %v1756, %v1927
        %v1929 = vpop.f32.mrf.mxu0
        %1930 = vmatprep.mubr.bf16.mxu0 0
        %1931 = vmatmul.mubr.bf16.gmra.mxu0 %v1676
        %v1932 = vpop.f32.mrf.mxu0
        %v1933 = vadd.f32 %v1761, %v1932
        %v1934 = vpop.f32.mrf.mxu0
        %v1935 = vpop.f32.mrf.mxu0
        %v1936 = vadd.f32 %v1764, %v1935
        %v1937 = vpop.f32.mrf.mxu0
        %1938 = vmatprep.mubr.bf16.mxu0 0
        %1939 = vmatmul.mubr.bf16.gmra.mxu0 %v1678
        %v1940 = vpop.f32.mrf.mxu0
        %v1941 = vadd.f32 %v1769, %v1940
        %v1942 = vpop.f32.mrf.mxu0
        %v1943 = vpop.f32.mrf.mxu0
        %v1944 = vadd.f32 %v1772, %v1943
        %v1945 = vpop.f32.mrf.mxu0
        %1946 = vmatprep.mubr.bf16.mxu0 0
        %1947 = vmatmul.mubr.bf16.gmra.mxu0 %v1680
        %v1948 = vpop.f32.mrf.mxu0
        %v1949 = vadd.f32 %v1777, %v1948
        %v1950 = vpop.f32.mrf.mxu0
        %v1951 = vpop.f32.mrf.mxu0
        %v1952 = vadd.f32 %v1780, %v1951
        %v1953 = vpop.f32.mrf.mxu0
        %1954 = vmatprep.mubr.bf16.mxu0 0
        %1955 = vmatmul.mubr.bf16.gmra.mxu0 %v1682
        %v1956 = vpop.f32.mrf.mxu0
        %v1957 = vadd.f32 %v1785, %v1956
        %v1958 = vpop.f32.mrf.mxu0
        %v1959 = vpop.f32.mrf.mxu0
        %v1960 = vadd.f32 %v1788, %v1959
        %v1961 = vpop.f32.mrf.mxu0
        %1962 = vmatprep.mubr.bf16.mxu0 0
        %1963 = vmatmul.mubr.bf16.gmra.mxu0 %v1684
        %v1964 = vpop.f32.mrf.mxu0
        %v1965 = vadd.f32 %v1793, %v1964
        %v1966 = vpop.f32.mrf.mxu0
        %v1967 = vpop.f32.mrf.mxu0
        %v1968 = vadd.f32 %v1796, %v1967
        %v1969 = vpop.f32.mrf.mxu0
        %1970 = vmatprep.mubr.bf16.mxu0 0
        %1971 = vmatmul.mubr.bf16.gmra.mxu0 %v1686
        %v1972 = vpop.f32.mrf.mxu0
        %v1973 = vadd.f32 %v1801, %v1972
        %v1974 = vpop.f32.mrf.mxu0
        %v1975 = vpop.f32.mrf.mxu0
        %v1976 = vadd.f32 %v1804, %v1975
        %v1977 = vpop.f32.mrf.mxu0
        %1978 = vmatprep.mubr.bf16.mxu0 0
        %1979 = vmatmul.mubr.bf16.gmra.mxu0 %v1688
        %v1980 = vpop.f32.mrf.mxu0
        %v1981 = vadd.f32 %v1809, %v1980
        %v1982 = vpop.f32.mrf.mxu0
        %v1983 = vpop.f32.mrf.mxu0
        %v1984 = vadd.f32 %v1812, %v1983
        %v1985 = vpop.f32.mrf.mxu0
        %1986 = vmatprep.mubr.bf16.mxu0 0
        %1987 = vmatmul.mubr.bf16.gmra.mxu0 %v1690
        %v1988 = vpop.f32.mrf.mxu0
        %v1989 = vadd.f32 %v1817, %v1988
        %v1990 = vpop.f32.mrf.mxu0
        %v1991 = vpop.f32.mrf.mxu0
        %v1992 = vadd.f32 %v1820, %v1991
        %v1993 = vpop.f32.mrf.mxu0
        %1994 = vmatprep.mubr.bf16.mxu0 0
        %1995 = vmatmul.mubr.bf16.gmra.mxu0 %v1692
        %v1996 = vpop.f32.mrf.mxu0
        %v1997 = vadd.f32 %v1825, %v1996
        %v1998 = vpop.f32.mrf.mxu0
        %v1999 = vpop.f32.mrf.mxu0
        %v2000 = vadd.f32 %v1828, %v1999
        %v2001 = vpop.f32.mrf.mxu0
        %2002 = vmatprep.mubr.bf16.mxu0 0
        %2003 = vmatmul.mubr.bf16.gmra.mxu0 %v1694
        %v2004 = vpop.f32.mrf.mxu0
        %v2005 = vadd.f32 %v1833, %v2004
        %v2006 = vpop.f32.mrf.mxu0
        %v2007 = vpop.f32.mrf.mxu0
        %v2008 = vadd.f32 %v1836, %v2007
        %v2009 = vpop.f32.mrf.mxu0
        %2010 = vmatprep.mubr.bf16.mxu0 0
        %2011 = vmatmul.mubr.bf16.gmra.mxu0 %v1696
        %v2012 = vpop.f32.mrf.mxu0
        %v2013 = vadd.f32 %v1841, %v2012
        %v2014 = vpop.f32.mrf.mxu0
        %v2015 = vpop.f32.mrf.mxu0
        %v2016 = vadd.f32 %v1844, %v2015
        %v2017 = vpop.f32.mrf.mxu0
        %2018 = vmatprep.mubr.bf16.mxu0 0
        %2019 = vmatmul.mubr.bf16.gmra.mxu0 %v1698
        %v2020 = vpop.f32.mrf.mxu0
        %v2021 = vadd.f32 %v1849, %v2020
        %v2022 = vpop.f32.mrf.mxu0
        %v2023 = vpop.f32.mrf.mxu0
        %v2024 = vadd.f32 %v1852, %v2023
        %v2025 = vpop.f32.mrf.mxu0
        %2026 = vmatprep.mubr.bf16.mxu0 0
        %2027 = vmatmul.mubr.bf16.gmra.mxu0 %v1700
        %v2028 = vpop.f32.mrf.mxu0
        %v2029 = vadd.f32 %v1857, %v2028
        %v2030 = vpop.f32.mrf.mxu0
        %v2031 = vpop.f32.mrf.mxu0
        %v2032 = vadd.f32 %v1860, %v2031
        %v2033 = vpop.f32.mrf.mxu0
        %2034 = vmatprep.mubr.bf16.mxu0 0
        %2035 = vmatmul.mubr.bf16.gmra.mxu0 %v1702
        %v2036 = vpop.f32.mrf.mxu0
        %v2037 = vadd.f32 %v1865, %v2036
        %v2038 = vpop.f32.mrf.mxu0
        %v2039 = vpop.f32.mrf.mxu0
        %v2040 = vadd.f32 %v1868, %v2039
        %v2041 = vpop.f32.mrf.mxu0
        %2042 = vdwg.mxu0
        %s2043 = scalar_lea.vmem %s5, 16
        %v2044 = vld [vmem:[%s2043] sm:$0xf]
        %v2045 = vld [vmem:[%s2043 + $0x4] sm:$0x3]
        %v2048 = vunpack.c.l.b16 %v2044
        %v2049 = vunpack.c.l.b16 %v2045
        %v2050 = vpack.c.b16 %v2049, %v2048
        %v2052 = vsel %vm1706, %v2050, 0
        %2054 = vmatprep.subr.bf16.mxu0 0
        %2055 = vmatpush1.bf16.msra.mxu0 0
        %2056 = vmatprep.subr.bf16.mxu0 0
        %2057 = vmatpush1.bf16.msra.mxu0 0
        %2058 = vmatprep.subr.bf16.mxu0 0
        %2059 = vmatpush1.bf16.msra.mxu0 0
        %2060 = vmatprep.subr.bf16.mxu0 0
        %2061 = vmatpush1.bf16.msra.mxu0 0
        %2062 = vmatprep.subr.bf16.mxu0 0
        %2063 = vmatpush1.bf16.msra.mxu0 0
        %2064 = vmatprep.subr.bf16.mxu0 0
        %2065 = vmatpush1.bf16.msra.mxu0 0
        %2066 = vmatprep.subr.bf16.mxu0 0
        %2067 = vmatpush1.bf16.msra.mxu0 0
        %2068 = vmatprep.subr.bf16.mxu0 0
        %2069 = vmatpush1.bf16.msra.mxu0 %v2052
        %2070 = vmatprep.subr.bf16.mxu0 0
        %2071 = vmatpush2.bf16.msra.mxu0 0
        %2072 = vmatprep.subr.bf16.mxu0 0
        %2073 = vmatpush2.bf16.msra.mxu0 0
        %2074 = vmatprep.subr.bf16.mxu0 0
        %2075 = vmatpush2.bf16.msra.mxu0 0
        %2076 = vmatprep.subr.bf16.mxu0 0
        %2077 = vmatpush2.bf16.msra.mxu0 0
        %2078 = vmatprep.subr.bf16.mxu0 0
        %2079 = vmatpush2.bf16.msra.mxu0 0
        %2080 = vmatprep.subr.bf16.mxu0 0
        %2081 = vmatpush2.bf16.msra.mxu0 0
        %2082 = vmatprep.subr.bf16.mxu0 0
        %2083 = vmatpush2.bf16.msra.mxu0 0
        %2084 = vmatprep.subr.bf16.mxu0 0
        %2085 = vmatpush2.bf16.msra.mxu0 0
        %2086 = vmatprep.mubr.bf16.mxu0 0
        %2087 = vmatmul.mubr.bf16.gmra.mxu0 %v1676
        %v2088 = vpop.f32.mrf.mxu0
        %v2089 = vadd.f32 0.0, %v2088
        %v2090 = vpop.f32.mrf.mxu0
        %v2091 = vpop.f32.mrf.mxu0
        %v2092 = vadd.f32 0.0, %v2091
        %v2093 = vpop.f32.mrf.mxu0
        %2094 = vmatprep.mubr.bf16.mxu0 0
        %2095 = vmatmul.mubr.bf16.gmra.mxu0 %v1678
        %v2096 = vpop.f32.mrf.mxu0
        %v2097 = vadd.f32 0.0, %v2096
        %v2098 = vpop.f32.mrf.mxu0
        %v2099 = vpop.f32.mrf.mxu0
        %v2100 = vadd.f32 0.0, %v2099
        %v2101 = vpop.f32.mrf.mxu0
        %2102 = vmatprep.mubr.bf16.mxu0 0
        %2103 = vmatmul.mubr.bf16.gmra.mxu0 %v1680
        %v2104 = vpop.f32.mrf.mxu0
        %v2105 = vadd.f32 0.0, %v2104
        %v2106 = vpop.f32.mrf.mxu0
        %v2107 = vpop.f32.mrf.mxu0
        %v2108 = vadd.f32 0.0, %v2107
        %v2109 = vpop.f32.mrf.mxu0
        %2110 = vmatprep.mubr.bf16.mxu0 0
        %2111 = vmatmul.mubr.bf16.gmra.mxu0 %v1682
        %v2112 = vpop.f32.mrf.mxu0
        %v2113 = vadd.f32 0.0, %v2112
        %v2114 = vpop.f32.mrf.mxu0
        %v2115 = vpop.f32.mrf.mxu0
        %v2116 = vadd.f32 0.0, %v2115
        %v2117 = vpop.f32.mrf.mxu0
        %2118 = vmatprep.mubr.bf16.mxu0 0
        %2119 = vmatmul.mubr.bf16.gmra.mxu0 %v1684
        %v2120 = vpop.f32.mrf.mxu0
        %v2121 = vadd.f32 0.0, %v2120
        %v2122 = vpop.f32.mrf.mxu0
        %v2123 = vpop.f32.mrf.mxu0
        %v2124 = vadd.f32 0.0, %v2123
        %v2125 = vpop.f32.mrf.mxu0
        %2126 = vmatprep.mubr.bf16.mxu0 0
        %2127 = vmatmul.mubr.bf16.gmra.mxu0 %v1686
        %v2128 = vpop.f32.mrf.mxu0
        %v2129 = vadd.f32 0.0, %v2128
        %v2130 = vpop.f32.mrf.mxu0
        %v2131 = vpop.f32.mrf.mxu0
        %v2132 = vadd.f32 0.0, %v2131
        %v2133 = vpop.f32.mrf.mxu0
        %2134 = vmatprep.mubr.bf16.mxu0 0
        %2135 = vmatmul.mubr.bf16.gmra.mxu0 %v1688
        %v2136 = vpop.f32.mrf.mxu0
        %v2137 = vadd.f32 0.0, %v2136
        %v2138 = vpop.f32.mrf.mxu0
        %v2139 = vpop.f32.mrf.mxu0
        %v2140 = vadd.f32 0.0, %v2139
        %v2141 = vpop.f32.mrf.mxu0
        %2142 = vmatprep.mubr.bf16.mxu0 0
        %2143 = vmatmul.mubr.bf16.gmra.mxu0 %v1690
        %v2144 = vpop.f32.mrf.mxu0
        %v2145 = vadd.f32 0.0, %v2144
        %v2146 = vpop.f32.mrf.mxu0
        %v2147 = vpop.f32.mrf.mxu0
        %v2148 = vadd.f32 0.0, %v2147
        %v2149 = vpop.f32.mrf.mxu0
        %2150 = vmatprep.mubr.bf16.mxu0 0
        %2151 = vmatmul.mubr.bf16.gmra.mxu0 %v1692
        %v2152 = vpop.f32.mrf.mxu0
        %v2153 = vadd.f32 0.0, %v2152
        %v2154 = vpop.f32.mrf.mxu0
        %v2155 = vpop.f32.mrf.mxu0
        %v2156 = vadd.f32 0.0, %v2155
        %v2157 = vpop.f32.mrf.mxu0
        %2158 = vmatprep.mubr.bf16.mxu0 0
        %2159 = vmatmul.mubr.bf16.gmra.mxu0 %v1694
        %v2160 = vpop.f32.mrf.mxu0
        %v2161 = vadd.f32 0.0, %v2160
        %v2162 = vpop.f32.mrf.mxu0
        %v2163 = vpop.f32.mrf.mxu0
        %v2164 = vadd.f32 0.0, %v2163
        %v2165 = vpop.f32.mrf.mxu0
        %2166 = vmatprep.mubr.bf16.mxu0 0
        %2167 = vmatmul.mubr.bf16.gmra.mxu0 %v1696
        %v2168 = vpop.f32.mrf.mxu0
        %v2169 = vadd.f32 0.0, %v2168
        %v2170 = vpop.f32.mrf.mxu0
        %v2171 = vpop.f32.mrf.mxu0
        %v2172 = vadd.f32 0.0, %v2171
        %v2173 = vpop.f32.mrf.mxu0
        %2174 = vmatprep.mubr.bf16.mxu0 0
        %2175 = vmatmul.mubr.bf16.gmra.mxu0 %v1698
        %v2176 = vpop.f32.mrf.mxu0
        %v2177 = vadd.f32 0.0, %v2176
        %v2178 = vpop.f32.mrf.mxu0
        %v2179 = vpop.f32.mrf.mxu0
        %v2180 = vadd.f32 0.0, %v2179
        %v2181 = vpop.f32.mrf.mxu0
        %2182 = vmatprep.mubr.bf16.mxu0 0
        %2183 = vmatmul.mubr.bf16.gmra.mxu0 %v1700
        %v2184 = vpop.f32.mrf.mxu0
        %v2185 = vadd.f32 0.0, %v2184
        %v2186 = vpop.f32.mrf.mxu0
        %v2187 = vpop.f32.mrf.mxu0
        %v2188 = vadd.f32 0.0, %v2187
        %v2189 = vpop.f32.mrf.mxu0
        %2190 = vmatprep.mubr.bf16.mxu0 0
        %2191 = vmatmul.mubr.bf16.gmra.mxu0 %v1702
        %v2192 = vpop.f32.mrf.mxu0
        %v2193 = vadd.f32 0.0, %v2192
        %v2194 = vpop.f32.mrf.mxu0
        %v2195 = vpop.f32.mrf.mxu0
        %v2196 = vadd.f32 0.0, %v2195
        %v2197 = vpop.f32.mrf.mxu0
        %2198 = vmatprep.mubr.bf16.mxu0 0
        %2199 = vmatmul.mubr.bf16.gmra.mxu0 %v1704
        %v2200 = vpop.f32.mrf.mxu0
        %v2201 = vadd.f32 0.0, %v2200
        %v2202 = vpop.f32.mrf.mxu0
        %v2203 = vpop.f32.mrf.mxu0
        %v2204 = vadd.f32 0.0, %v2203
        %v2205 = vpop.f32.mrf.mxu0
        %2206 = vmatprep.mubr.bf16.mxu0 0
        %2207 = vmatmul.mubr.bf16.gmra.mxu0 %v1877
        %v2208 = vpop.f32.mrf.mxu0
        %v2209 = vadd.f32 0.0, %v2208
        %v2210 = vpop.f32.mrf.mxu0
        %v2211 = vpop.f32.mrf.mxu0
        %v2212 = vadd.f32 0.0, %v2211
        %v2213 = vpop.f32.mrf.mxu0
        %2214 = vdwg.mxu0
        %v2215 = vadd.f32 %v1917, %v2089
        %v2216 = vadd.f32 %v1920, %v2092
        %v2217 = vadd.f32 %v1925, %v2097
        %v2218 = vadd.f32 %v1928, %v2100
        %v2219 = vadd.f32 %v1933, %v2105
        %v2220 = vadd.f32 %v1936, %v2108
        %v2221 = vadd.f32 %v1941, %v2113
        %v2222 = vadd.f32 %v1944, %v2116
        %v2223 = vadd.f32 %v1949, %v2121
        %v2224 = vadd.f32 %v1952, %v2124
        %v2225 = vadd.f32 %v1957, %v2129
        %v2226 = vadd.f32 %v1960, %v2132
        %v2227 = vadd.f32 %v1965, %v2137
        %v2228 = vadd.f32 %v1968, %v2140
        %v2229 = vadd.f32 %v1973, %v2145
        %v2230 = vadd.f32 %v1976, %v2148
        %v2231 = vadd.f32 %v1981, %v2153
        %v2232 = vadd.f32 %v1984, %v2156
        %v2233 = vadd.f32 %v1989, %v2161
        %v2234 = vadd.f32 %v1992, %v2164
        %v2235 = vadd.f32 %v1997, %v2169
        %v2236 = vadd.f32 %v2000, %v2172
        %v2237 = vadd.f32 %v2005, %v2177
        %v2238 = vadd.f32 %v2008, %v2180
        %v2239 = vadd.f32 %v2013, %v2185
        %v2240 = vadd.f32 %v2016, %v2188
        %v2241 = vadd.f32 %v2021, %v2193
        %v2242 = vadd.f32 %v2024, %v2196
        %v2243 = vadd.f32 %v2029, %v2201
        %v2244 = vadd.f32 %v2032, %v2204
        %v2245 = vadd.f32 %v2037, %v2209
        %v2246 = vadd.f32 %v2040, %v2212
        %v2247 = vld [vmem:[%s6] sm:$0x1]
        %v2249 = vlaneseq
        %v2250 = vshrl.u32 %v2249, 7
        %v2251 = vsub.s32 0, %v2250
        %v2252 = vrot.slane %v2247, %v2251
        %v2254 = vadd.f32 %v2215, %v2252
        %v2255 = vadd.f32 %v2216, %v2252
        %v2256 = vadd.f32 %v2217, %v2252
        %v2257 = vadd.f32 %v2218, %v2252
        %v2258 = vadd.f32 %v2219, %v2252
        %v2259 = vadd.f32 %v2220, %v2252
        %v2260 = vadd.f32 %v2221, %v2252
        %v2261 = vadd.f32 %v2222, %v2252
        %v2262 = vadd.f32 %v2223, %v2252
        %v2263 = vadd.f32 %v2224, %v2252
        %v2264 = vadd.f32 %v2225, %v2252
        %v2265 = vadd.f32 %v2226, %v2252
        %v2266 = vadd.f32 %v2227, %v2252
        %v2267 = vadd.f32 %v2228, %v2252
        %v2268 = vadd.f32 %v2229, %v2252
        %v2269 = vadd.f32 %v2230, %v2252
        %v2270 = vadd.f32 %v2231, %v2252
        %v2271 = vadd.f32 %v2232, %v2252
        %v2272 = vadd.f32 %v2233, %v2252
        %v2273 = vadd.f32 %v2234, %v2252
        %v2274 = vadd.f32 %v2235, %v2252
        %v2275 = vadd.f32 %v2236, %v2252
        %v2276 = vadd.f32 %v2237, %v2252
        %v2277 = vadd.f32 %v2238, %v2252
        %v2278 = vadd.f32 %v2239, %v2252
        %v2279 = vadd.f32 %v2240, %v2252
        %v2280 = vadd.f32 %v2241, %v2252
        %v2281 = vadd.f32 %v2242, %v2252
        %v2282 = vadd.f32 %v2243, %v2252
        %v2283 = vadd.f32 %v2244, %v2252
        %v2284 = vadd.f32 %v2245, %v2252
        %v2285 = vadd.f32 %v2246, %v2252
        %v2286 = vmax.f32 %v2254, 0.0
        %v2287 = vmax.f32 %v2255, 0.0
        %v2288 = vmax.f32 %v2256, 0.0
        %v2289 = vmax.f32 %v2257, 0.0
        %v2290 = vmax.f32 %v2258, 0.0
        %v2291 = vmax.f32 %v2259, 0.0
        %v2292 = vmax.f32 %v2260, 0.0
        %v2293 = vmax.f32 %v2261, 0.0
        %v2294 = vmax.f32 %v2262, 0.0
        %v2295 = vmax.f32 %v2263, 0.0
        %v2296 = vmax.f32 %v2264, 0.0
        %v2297 = vmax.f32 %v2265, 0.0
        %v2298 = vmax.f32 %v2266, 0.0
        %v2299 = vmax.f32 %v2267, 0.0
        %v2300 = vmax.f32 %v2268, 0.0
        %v2301 = vmax.f32 %v2269, 0.0
        %v2302 = vmax.f32 %v2270, 0.0
        %v2303 = vmax.f32 %v2271, 0.0
        %v2304 = vmax.f32 %v2272, 0.0
        %v2305 = vmax.f32 %v2273, 0.0
        %v2306 = vmax.f32 %v2274, 0.0
        %v2307 = vmax.f32 %v2275, 0.0
        %v2308 = vmax.f32 %v2276, 0.0
        %v2309 = vmax.f32 %v2277, 0.0
        %v2310 = vmax.f32 %v2278, 0.0
        %v2311 = vmax.f32 %v2279, 0.0
        %v2312 = vmax.f32 %v2280, 0.0
        %v2313 = vmax.f32 %v2281, 0.0
        %v2314 = vmax.f32 %v2282, 0.0
        %v2315 = vmax.f32 %v2283, 0.0
        %v2316 = vmax.f32 %v2284, 0.0
        %v2317 = vmax.f32 %v2285, 0.0
        %v2318 = vld [vmem:[%s7] sm:$0x3]
        %v2319 = vld [vmem:[%s8] sm:$0x1]
        %v2321 = vlaneseq
        %v2322 = vshrl.u32 %v2321, 7
        %v2323 = vsub.s32 0, %v2322
        %v2324 = vrot.slane %v2319, %v2323
        %v2327 = vsel %vm664, %v2318, 0
        %2329 = vmatprep.subr.bf16.mxu0 0
        %2330 = vmatpush1.bf16.msra.mxu0 0
        %2331 = vmatprep.subr.bf16.mxu0 0
        %2332 = vmatpush1.bf16.msra.mxu0 0
        %2333 = vmatprep.subr.bf16.mxu0 0
        %2334 = vmatpush1.bf16.msra.mxu0 0
        %2335 = vmatprep.subr.bf16.mxu0 0
        %2336 = vmatpush1.bf16.msra.mxu0 0
        %2337 = vmatprep.subr.bf16.mxu0 0
        %2338 = vmatpush1.bf16.msra.mxu0 0
        %2339 = vmatprep.subr.bf16.mxu0 0
        %2340 = vmatpush1.bf16.msra.mxu0 0
        %2341 = vmatprep.subr.bf16.mxu0 0
        %2342 = vmatpush1.bf16.msra.mxu0 0
        %2343 = vmatprep.subr.bf16.mxu0 0
        %2344 = vmatpush1.bf16.msra.mxu0 %v2327
        %2345 = vmatprep.subr.bf16.mxu0 0
        %2346 = vmatpush2.bf16.msra.mxu0 0
        %2347 = vmatprep.subr.bf16.mxu0 0
        %2348 = vmatpush2.bf16.msra.mxu0 0
        %2349 = vmatprep.subr.bf16.mxu0 0
        %2350 = vmatpush2.bf16.msra.mxu0 0
        %2351 = vmatprep.subr.bf16.mxu0 0
        %2352 = vmatpush2.bf16.msra.mxu0 0
        %2353 = vmatprep.subr.bf16.mxu0 0
        %2354 = vmatpush2.bf16.msra.mxu0 0
        %2355 = vmatprep.subr.bf16.mxu0 0
        %2356 = vmatpush2.bf16.msra.mxu0 0
        %2357 = vmatprep.subr.bf16.mxu0 0
        %2358 = vmatpush2.bf16.msra.mxu0 0
        %2359 = vmatprep.subr.bf16.mxu0 0
        %2360 = vmatpush2.bf16.msra.mxu0 0
        %2361 = vmatprep.mubr.bf16.mxu0 0
        %2362 = vmatmul.mubr.bf16.gmra.mxu0 %v617
        %v2363 = vpop.f32.mrf.mxu0
        %v2364 = vadd.f32 %v2324, %v2363
        %v2365 = vpop.f32.mrf.mxu0
        %v2366 = vpop.f32.mrf.mxu0
        %v2367 = vadd.f32 %v2324, %v2366
        %v2368 = vpop.f32.mrf.mxu0
        %2369 = vmatprep.mubr.bf16.mxu0 0
        %2370 = vmatmul.mubr.bf16.gmra.mxu0 %v620
        %v2371 = vpop.f32.mrf.mxu0
        %v2372 = vadd.f32 %v2324, %v2371
        %v2373 = vpop.f32.mrf.mxu0
        %v2374 = vpop.f32.mrf.mxu0
        %v2375 = vadd.f32 %v2324, %v2374
        %v2376 = vpop.f32.mrf.mxu0
        %2377 = vmatprep.mubr.bf16.mxu0 0
        %2378 = vmatmul.mubr.bf16.gmra.mxu0 %v623
        %v2379 = vpop.f32.mrf.mxu0
        %v2380 = vadd.f32 %v2324, %v2379
        %v2381 = vpop.f32.mrf.mxu0
        %v2382 = vpop.f32.mrf.mxu0
        %v2383 = vadd.f32 %v2324, %v2382
        %v2384 = vpop.f32.mrf.mxu0
        %2385 = vmatprep.mubr.bf16.mxu0 0
        %2386 = vmatmul.mubr.bf16.gmra.mxu0 %v626
        %v2387 = vpop.f32.mrf.mxu0
        %v2388 = vadd.f32 %v2324, %v2387
        %v2389 = vpop.f32.mrf.mxu0
        %v2390 = vpop.f32.mrf.mxu0
        %v2391 = vadd.f32 %v2324, %v2390
        %v2392 = vpop.f32.mrf.mxu0
        %2393 = vmatprep.mubr.bf16.mxu0 0
        %2394 = vmatmul.mubr.bf16.gmra.mxu0 %v629
        %v2395 = vpop.f32.mrf.mxu0
        %v2396 = vadd.f32 %v2324, %v2395
        %v2397 = vpop.f32.mrf.mxu0
        %v2398 = vpop.f32.mrf.mxu0
        %v2399 = vadd.f32 %v2324, %v2398
        %v2400 = vpop.f32.mrf.mxu0
        %2401 = vmatprep.mubr.bf16.mxu0 0
        %2402 = vmatmul.mubr.bf16.gmra.mxu0 %v632
        %v2403 = vpop.f32.mrf.mxu0
        %v2404 = vadd.f32 %v2324, %v2403
        %v2405 = vpop.f32.mrf.mxu0
        %v2406 = vpop.f32.mrf.mxu0
        %v2407 = vadd.f32 %v2324, %v2406
        %v2408 = vpop.f32.mrf.mxu0
        %2409 = vmatprep.mubr.bf16.mxu0 0
        %2410 = vmatmul.mubr.bf16.gmra.mxu0 %v635
        %v2411 = vpop.f32.mrf.mxu0
        %v2412 = vadd.f32 %v2324, %v2411
        %v2413 = vpop.f32.mrf.mxu0
        %v2414 = vpop.f32.mrf.mxu0
        %v2415 = vadd.f32 %v2324, %v2414
        %v2416 = vpop.f32.mrf.mxu0
        %2417 = vmatprep.mubr.bf16.mxu0 0
        %2418 = vmatmul.mubr.bf16.gmra.mxu0 %v638
        %v2419 = vpop.f32.mrf.mxu0
        %v2420 = vadd.f32 %v2324, %v2419
        %v2421 = vpop.f32.mrf.mxu0
        %v2422 = vpop.f32.mrf.mxu0
        %v2423 = vadd.f32 %v2324, %v2422
        %v2424 = vpop.f32.mrf.mxu0
        %2425 = vmatprep.mubr.bf16.mxu0 0
        %2426 = vmatmul.mubr.bf16.gmra.mxu0 %v641
        %v2427 = vpop.f32.mrf.mxu0
        %v2428 = vadd.f32 %v2324, %v2427
        %v2429 = vpop.f32.mrf.mxu0
        %v2430 = vpop.f32.mrf.mxu0
        %v2431 = vadd.f32 %v2324, %v2430
        %v2432 = vpop.f32.mrf.mxu0
        %2433 = vmatprep.mubr.bf16.mxu0 0
        %2434 = vmatmul.mubr.bf16.gmra.mxu0 %v644
        %v2435 = vpop.f32.mrf.mxu0
        %v2436 = vadd.f32 %v2324, %v2435
        %v2437 = vpop.f32.mrf.mxu0
        %v2438 = vpop.f32.mrf.mxu0
        %v2439 = vadd.f32 %v2324, %v2438
        %v2440 = vpop.f32.mrf.mxu0
        %2441 = vmatprep.mubr.bf16.mxu0 0
        %2442 = vmatmul.mubr.bf16.gmra.mxu0 %v647
        %v2443 = vpop.f32.mrf.mxu0
        %v2444 = vadd.f32 %v2324, %v2443
        %v2445 = vpop.f32.mrf.mxu0
        %v2446 = vpop.f32.mrf.mxu0
        %v2447 = vadd.f32 %v2324, %v2446
        %v2448 = vpop.f32.mrf.mxu0
        %2449 = vmatprep.mubr.bf16.mxu0 0
        %2450 = vmatmul.mubr.bf16.gmra.mxu0 %v650
        %v2451 = vpop.f32.mrf.mxu0
        %v2452 = vadd.f32 %v2324, %v2451
        %v2453 = vpop.f32.mrf.mxu0
        %v2454 = vpop.f32.mrf.mxu0
        %v2455 = vadd.f32 %v2324, %v2454
        %v2456 = vpop.f32.mrf.mxu0
        %2457 = vmatprep.mubr.bf16.mxu0 0
        %2458 = vmatmul.mubr.bf16.gmra.mxu0 %v653
        %v2459 = vpop.f32.mrf.mxu0
        %v2460 = vadd.f32 %v2324, %v2459
        %v2461 = vpop.f32.mrf.mxu0
        %v2462 = vpop.f32.mrf.mxu0
        %v2463 = vadd.f32 %v2324, %v2462
        %v2464 = vpop.f32.mrf.mxu0
        %2465 = vmatprep.mubr.bf16.mxu0 0
        %2466 = vmatmul.mubr.bf16.gmra.mxu0 %v656
        %v2467 = vpop.f32.mrf.mxu0
        %v2468 = vadd.f32 %v2324, %v2467
        %v2469 = vpop.f32.mrf.mxu0
        %v2470 = vpop.f32.mrf.mxu0
        %v2471 = vadd.f32 %v2324, %v2470
        %v2472 = vpop.f32.mrf.mxu0
        %2473 = vmatprep.mubr.bf16.mxu0 0
        %2474 = vmatmul.mubr.bf16.gmra.mxu0 %v659
        %v2475 = vpop.f32.mrf.mxu0
        %v2476 = vadd.f32 %v2324, %v2475
        %v2477 = vpop.f32.mrf.mxu0
        %v2478 = vpop.f32.mrf.mxu0
        %v2479 = vadd.f32 %v2324, %v2478
        %v2480 = vpop.f32.mrf.mxu0
        %2481 = vmatprep.mubr.bf16.mxu0 0
        %2482 = vmatmul.mubr.bf16.gmra.mxu0 %v662
        %v2483 = vpop.f32.mrf.mxu0
        %v2484 = vadd.f32 %v2324, %v2483
        %v2485 = vpop.f32.mrf.mxu0
        %v2486 = vpop.f32.mrf.mxu0
        %v2487 = vadd.f32 %v2324, %v2486
        %v2488 = vpop.f32.mrf.mxu0
        %2489 = vdwg.mxu0
        %v2490 = vmax.f32 %v2364, 0.0
        %v2491 = vmax.f32 %v2367, 0.0
        %v2492 = vmax.f32 %v2372, 0.0
        %v2493 = vmax.f32 %v2375, 0.0
        %v2494 = vmax.f32 %v2380, 0.0
        %v2495 = vmax.f32 %v2383, 0.0
        %v2496 = vmax.f32 %v2388, 0.0
        %v2497 = vmax.f32 %v2391, 0.0
        %v2498 = vmax.f32 %v2396, 0.0
        %v2499 = vmax.f32 %v2399, 0.0
        %v2500 = vmax.f32 %v2404, 0.0
        %v2501 = vmax.f32 %v2407, 0.0
        %v2502 = vmax.f32 %v2412, 0.0
        %v2503 = vmax.f32 %v2415, 0.0
        %v2504 = vmax.f32 %v2420, 0.0
        %v2505 = vmax.f32 %v2423, 0.0
        %v2506 = vmax.f32 %v2428, 0.0
        %v2507 = vmax.f32 %v2431, 0.0
        %v2508 = vmax.f32 %v2436, 0.0
        %v2509 = vmax.f32 %v2439, 0.0
        %v2510 = vmax.f32 %v2444, 0.0
        %v2511 = vmax.f32 %v2447, 0.0
        %v2512 = vmax.f32 %v2452, 0.0
        %v2513 = vmax.f32 %v2455, 0.0
        %v2514 = vmax.f32 %v2460, 0.0
        %v2515 = vmax.f32 %v2463, 0.0
        %v2516 = vmax.f32 %v2468, 0.0
        %v2517 = vmax.f32 %v2471, 0.0
        %v2518 = vmax.f32 %v2476, 0.0
        %v2519 = vmax.f32 %v2479, 0.0
        %v2520 = vmax.f32 %v2484, 0.0
        %v2521 = vmax.f32 %v2487, 0.0
        %v2522 = vpack.c.bf16 %v2491, %v2490
        %v2523 = vpack.c.bf16 %v2493, %v2492
        %v2524 = vpack.c.bf16 %v2495, %v2494
        %v2525 = vpack.c.bf16 %v2497, %v2496
        %v2526 = vpack.c.bf16 %v2499, %v2498
        %v2527 = vpack.c.bf16 %v2501, %v2500
        %v2528 = vpack.c.bf16 %v2503, %v2502
        %v2529 = vpack.c.bf16 %v2505, %v2504
        %v2530 = vpack.c.bf16 %v2507, %v2506
        %v2531 = vpack.c.bf16 %v2509, %v2508
        %v2532 = vpack.c.bf16 %v2511, %v2510
        %v2533 = vpack.c.bf16 %v2513, %v2512
        %v2534 = vpack.c.bf16 %v2515, %v2514
        %v2535 = vpack.c.bf16 %v2517, %v2516
        %v2536 = vpack.c.bf16 %v2519, %v2518
        %v2537 = vpack.c.bf16 %v2521, %v2520
        %v2539 = vshrl.u32 %v2522, 16
        %v2541 = vrot.slane %v2539, 7
        %v2542 = vshll.u32 %v2522, 16
        %v2544 = vor.u32 %v2541, %v2542
        %v2546 = vshrl.u32 %v2523, 16
        %v2548 = vrot.slane %v2546, 7
        %v2549 = vshll.u32 %v2523, 16
        %v2551 = vor.u32 %v2548, %v2549
        %v2553 = vshrl.u32 %v2524, 16
        %v2555 = vrot.slane %v2553, 7
        %v2556 = vshll.u32 %v2524, 16
        %v2558 = vor.u32 %v2555, %v2556
        %v2560 = vshrl.u32 %v2525, 16
        %v2562 = vrot.slane %v2560, 7
        %v2563 = vshll.u32 %v2525, 16
        %v2565 = vor.u32 %v2562, %v2563
        %v2567 = vshrl.u32 %v2526, 16
        %v2569 = vrot.slane %v2567, 7
        %v2570 = vshll.u32 %v2526, 16
        %v2572 = vor.u32 %v2569, %v2570
        %v2574 = vshrl.u32 %v2527, 16
        %v2576 = vrot.slane %v2574, 7
        %v2577 = vshll.u32 %v2527, 16
        %v2579 = vor.u32 %v2576, %v2577
        %v2581 = vshrl.u32 %v2528, 16
        %v2583 = vrot.slane %v2581, 7
        %v2584 = vshll.u32 %v2528, 16
        %v2586 = vor.u32 %v2583, %v2584
        %v2588 = vshrl.u32 %v2529, 16
        %v2590 = vrot.slane %v2588, 7
        %v2591 = vshll.u32 %v2529, 16
        %v2593 = vor.u32 %v2590, %v2591
        %v2595 = vshrl.u32 %v2530, 16
        %v2597 = vrot.slane %v2595, 7
        %v2598 = vshll.u32 %v2530, 16
        %v2600 = vor.u32 %v2597, %v2598
        %v2602 = vshrl.u32 %v2531, 16
        %v2604 = vrot.slane %v2602, 7
        %v2605 = vshll.u32 %v2531, 16
        %v2607 = vor.u32 %v2604, %v2605
        %v2609 = vshrl.u32 %v2532, 16
        %v2611 = vrot.slane %v2609, 7
        %v2612 = vshll.u32 %v2532, 16
        %v2614 = vor.u32 %v2611, %v2612
        %v2616 = vshrl.u32 %v2533, 16
        %v2618 = vrot.slane %v2616, 7
        %v2619 = vshll.u32 %v2533, 16
        %v2621 = vor.u32 %v2618, %v2619
        %v2623 = vshrl.u32 %v2534, 16
        %v2625 = vrot.slane %v2623, 7
        %v2626 = vshll.u32 %v2534, 16
        %v2628 = vor.u32 %v2625, %v2626
        %v2630 = vshrl.u32 %v2535, 16
        %v2632 = vrot.slane %v2630, 7
        %v2633 = vshll.u32 %v2535, 16
        %v2635 = vor.u32 %v2632, %v2633
        %v2637 = vshrl.u32 %v2536, 16
        %v2639 = vrot.slane %v2637, 7
        %v2640 = vshll.u32 %v2536, 16
        %v2642 = vor.u32 %v2639, %v2640
        %v2644 = vshrl.u32 %v2537, 16
        %v2646 = vrot.slane %v2644, 7
        %v2647 = vshll.u32 %v2537, 16
        %v2649 = vor.u32 %v2646, %v2647
        %v2682 = vsel %vm1227, 0, %v2544
        %v2683 = vsel %vm1227, 0, %v2551
        %v2684 = vsel %vm1227, 0, %v2558
        %v2685 = vsel %vm1227, 0, %v2565
        %v2686 = vsel %vm1227, 0, %v2572
        %v2687 = vsel %vm1227, 0, %v2579
        %v2688 = vsel %vm1227, 0, %v2586
        %v2689 = vsel %vm1227, 0, %v2593
        %v2690 = vsel %vm1227, 0, %v2600
        %v2691 = vsel %vm1227, 0, %v2607
        %v2692 = vsel %vm1227, 0, %v2614
        %v2693 = vsel %vm1227, 0, %v2621
        %v2694 = vsel %vm1227, 0, %v2628
        %v2695 = vsel %vm1227, 0, %v2635
        %v2696 = vsel %vm1227, 0, %v2642
        %v2697 = vsel %vm1227, 0, %v2649
        %v2698 = vsel %vm1227, %v2541, 0
        %v2699 = vsel %vm1227, %v2548, 0
        %v2700 = vsel %vm1227, %v2555, 0
        %v2701 = vsel %vm1227, %v2562, 0
        %v2702 = vsel %vm1227, %v2569, 0
        %v2703 = vsel %vm1227, %v2576, 0
        %v2704 = vsel %vm1227, %v2583, 0
        %v2705 = vsel %vm1227, %v2590, 0
        %v2706 = vsel %vm1227, %v2597, 0
        %v2707 = vsel %vm1227, %v2604, 0
        %v2708 = vsel %vm1227, %v2611, 0
        %v2709 = vsel %vm1227, %v2618, 0
        %v2710 = vsel %vm1227, %v2625, 0
        %v2711 = vsel %vm1227, %v2632, 0
        %v2712 = vsel %vm1227, %v2639, 0
        %v2713 = vsel %vm1227, %v2646, 0
        %v2715 = vshrl.u32 %v2682, 16
        %v2717 = vshll.u32 %v2682, 16
        %v2719 = vrot.slane %v2717, 1
        %v2720 = vor.u32 %v2715, %v2719
        %v2722 = vshll.u32 %v2698, 16
        %v2724 = vrot.slane %v2722, 1
        %v2725 = vsel %vm1260, %v2720, %v2724
        %v2727 = vshrl.u32 %v2683, 16
        %v2729 = vshll.u32 %v2683, 16
        %v2731 = vrot.slane %v2729, 1
        %v2732 = vor.u32 %v2727, %v2731
        %v2734 = vshll.u32 %v2699, 16
        %v2736 = vrot.slane %v2734, 1
        %v2737 = vsel %vm1260, %v2732, %v2736
        %v2739 = vshrl.u32 %v2684, 16
        %v2741 = vshll.u32 %v2684, 16
        %v2743 = vrot.slane %v2741, 1
        %v2744 = vor.u32 %v2739, %v2743
        %v2746 = vshll.u32 %v2700, 16
        %v2748 = vrot.slane %v2746, 1
        %v2749 = vsel %vm1260, %v2744, %v2748
        %v2751 = vshrl.u32 %v2685, 16
        %v2753 = vshll.u32 %v2685, 16
        %v2755 = vrot.slane %v2753, 1
        %v2756 = vor.u32 %v2751, %v2755
        %v2758 = vshll.u32 %v2701, 16
        %v2760 = vrot.slane %v2758, 1
        %v2761 = vsel %vm1260, %v2756, %v2760
        %v2763 = vshrl.u32 %v2686, 16
        %v2765 = vshll.u32 %v2686, 16
        %v2767 = vrot.slane %v2765, 1
        %v2768 = vor.u32 %v2763, %v2767
        %v2770 = vshll.u32 %v2702, 16
        %v2772 = vrot.slane %v2770, 1
        %v2773 = vsel %vm1260, %v2768, %v2772
        %v2775 = vshrl.u32 %v2687, 16
        %v2777 = vshll.u32 %v2687, 16
        %v2779 = vrot.slane %v2777, 1
        %v2780 = vor.u32 %v2775, %v2779
        %v2782 = vshll.u32 %v2703, 16
        %v2784 = vrot.slane %v2782, 1
        %v2785 = vsel %vm1260, %v2780, %v2784
        %v2787 = vshrl.u32 %v2688, 16
        %v2789 = vshll.u32 %v2688, 16
        %v2791 = vrot.slane %v2789, 1
        %v2792 = vor.u32 %v2787, %v2791
        %v2794 = vshll.u32 %v2704, 16
        %v2796 = vrot.slane %v2794, 1
        %v2797 = vsel %vm1260, %v2792, %v2796
        %v2799 = vshrl.u32 %v2689, 16
        %v2801 = vshll.u32 %v2689, 16
        %v2803 = vrot.slane %v2801, 1
        %v2804 = vor.u32 %v2799, %v2803
        %v2806 = vshll.u32 %v2705, 16
        %v2808 = vrot.slane %v2806, 1
        %v2809 = vsel %vm1260, %v2804, %v2808
        %v2811 = vshrl.u32 %v2690, 16
        %v2813 = vshll.u32 %v2690, 16
        %v2815 = vrot.slane %v2813, 1
        %v2816 = vor.u32 %v2811, %v2815
        %v2818 = vshll.u32 %v2706, 16
        %v2820 = vrot.slane %v2818, 1
        %v2821 = vsel %vm1260, %v2816, %v2820
        %v2823 = vshrl.u32 %v2691, 16
        %v2825 = vshll.u32 %v2691, 16
        %v2827 = vrot.slane %v2825, 1
        %v2828 = vor.u32 %v2823, %v2827
        %v2830 = vshll.u32 %v2707, 16
        %v2832 = vrot.slane %v2830, 1
        %v2833 = vsel %vm1260, %v2828, %v2832
        %v2835 = vshrl.u32 %v2692, 16
        %v2837 = vshll.u32 %v2692, 16
        %v2839 = vrot.slane %v2837, 1
        %v2840 = vor.u32 %v2835, %v2839
        %v2842 = vshll.u32 %v2708, 16
        %v2844 = vrot.slane %v2842, 1
        %v2845 = vsel %vm1260, %v2840, %v2844
        %v2847 = vshrl.u32 %v2693, 16
        %v2849 = vshll.u32 %v2693, 16
        %v2851 = vrot.slane %v2849, 1
        %v2852 = vor.u32 %v2847, %v2851
        %v2854 = vshll.u32 %v2709, 16
        %v2856 = vrot.slane %v2854, 1
        %v2857 = vsel %vm1260, %v2852, %v2856
        %v2859 = vshrl.u32 %v2694, 16
        %v2861 = vshll.u32 %v2694, 16
        %v2863 = vrot.slane %v2861, 1
        %v2864 = vor.u32 %v2859, %v2863
        %v2866 = vshll.u32 %v2710, 16
        %v2868 = vrot.slane %v2866, 1
        %v2869 = vsel %vm1260, %v2864, %v2868
        %v2871 = vshrl.u32 %v2695, 16
        %v2873 = vshll.u32 %v2695, 16
        %v2875 = vrot.slane %v2873, 1
        %v2876 = vor.u32 %v2871, %v2875
        %v2878 = vshll.u32 %v2711, 16
        %v2880 = vrot.slane %v2878, 1
        %v2881 = vsel %vm1260, %v2876, %v2880
        %v2883 = vshrl.u32 %v2696, 16
        %v2885 = vshll.u32 %v2696, 16
        %v2887 = vrot.slane %v2885, 1
        %v2888 = vor.u32 %v2883, %v2887
        %v2890 = vshll.u32 %v2712, 16
        %v2892 = vrot.slane %v2890, 1
        %v2893 = vsel %vm1260, %v2888, %v2892
        %v2895 = vshrl.u32 %v2697, 16
        %v2897 = vshll.u32 %v2697, 16
        %v2899 = vrot.slane %v2897, 1
        %v2900 = vor.u32 %v2895, %v2899
        %v2902 = vshll.u32 %v2713, 16
        %v2904 = vrot.slane %v2902, 1
        %v2905 = vsel %vm1260, %v2900, %v2904
        %2906 = vrot.lane.b32.xlu0 %v2725, 4
        %v2907 = vpop.permute.xlu0 %2906
        %2908 = vrot.lane.b32.xlu0 %v2737, 4
        %v2909 = vpop.permute.xlu0 %2908
        %2910 = vrot.lane.b32.xlu0 %v2749, 4
        %v2911 = vpop.permute.xlu0 %2910
        %2912 = vrot.lane.b32.xlu0 %v2761, 4
        %v2913 = vpop.permute.xlu0 %2912
        %2914 = vrot.lane.b32.xlu0 %v2773, 4
        %v2915 = vpop.permute.xlu0 %2914
        %2916 = vrot.lane.b32.xlu0 %v2785, 4
        %v2917 = vpop.permute.xlu0 %2916
        %2918 = vrot.lane.b32.xlu0 %v2797, 4
        %v2919 = vpop.permute.xlu0 %2918
        %2920 = vrot.lane.b32.xlu0 %v2809, 4
        %v2921 = vpop.permute.xlu0 %2920
        %2922 = vrot.lane.b32.xlu0 %v2821, 4
        %v2923 = vpop.permute.xlu0 %2922
        %2924 = vrot.lane.b32.xlu0 %v2833, 4
        %v2925 = vpop.permute.xlu0 %2924
        %2926 = vrot.lane.b32.xlu0 %v2845, 4
        %v2927 = vpop.permute.xlu0 %2926
        %2928 = vrot.lane.b32.xlu0 %v2857, 4
        %v2929 = vpop.permute.xlu0 %2928
        %2930 = vrot.lane.b32.xlu0 %v2869, 4
        %v2931 = vpop.permute.xlu0 %2930
        %2932 = vrot.lane.b32.xlu0 %v2881, 4
        %v2933 = vpop.permute.xlu0 %2932
        %2934 = vrot.lane.b32.xlu0 %v2893, 4
        %v2935 = vpop.permute.xlu0 %2934
        %2936 = vrot.lane.b32.xlu0 %v2905, 4
        %v2937 = vpop.permute.xlu0 %2936
        %v2970 = vrot.slane %v2682, 1
        %v2971 = vrot.slane %v2698, 1
        %v2972 = vsel %vm1517, %v2970, %v2971
        %v2973 = vrot.slane %v2683, 1
        %v2974 = vrot.slane %v2699, 1
        %v2975 = vsel %vm1517, %v2973, %v2974
        %v2976 = vrot.slane %v2684, 1
        %v2977 = vrot.slane %v2700, 1
        %v2978 = vsel %vm1517, %v2976, %v2977
        %v2979 = vrot.slane %v2685, 1
        %v2980 = vrot.slane %v2701, 1
        %v2981 = vsel %vm1517, %v2979, %v2980
        %v2982 = vrot.slane %v2686, 1
        %v2983 = vrot.slane %v2702, 1
        %v2984 = vsel %vm1517, %v2982, %v2983
        %v2985 = vrot.slane %v2687, 1
        %v2986 = vrot.slane %v2703, 1
        %v2987 = vsel %vm1517, %v2985, %v2986
        %v2988 = vrot.slane %v2688, 1
        %v2989 = vrot.slane %v2704, 1
        %v2990 = vsel %vm1517, %v2988, %v2989
        %v2991 = vrot.slane %v2689, 1
        %v2992 = vrot.slane %v2705, 1
        %v2993 = vsel %vm1517, %v2991, %v2992
        %v2994 = vrot.slane %v2690, 1
        %v2995 = vrot.slane %v2706, 1
        %v2996 = vsel %vm1517, %v2994, %v2995
        %v2997 = vrot.slane %v2691, 1
        %v2998 = vrot.slane %v2707, 1
        %v2999 = vsel %vm1517, %v2997, %v2998
        %v3000 = vrot.slane %v2692, 1
        %v3001 = vrot.slane %v2708, 1
        %v3002 = vsel %vm1517, %v3000, %v3001
        %v3003 = vrot.slane %v2693, 1
        %v3004 = vrot.slane %v2709, 1
        %v3005 = vsel %vm1517, %v3003, %v3004
        %v3006 = vrot.slane %v2694, 1
        %v3007 = vrot.slane %v2710, 1
        %v3008 = vsel %vm1517, %v3006, %v3007
        %v3009 = vrot.slane %v2695, 1
        %v3010 = vrot.slane %v2711, 1
        %v3011 = vsel %vm1517, %v3009, %v3010
        %v3012 = vrot.slane %v2696, 1
        %v3013 = vrot.slane %v2712, 1
        %v3014 = vsel %vm1517, %v3012, %v3013
        %v3015 = vrot.slane %v2697, 1
        %v3016 = vrot.slane %v2713, 1
        %v3017 = vsel %vm1517, %v3015, %v3016
        %3018 = vrot.lane.b32.xlu0 %v2972, 8
        %v3019 = vpop.permute.xlu0 %3018
        %3020 = vrot.lane.b32.xlu0 %v2975, 8
        %v3021 = vpop.permute.xlu0 %3020
        %3022 = vrot.lane.b32.xlu0 %v2978, 8
        %v3023 = vpop.permute.xlu0 %3022
        %3024 = vrot.lane.b32.xlu0 %v2981, 8
        %v3025 = vpop.permute.xlu0 %3024
        %3026 = vrot.lane.b32.xlu0 %v2984, 8
        %v3027 = vpop.permute.xlu0 %3026
        %3028 = vrot.lane.b32.xlu0 %v2987, 8
        %v3029 = vpop.permute.xlu0 %3028
        %3030 = vrot.lane.b32.xlu0 %v2990, 8
        %v3031 = vpop.permute.xlu0 %3030
        %3032 = vrot.lane.b32.xlu0 %v2993, 8
        %v3033 = vpop.permute.xlu0 %3032
        %3034 = vrot.lane.b32.xlu0 %v2996, 8
        %v3035 = vpop.permute.xlu0 %3034
        %3036 = vrot.lane.b32.xlu0 %v2999, 8
        %v3037 = vpop.permute.xlu0 %3036
        %3038 = vrot.lane.b32.xlu0 %v3002, 8
        %v3039 = vpop.permute.xlu0 %3038
        %3040 = vrot.lane.b32.xlu0 %v3005, 8
        %v3041 = vpop.permute.xlu0 %3040
        %3042 = vrot.lane.b32.xlu0 %v3008, 8
        %v3043 = vpop.permute.xlu0 %3042
        %3044 = vrot.lane.b32.xlu0 %v3011, 8
        %v3045 = vpop.permute.xlu0 %3044
        %3046 = vrot.lane.b32.xlu0 %v3014, 8
        %v3047 = vpop.permute.xlu0 %3046
        %3048 = vrot.lane.b32.xlu0 %v3017, 8
        %v3049 = vpop.permute.xlu0 %3048
        %v3051 = vsel %vm615, %v2682, %v2907
        %v3053 = vsel %vm615, %v2683, %v2909
        %v3055 = vsel %vm615, %v2684, %v2911
        %v3057 = vsel %vm615, %v2685, %v2913
        %v3059 = vsel %vm615, %v2686, %v2915
        %v3061 = vsel %vm615, %v2687, %v2917
        %v3063 = vsel %vm615, %v2688, %v2919
        %v3065 = vsel %vm615, %v2689, %v2921
        %v3067 = vsel %vm615, %v2690, %v2923
        %v3069 = vsel %vm615, %v2691, %v2925
        %v3071 = vsel %vm615, %v2692, %v2927
        %v3073 = vsel %vm615, %v2693, %v2929
        %v3075 = vsel %vm615, %v2694, %v2931
        %v3077 = vsel %vm615, %v2695, %v2933
        %v3079 = vsel %vm615, %v2696, %v2935
        %v3081 = vsel %vm615, %v2697, %v2937
        %v3083 = vsel %vm1630, %v3051, %v3019
        %v3085 = vsel %vm1630, %v3053, %v3021
        %v3087 = vsel %vm1630, %v3055, %v3023
        %v3089 = vsel %vm1630, %v3057, %v3025
        %v3091 = vsel %vm1630, %v3059, %v3027
        %v3093 = vsel %vm1630, %v3061, %v3029
        %v3095 = vsel %vm1630, %v3063, %v3031
        %v3097 = vsel %vm1630, %v3065, %v3033
        %v3099 = vsel %vm1630, %v3067, %v3035
        %v3101 = vsel %vm1630, %v3069, %v3037
        %v3103 = vsel %vm1630, %v3071, %v3039
        %v3105 = vsel %vm1630, %v3073, %v3041
        %v3107 = vsel %vm1630, %v3075, %v3043
        %v3109 = vsel %vm1630, %v3077, %v3045
        %v3111 = vsel %vm1630, %v3079, %v3047
        %v3113 = vsel %vm1630, %v3081, %v3049
        %v3114 = vld [vmem:[%s9] sm:$0xf]
        %v3115 = vld [vmem:[%s9 + $0x4] sm:$0x3]
        %s3116 = scalar_lea.vmem %s9, 8
        %v3117 = vld [vmem:[%s3116] sm:$0xf]
        %v3118 = vld [vmem:[%s3116 + $0x4] sm:$0x3]
        %v3121 = vunpack.c.l.b16 %v3117
        %v3122 = vunpack.c.l.b16 %v3118
        %v3123 = vpack.c.b16 %v3122, %v3121
        %v3124 = vsel %vm1673, %v3083, 0
        %v3126 = vsel %vm1673, %v3085, 0
        %v3128 = vsel %vm1673, %v3087, 0
        %v3130 = vsel %vm1673, %v3089, 0
        %v3132 = vsel %vm1673, %v3091, 0
        %v3134 = vsel %vm1673, %v3093, 0
        %v3136 = vsel %vm1673, %v3095, 0
        %v3138 = vsel %vm1673, %v3097, 0
        %v3140 = vsel %vm1673, %v3099, 0
        %v3142 = vsel %vm1673, %v3101, 0
        %v3144 = vsel %vm1673, %v3103, 0
        %v3146 = vsel %vm1673, %v3105, 0
        %v3148 = vsel %vm1673, %v3107, 0
        %v3150 = vsel %vm1673, %v3109, 0
        %v3152 = vsel %vm1673, %v3111, 0
        %v3154 = vsel %vm1673, %v3113, 0
        %v3157 = vsel %vm1706, %v3123, 0
        %3159 = vmatprep.subr.bf16.mxu0 0
        %3160 = vmatpush1.bf16.msra.mxu0 0
        %3161 = vmatprep.subr.bf16.mxu0 0
        %3162 = vmatpush1.bf16.msra.mxu0 0
        %3163 = vmatprep.subr.bf16.mxu0 0
        %3164 = vmatpush1.bf16.msra.mxu0 0
        %3165 = vmatprep.subr.bf16.mxu0 0
        %3166 = vmatpush1.bf16.msra.mxu0 0
        %3167 = vmatprep.subr.bf16.mxu0 0
        %3168 = vmatpush1.bf16.msra.mxu0 0
        %3169 = vmatprep.subr.bf16.mxu0 0
        %3170 = vmatpush1.bf16.msra.mxu0 0
        %3171 = vmatprep.subr.bf16.mxu0 0
        %3172 = vmatpush1.bf16.msra.mxu0 0
        %3173 = vmatprep.subr.bf16.mxu0 0
        %3174 = vmatpush1.bf16.msra.mxu0 %v3157
        %3175 = vmatprep.subr.bf16.mxu0 0
        %3176 = vmatpush2.bf16.msra.mxu0 0
        %3177 = vmatprep.subr.bf16.mxu0 0
        %3178 = vmatpush2.bf16.msra.mxu0 0
        %3179 = vmatprep.subr.bf16.mxu0 0
        %3180 = vmatpush2.bf16.msra.mxu0 0
        %3181 = vmatprep.subr.bf16.mxu0 0
        %3182 = vmatpush2.bf16.msra.mxu0 0
        %3183 = vmatprep.subr.bf16.mxu0 0
        %3184 = vmatpush2.bf16.msra.mxu0 0
        %3185 = vmatprep.subr.bf16.mxu0 0
        %3186 = vmatpush2.bf16.msra.mxu0 0
        %3187 = vmatprep.subr.bf16.mxu0 0
        %3188 = vmatpush2.bf16.msra.mxu0 0
        %3189 = vmatprep.subr.bf16.mxu0 0
        %3190 = vmatpush2.bf16.msra.mxu0 0
        %3191 = vmatprep.mubr.bf16.mxu0 0
        %3192 = vmatmul.mubr.bf16.gmra.mxu0 %v3124
        %v3193 = vpop.f32.mrf.mxu0
        %v3194 = vadd.f32 0.0, %v3193
        %v3195 = vpop.f32.mrf.mxu0
        %v3196 = vpop.f32.mrf.mxu0
        %v3197 = vadd.f32 0.0, %v3196
        %v3198 = vpop.f32.mrf.mxu0
        %3199 = vmatprep.mubr.bf16.mxu0 0
        %3200 = vmatmul.mubr.bf16.gmra.mxu0 %v3126
        %v3201 = vpop.f32.mrf.mxu0
        %v3202 = vadd.f32 0.0, %v3201
        %v3203 = vpop.f32.mrf.mxu0
        %v3204 = vpop.f32.mrf.mxu0
        %v3205 = vadd.f32 0.0, %v3204
        %v3206 = vpop.f32.mrf.mxu0
        %3207 = vmatprep.mubr.bf16.mxu0 0
        %3208 = vmatmul.mubr.bf16.gmra.mxu0 %v3128
        %v3209 = vpop.f32.mrf.mxu0
        %v3210 = vadd.f32 0.0, %v3209
        %v3211 = vpop.f32.mrf.mxu0
        %v3212 = vpop.f32.mrf.mxu0
        %v3213 = vadd.f32 0.0, %v3212
        %v3214 = vpop.f32.mrf.mxu0
        %3215 = vmatprep.mubr.bf16.mxu0 0
        %3216 = vmatmul.mubr.bf16.gmra.mxu0 %v3130
        %v3217 = vpop.f32.mrf.mxu0
        %v3218 = vadd.f32 0.0, %v3217
        %v3219 = vpop.f32.mrf.mxu0
        %v3220 = vpop.f32.mrf.mxu0
        %v3221 = vadd.f32 0.0, %v3220
        %v3222 = vpop.f32.mrf.mxu0
        %3223 = vmatprep.mubr.bf16.mxu0 0
        %3224 = vmatmul.mubr.bf16.gmra.mxu0 %v3132
        %v3225 = vpop.f32.mrf.mxu0
        %v3226 = vadd.f32 0.0, %v3225
        %v3227 = vpop.f32.mrf.mxu0
        %v3228 = vpop.f32.mrf.mxu0
        %v3229 = vadd.f32 0.0, %v3228
        %v3230 = vpop.f32.mrf.mxu0
        %3231 = vmatprep.mubr.bf16.mxu0 0
        %3232 = vmatmul.mubr.bf16.gmra.mxu0 %v3134
        %v3233 = vpop.f32.mrf.mxu0
        %v3234 = vadd.f32 0.0, %v3233
        %v3235 = vpop.f32.mrf.mxu0
        %v3236 = vpop.f32.mrf.mxu0
        %v3237 = vadd.f32 0.0, %v3236
        %v3238 = vpop.f32.mrf.mxu0
        %3239 = vmatprep.mubr.bf16.mxu0 0
        %3240 = vmatmul.mubr.bf16.gmra.mxu0 %v3136
        %v3241 = vpop.f32.mrf.mxu0
        %v3242 = vadd.f32 0.0, %v3241
        %v3243 = vpop.f32.mrf.mxu0
        %v3244 = vpop.f32.mrf.mxu0
        %v3245 = vadd.f32 0.0, %v3244
        %v3246 = vpop.f32.mrf.mxu0
        %3247 = vmatprep.mubr.bf16.mxu0 0
        %3248 = vmatmul.mubr.bf16.gmra.mxu0 %v3138
        %v3249 = vpop.f32.mrf.mxu0
        %v3250 = vadd.f32 0.0, %v3249
        %v3251 = vpop.f32.mrf.mxu0
        %v3252 = vpop.f32.mrf.mxu0
        %v3253 = vadd.f32 0.0, %v3252
        %v3254 = vpop.f32.mrf.mxu0
        %3255 = vmatprep.mubr.bf16.mxu0 0
        %3256 = vmatmul.mubr.bf16.gmra.mxu0 %v3140
        %v3257 = vpop.f32.mrf.mxu0
        %v3258 = vadd.f32 0.0, %v3257
        %v3259 = vpop.f32.mrf.mxu0
        %v3260 = vpop.f32.mrf.mxu0
        %v3261 = vadd.f32 0.0, %v3260
        %v3262 = vpop.f32.mrf.mxu0
        %3263 = vmatprep.mubr.bf16.mxu0 0
        %3264 = vmatmul.mubr.bf16.gmra.mxu0 %v3142
        %v3265 = vpop.f32.mrf.mxu0
        %v3266 = vadd.f32 0.0, %v3265
        %v3267 = vpop.f32.mrf.mxu0
        %v3268 = vpop.f32.mrf.mxu0
        %v3269 = vadd.f32 0.0, %v3268
        %v3270 = vpop.f32.mrf.mxu0
        %3271 = vmatprep.mubr.bf16.mxu0 0
        %3272 = vmatmul.mubr.bf16.gmra.mxu0 %v3144
        %v3273 = vpop.f32.mrf.mxu0
        %v3274 = vadd.f32 0.0, %v3273
        %v3275 = vpop.f32.mrf.mxu0
        %v3276 = vpop.f32.mrf.mxu0
        %v3277 = vadd.f32 0.0, %v3276
        %v3278 = vpop.f32.mrf.mxu0
        %3279 = vmatprep.mubr.bf16.mxu0 0
        %3280 = vmatmul.mubr.bf16.gmra.mxu0 %v3146
        %v3281 = vpop.f32.mrf.mxu0
        %v3282 = vadd.f32 0.0, %v3281
        %v3283 = vpop.f32.mrf.mxu0
        %v3284 = vpop.f32.mrf.mxu0
        %v3285 = vadd.f32 0.0, %v3284
        %v3286 = vpop.f32.mrf.mxu0
        %3287 = vmatprep.mubr.bf16.mxu0 0
        %3288 = vmatmul.mubr.bf16.gmra.mxu0 %v3148
        %v3289 = vpop.f32.mrf.mxu0
        %v3290 = vadd.f32 0.0, %v3289
        %v3291 = vpop.f32.mrf.mxu0
        %v3292 = vpop.f32.mrf.mxu0
        %v3293 = vadd.f32 0.0, %v3292
        %v3294 = vpop.f32.mrf.mxu0
        %3295 = vmatprep.mubr.bf16.mxu0 0
        %3296 = vmatmul.mubr.bf16.gmra.mxu0 %v3150
        %v3297 = vpop.f32.mrf.mxu0
        %v3298 = vadd.f32 0.0, %v3297
        %v3299 = vpop.f32.mrf.mxu0
        %v3300 = vpop.f32.mrf.mxu0
        %v3301 = vadd.f32 0.0, %v3300
        %v3302 = vpop.f32.mrf.mxu0
        %3303 = vmatprep.mubr.bf16.mxu0 0
        %3304 = vmatmul.mubr.bf16.gmra.mxu0 %v3152
        %v3305 = vpop.f32.mrf.mxu0
        %v3306 = vadd.f32 0.0, %v3305
        %v3307 = vpop.f32.mrf.mxu0
        %v3308 = vpop.f32.mrf.mxu0
        %v3309 = vadd.f32 0.0, %v3308
        %v3310 = vpop.f32.mrf.mxu0
        %3311 = vmatprep.mubr.bf16.mxu0 0
        %3312 = vmatmul.mubr.bf16.gmra.mxu0 %v3154
        %v3313 = vpop.f32.mrf.mxu0
        %v3314 = vadd.f32 0.0, %v3313
        %v3315 = vpop.f32.mrf.mxu0
        %v3316 = vpop.f32.mrf.mxu0
        %v3317 = vadd.f32 0.0, %v3316
        %v3318 = vpop.f32.mrf.mxu0
        %3319 = vdwg.mxu0
        %v3322 = vunpack.c.l.b16 %v3114
        %v3323 = vunpack.c.l.b16 %v3115
        %v3324 = vpack.c.b16 %v3323, %v3322
        %v3326 = vsel %vm1706, %v3324, 0
        %3328 = vmatprep.subr.bf16.mxu0 0
        %3329 = vmatpush1.bf16.msra.mxu0 0
        %3330 = vmatprep.subr.bf16.mxu0 0
        %3331 = vmatpush1.bf16.msra.mxu0 0
        %3332 = vmatprep.subr.bf16.mxu0 0
        %3333 = vmatpush1.bf16.msra.mxu0 0
        %3334 = vmatprep.subr.bf16.mxu0 0
        %3335 = vmatpush1.bf16.msra.mxu0 0
        %3336 = vmatprep.subr.bf16.mxu0 0
        %3337 = vmatpush1.bf16.msra.mxu0 0
        %3338 = vmatprep.subr.bf16.mxu0 0
        %3339 = vmatpush1.bf16.msra.mxu0 0
        %3340 = vmatprep.subr.bf16.mxu0 0
        %3341 = vmatpush1.bf16.msra.mxu0 0
        %3342 = vmatprep.subr.bf16.mxu0 0
        %3343 = vmatpush1.bf16.msra.mxu0 %v3326
        %3344 = vmatprep.subr.bf16.mxu0 0
        %3345 = vmatpush2.bf16.msra.mxu0 0
        %3346 = vmatprep.subr.bf16.mxu0 0
        %3347 = vmatpush2.bf16.msra.mxu0 0
        %3348 = vmatprep.subr.bf16.mxu0 0
        %3349 = vmatpush2.bf16.msra.mxu0 0
        %3350 = vmatprep.subr.bf16.mxu0 0
        %3351 = vmatpush2.bf16.msra.mxu0 0
        %3352 = vmatprep.subr.bf16.mxu0 0
        %3353 = vmatpush2.bf16.msra.mxu0 0
        %3354 = vmatprep.subr.bf16.mxu0 0
        %3355 = vmatpush2.bf16.msra.mxu0 0
        %3356 = vmatprep.subr.bf16.mxu0 0
        %3357 = vmatpush2.bf16.msra.mxu0 0
        %3358 = vmatprep.subr.bf16.mxu0 0
        %3359 = vmatpush2.bf16.msra.mxu0 0
        %3360 = vmatprep.mubr.bf16.mxu0 0
        %3361 = vmatmul.mubr.bf16.gmra.mxu0 %v1877
        %v3362 = vpop.f32.mrf.mxu0
        %v3363 = vadd.f32 %v3194, %v3362
        %v3364 = vpop.f32.mrf.mxu0
        %v3365 = vpop.f32.mrf.mxu0
        %v3366 = vadd.f32 %v3197, %v3365
        %v3367 = vpop.f32.mrf.mxu0
        %3368 = vmatprep.mubr.bf16.mxu0 0
        %3369 = vmatmul.mubr.bf16.gmra.mxu0 %v3124
        %v3370 = vpop.f32.mrf.mxu0
        %v3371 = vadd.f32 %v3202, %v3370
        %v3372 = vpop.f32.mrf.mxu0
        %v3373 = vpop.f32.mrf.mxu0
        %v3374 = vadd.f32 %v3205, %v3373
        %v3375 = vpop.f32.mrf.mxu0
        %3376 = vmatprep.mubr.bf16.mxu0 0
        %3377 = vmatmul.mubr.bf16.gmra.mxu0 %v3126
        %v3378 = vpop.f32.mrf.mxu0
        %v3379 = vadd.f32 %v3210, %v3378
        %v3380 = vpop.f32.mrf.mxu0
        %v3381 = vpop.f32.mrf.mxu0
        %v3382 = vadd.f32 %v3213, %v3381
        %v3383 = vpop.f32.mrf.mxu0
        %3384 = vmatprep.mubr.bf16.mxu0 0
        %3385 = vmatmul.mubr.bf16.gmra.mxu0 %v3128
        %v3386 = vpop.f32.mrf.mxu0
        %v3387 = vadd.f32 %v3218, %v3386
        %v3388 = vpop.f32.mrf.mxu0
        %v3389 = vpop.f32.mrf.mxu0
        %v3390 = vadd.f32 %v3221, %v3389
        %v3391 = vpop.f32.mrf.mxu0
        %3392 = vmatprep.mubr.bf16.mxu0 0
        %3393 = vmatmul.mubr.bf16.gmra.mxu0 %v3130
        %v3394 = vpop.f32.mrf.mxu0
        %v3395 = vadd.f32 %v3226, %v3394
        %v3396 = vpop.f32.mrf.mxu0
        %v3397 = vpop.f32.mrf.mxu0
        %v3398 = vadd.f32 %v3229, %v3397
        %v3399 = vpop.f32.mrf.mxu0
        %3400 = vmatprep.mubr.bf16.mxu0 0
        %3401 = vmatmul.mubr.bf16.gmra.mxu0 %v3132
        %v3402 = vpop.f32.mrf.mxu0
        %v3403 = vadd.f32 %v3234, %v3402
        %v3404 = vpop.f32.mrf.mxu0
        %v3405 = vpop.f32.mrf.mxu0
        %v3406 = vadd.f32 %v3237, %v3405
        %v3407 = vpop.f32.mrf.mxu0
        %3408 = vmatprep.mubr.bf16.mxu0 0
        %3409 = vmatmul.mubr.bf16.gmra.mxu0 %v3134
        %v3410 = vpop.f32.mrf.mxu0
        %v3411 = vadd.f32 %v3242, %v3410
        %v3412 = vpop.f32.mrf.mxu0
        %v3413 = vpop.f32.mrf.mxu0
        %v3414 = vadd.f32 %v3245, %v3413
        %v3415 = vpop.f32.mrf.mxu0
        %3416 = vmatprep.mubr.bf16.mxu0 0
        %3417 = vmatmul.mubr.bf16.gmra.mxu0 %v3136
        %v3418 = vpop.f32.mrf.mxu0
        %v3419 = vadd.f32 %v3250, %v3418
        %v3420 = vpop.f32.mrf.mxu0
        %v3421 = vpop.f32.mrf.mxu0
        %v3422 = vadd.f32 %v3253, %v3421
        %v3423 = vpop.f32.mrf.mxu0
        %3424 = vmatprep.mubr.bf16.mxu0 0
        %3425 = vmatmul.mubr.bf16.gmra.mxu0 %v3138
        %v3426 = vpop.f32.mrf.mxu0
        %v3427 = vadd.f32 %v3258, %v3426
        %v3428 = vpop.f32.mrf.mxu0
        %v3429 = vpop.f32.mrf.mxu0
        %v3430 = vadd.f32 %v3261, %v3429
        %v3431 = vpop.f32.mrf.mxu0
        %3432 = vmatprep.mubr.bf16.mxu0 0
        %3433 = vmatmul.mubr.bf16.gmra.mxu0 %v3140
        %v3434 = vpop.f32.mrf.mxu0
        %v3435 = vadd.f32 %v3266, %v3434
        %v3436 = vpop.f32.mrf.mxu0
        %v3437 = vpop.f32.mrf.mxu0
        %v3438 = vadd.f32 %v3269, %v3437
        %v3439 = vpop.f32.mrf.mxu0
        %3440 = vmatprep.mubr.bf16.mxu0 0
        %3441 = vmatmul.mubr.bf16.gmra.mxu0 %v3142
        %v3442 = vpop.f32.mrf.mxu0
        %v3443 = vadd.f32 %v3274, %v3442
        %v3444 = vpop.f32.mrf.mxu0
        %v3445 = vpop.f32.mrf.mxu0
        %v3446 = vadd.f32 %v3277, %v3445
        %v3447 = vpop.f32.mrf.mxu0
        %3448 = vmatprep.mubr.bf16.mxu0 0
        %3449 = vmatmul.mubr.bf16.gmra.mxu0 %v3144
        %v3450 = vpop.f32.mrf.mxu0
        %v3451 = vadd.f32 %v3282, %v3450
        %v3452 = vpop.f32.mrf.mxu0
        %v3453 = vpop.f32.mrf.mxu0
        %v3454 = vadd.f32 %v3285, %v3453
        %v3455 = vpop.f32.mrf.mxu0
        %3456 = vmatprep.mubr.bf16.mxu0 0
        %3457 = vmatmul.mubr.bf16.gmra.mxu0 %v3146
        %v3458 = vpop.f32.mrf.mxu0
        %v3459 = vadd.f32 %v3290, %v3458
        %v3460 = vpop.f32.mrf.mxu0
        %v3461 = vpop.f32.mrf.mxu0
        %v3462 = vadd.f32 %v3293, %v3461
        %v3463 = vpop.f32.mrf.mxu0
        %3464 = vmatprep.mubr.bf16.mxu0 0
        %3465 = vmatmul.mubr.bf16.gmra.mxu0 %v3148
        %v3466 = vpop.f32.mrf.mxu0
        %v3467 = vadd.f32 %v3298, %v3466
        %v3468 = vpop.f32.mrf.mxu0
        %v3469 = vpop.f32.mrf.mxu0
        %v3470 = vadd.f32 %v3301, %v3469
        %v3471 = vpop.f32.mrf.mxu0
        %3472 = vmatprep.mubr.bf16.mxu0 0
        %3473 = vmatmul.mubr.bf16.gmra.mxu0 %v3150
        %v3474 = vpop.f32.mrf.mxu0
        %v3475 = vadd.f32 %v3306, %v3474
        %v3476 = vpop.f32.mrf.mxu0
        %v3477 = vpop.f32.mrf.mxu0
        %v3478 = vadd.f32 %v3309, %v3477
        %v3479 = vpop.f32.mrf.mxu0
        %3480 = vmatprep.mubr.bf16.mxu0 0
        %3481 = vmatmul.mubr.bf16.gmra.mxu0 %v3152
        %v3482 = vpop.f32.mrf.mxu0
        %v3483 = vadd.f32 %v3314, %v3482
        %v3484 = vpop.f32.mrf.mxu0
        %v3485 = vpop.f32.mrf.mxu0
        %v3486 = vadd.f32 %v3317, %v3485
        %v3487 = vpop.f32.mrf.mxu0
        %3488 = vdwg.mxu0
        %s3489 = scalar_lea.vmem %s9, 16
        %v3490 = vld [vmem:[%s3489] sm:$0xf]
        %v3491 = vld [vmem:[%s3489 + $0x4] sm:$0x3]
        %v3494 = vunpack.c.l.b16 %v3490
        %v3495 = vunpack.c.l.b16 %v3491
        %v3496 = vpack.c.b16 %v3495, %v3494
        %v3498 = vsel %vm1706, %v3496, 0
        %3500 = vmatprep.subr.bf16.mxu0 0
        %3501 = vmatpush1.bf16.msra.mxu0 0
        %3502 = vmatprep.subr.bf16.mxu0 0
        %3503 = vmatpush1.bf16.msra.mxu0 0
        %3504 = vmatprep.subr.bf16.mxu0 0
        %3505 = vmatpush1.bf16.msra.mxu0 0
        %3506 = vmatprep.subr.bf16.mxu0 0
        %3507 = vmatpush1.bf16.msra.mxu0 0
        %3508 = vmatprep.subr.bf16.mxu0 0
        %3509 = vmatpush1.bf16.msra.mxu0 0
        %3510 = vmatprep.subr.bf16.mxu0 0
        %3511 = vmatpush1.bf16.msra.mxu0 0
        %3512 = vmatprep.subr.bf16.mxu0 0
        %3513 = vmatpush1.bf16.msra.mxu0 0
        %3514 = vmatprep.subr.bf16.mxu0 0
        %3515 = vmatpush1.bf16.msra.mxu0 %v3498
        %3516 = vmatprep.subr.bf16.mxu0 0
        %3517 = vmatpush2.bf16.msra.mxu0 0
        %3518 = vmatprep.subr.bf16.mxu0 0
        %3519 = vmatpush2.bf16.msra.mxu0 0
        %3520 = vmatprep.subr.bf16.mxu0 0
        %3521 = vmatpush2.bf16.msra.mxu0 0
        %3522 = vmatprep.subr.bf16.mxu0 0
        %3523 = vmatpush2.bf16.msra.mxu0 0
        %3524 = vmatprep.subr.bf16.mxu0 0
        %3525 = vmatpush2.bf16.msra.mxu0 0
        %3526 = vmatprep.subr.bf16.mxu0 0
        %3527 = vmatpush2.bf16.msra.mxu0 0
        %3528 = vmatprep.subr.bf16.mxu0 0
        %3529 = vmatpush2.bf16.msra.mxu0 0
        %3530 = vmatprep.subr.bf16.mxu0 0
        %3531 = vmatpush2.bf16.msra.mxu0 0
        %3532 = vmatprep.mubr.bf16.mxu0 0
        %3533 = vmatmul.mubr.bf16.gmra.mxu0 %v3126
        %v3534 = vpop.f32.mrf.mxu0
        %v3535 = vadd.f32 0.0, %v3534
        %v3536 = vpop.f32.mrf.mxu0
        %v3537 = vpop.f32.mrf.mxu0
        %v3538 = vadd.f32 0.0, %v3537
        %v3539 = vpop.f32.mrf.mxu0
        %3540 = vmatprep.mubr.bf16.mxu0 0
        %3541 = vmatmul.mubr.bf16.gmra.mxu0 %v3128
        %v3542 = vpop.f32.mrf.mxu0
        %v3543 = vadd.f32 0.0, %v3542
        %v3544 = vpop.f32.mrf.mxu0
        %v3545 = vpop.f32.mrf.mxu0
        %v3546 = vadd.f32 0.0, %v3545
        %v3547 = vpop.f32.mrf.mxu0
        %3548 = vmatprep.mubr.bf16.mxu0 0
        %3549 = vmatmul.mubr.bf16.gmra.mxu0 %v3130
        %v3550 = vpop.f32.mrf.mxu0
        %v3551 = vadd.f32 0.0, %v3550
        %v3552 = vpop.f32.mrf.mxu0
        %v3553 = vpop.f32.mrf.mxu0
        %v3554 = vadd.f32 0.0, %v3553
        %v3555 = vpop.f32.mrf.mxu0
        %3556 = vmatprep.mubr.bf16.mxu0 0
        %3557 = vmatmul.mubr.bf16.gmra.mxu0 %v3132
        %v3558 = vpop.f32.mrf.mxu0
        %v3559 = vadd.f32 0.0, %v3558
        %v3560 = vpop.f32.mrf.mxu0
        %v3561 = vpop.f32.mrf.mxu0
        %v3562 = vadd.f32 0.0, %v3561
        %v3563 = vpop.f32.mrf.mxu0
        %3564 = vmatprep.mubr.bf16.mxu0 0
        %3565 = vmatmul.mubr.bf16.gmra.mxu0 %v3134
        %v3566 = vpop.f32.mrf.mxu0
        %v3567 = vadd.f32 0.0, %v3566
        %v3568 = vpop.f32.mrf.mxu0
        %v3569 = vpop.f32.mrf.mxu0
        %v3570 = vadd.f32 0.0, %v3569
        %v3571 = vpop.f32.mrf.mxu0
        %3572 = vmatprep.mubr.bf16.mxu0 0
        %3573 = vmatmul.mubr.bf16.gmra.mxu0 %v3136
        %v3574 = vpop.f32.mrf.mxu0
        %v3575 = vadd.f32 0.0, %v3574
        %v3576 = vpop.f32.mrf.mxu0
        %v3577 = vpop.f32.mrf.mxu0
        %v3578 = vadd.f32 0.0, %v3577
        %v3579 = vpop.f32.mrf.mxu0
        %3580 = vmatprep.mubr.bf16.mxu0 0
        %3581 = vmatmul.mubr.bf16.gmra.mxu0 %v3138
        %v3582 = vpop.f32.mrf.mxu0
        %v3583 = vadd.f32 0.0, %v3582
        %v3584 = vpop.f32.mrf.mxu0
        %v3585 = vpop.f32.mrf.mxu0
        %v3586 = vadd.f32 0.0, %v3585
        %v3587 = vpop.f32.mrf.mxu0
        %3588 = vmatprep.mubr.bf16.mxu0 0
        %3589 = vmatmul.mubr.bf16.gmra.mxu0 %v3140
        %v3590 = vpop.f32.mrf.mxu0
        %v3591 = vadd.f32 0.0, %v3590
        %v3592 = vpop.f32.mrf.mxu0
        %v3593 = vpop.f32.mrf.mxu0
        %v3594 = vadd.f32 0.0, %v3593
        %v3595 = vpop.f32.mrf.mxu0
        %3596 = vmatprep.mubr.bf16.mxu0 0
        %3597 = vmatmul.mubr.bf16.gmra.mxu0 %v3142
        %v3598 = vpop.f32.mrf.mxu0
        %v3599 = vadd.f32 0.0, %v3598
        %v3600 = vpop.f32.mrf.mxu0
        %v3601 = vpop.f32.mrf.mxu0
        %v3602 = vadd.f32 0.0, %v3601
        %v3603 = vpop.f32.mrf.mxu0
        %3604 = vmatprep.mubr.bf16.mxu0 0
        %3605 = vmatmul.mubr.bf16.gmra.mxu0 %v3144
        %v3606 = vpop.f32.mrf.mxu0
        %v3607 = vadd.f32 0.0, %v3606
        %v3608 = vpop.f32.mrf.mxu0
        %v3609 = vpop.f32.mrf.mxu0
        %v3610 = vadd.f32 0.0, %v3609
        %v3611 = vpop.f32.mrf.mxu0
        %3612 = vmatprep.mubr.bf16.mxu0 0
        %3613 = vmatmul.mubr.bf16.gmra.mxu0 %v3146
        %v3614 = vpop.f32.mrf.mxu0
        %v3615 = vadd.f32 0.0, %v3614
        %v3616 = vpop.f32.mrf.mxu0
        %v3617 = vpop.f32.mrf.mxu0
        %v3618 = vadd.f32 0.0, %v3617
        %v3619 = vpop.f32.mrf.mxu0
        %3620 = vmatprep.mubr.bf16.mxu0 0
        %3621 = vmatmul.mubr.bf16.gmra.mxu0 %v3148
        %v3622 = vpop.f32.mrf.mxu0
        %v3623 = vadd.f32 0.0, %v3622
        %v3624 = vpop.f32.mrf.mxu0
        %v3625 = vpop.f32.mrf.mxu0
        %v3626 = vadd.f32 0.0, %v3625
        %v3627 = vpop.f32.mrf.mxu0
        %3628 = vmatprep.mubr.bf16.mxu0 0
        %3629 = vmatmul.mubr.bf16.gmra.mxu0 %v3150
        %v3630 = vpop.f32.mrf.mxu0
        %v3631 = vadd.f32 0.0, %v3630
        %v3632 = vpop.f32.mrf.mxu0
        %v3633 = vpop.f32.mrf.mxu0
        %v3634 = vadd.f32 0.0, %v3633
        %v3635 = vpop.f32.mrf.mxu0
        %3636 = vmatprep.mubr.bf16.mxu0 0
        %3637 = vmatmul.mubr.bf16.gmra.mxu0 %v3152
        %v3638 = vpop.f32.mrf.mxu0
        %v3639 = vadd.f32 0.0, %v3638
        %v3640 = vpop.f32.mrf.mxu0
        %v3641 = vpop.f32.mrf.mxu0
        %v3642 = vadd.f32 0.0, %v3641
        %v3643 = vpop.f32.mrf.mxu0
        %3644 = vmatprep.mubr.bf16.mxu0 0
        %3645 = vmatmul.mubr.bf16.gmra.mxu0 %v3154
        %v3646 = vpop.f32.mrf.mxu0
        %v3647 = vadd.f32 0.0, %v3646
        %v3648 = vpop.f32.mrf.mxu0
        %v3649 = vpop.f32.mrf.mxu0
        %v3650 = vadd.f32 0.0, %v3649
        %v3651 = vpop.f32.mrf.mxu0
        %3652 = vmatprep.mubr.bf16.mxu0 0
        %3653 = vmatmul.mubr.bf16.gmra.mxu0 %v1877
        %v3654 = vpop.f32.mrf.mxu0
        %v3655 = vadd.f32 0.0, %v3654
        %v3656 = vpop.f32.mrf.mxu0
        %v3657 = vpop.f32.mrf.mxu0
        %v3658 = vadd.f32 0.0, %v3657
        %v3659 = vpop.f32.mrf.mxu0
        %3660 = vdwg.mxu0
        %v3661 = vadd.f32 %v3363, %v3535
        %v3662 = vadd.f32 %v3366, %v3538
        %v3663 = vadd.f32 %v3371, %v3543
        %v3664 = vadd.f32 %v3374, %v3546
        %v3665 = vadd.f32 %v3379, %v3551
        %v3666 = vadd.f32 %v3382, %v3554
        %v3667 = vadd.f32 %v3387, %v3559
        %v3668 = vadd.f32 %v3390, %v3562
        %v3669 = vadd.f32 %v3395, %v3567
        %v3670 = vadd.f32 %v3398, %v3570
        %v3671 = vadd.f32 %v3403, %v3575
        %v3672 = vadd.f32 %v3406, %v3578
        %v3673 = vadd.f32 %v3411, %v3583
        %v3674 = vadd.f32 %v3414, %v3586
        %v3675 = vadd.f32 %v3419, %v3591
        %v3676 = vadd.f32 %v3422, %v3594
        %v3677 = vadd.f32 %v3427, %v3599
        %v3678 = vadd.f32 %v3430, %v3602
        %v3679 = vadd.f32 %v3435, %v3607
        %v3680 = vadd.f32 %v3438, %v3610
        %v3681 = vadd.f32 %v3443, %v3615
        %v3682 = vadd.f32 %v3446, %v3618
        %v3683 = vadd.f32 %v3451, %v3623
        %v3684 = vadd.f32 %v3454, %v3626
        %v3685 = vadd.f32 %v3459, %v3631
        %v3686 = vadd.f32 %v3462, %v3634
        %v3687 = vadd.f32 %v3467, %v3639
        %v3688 = vadd.f32 %v3470, %v3642
        %v3689 = vadd.f32 %v3475, %v3647
        %v3690 = vadd.f32 %v3478, %v3650
        %v3691 = vadd.f32 %v3483, %v3655
        %v3692 = vadd.f32 %v3486, %v3658
        %v3693 = vld [vmem:[%s10] sm:$0x1]
        %v3695 = vlaneseq
        %v3696 = vshrl.u32 %v3695, 7
        %v3697 = vsub.s32 0, %v3696
        %v3698 = vrot.slane %v3693, %v3697
        %v3700 = vadd.f32 %v3661, %v3698
        %v3701 = vadd.f32 %v3662, %v3698
        %v3702 = vadd.f32 %v3663, %v3698
        %v3703 = vadd.f32 %v3664, %v3698
        %v3704 = vadd.f32 %v3665, %v3698
        %v3705 = vadd.f32 %v3666, %v3698
        %v3706 = vadd.f32 %v3667, %v3698
        %v3707 = vadd.f32 %v3668, %v3698
        %v3708 = vadd.f32 %v3669, %v3698
        %v3709 = vadd.f32 %v3670, %v3698
        %v3710 = vadd.f32 %v3671, %v3698
        %v3711 = vadd.f32 %v3672, %v3698
        %v3712 = vadd.f32 %v3673, %v3698
        %v3713 = vadd.f32 %v3674, %v3698
        %v3714 = vadd.f32 %v3675, %v3698
        %v3715 = vadd.f32 %v3676, %v3698
        %v3716 = vadd.f32 %v3677, %v3698
        %v3717 = vadd.f32 %v3678, %v3698
        %v3718 = vadd.f32 %v3679, %v3698
        %v3719 = vadd.f32 %v3680, %v3698
        %v3720 = vadd.f32 %v3681, %v3698
        %v3721 = vadd.f32 %v3682, %v3698
        %v3722 = vadd.f32 %v3683, %v3698
        %v3723 = vadd.f32 %v3684, %v3698
        %v3724 = vadd.f32 %v3685, %v3698
        %v3725 = vadd.f32 %v3686, %v3698
        %v3726 = vadd.f32 %v3687, %v3698
        %v3727 = vadd.f32 %v3688, %v3698
        %v3728 = vadd.f32 %v3689, %v3698
        %v3729 = vadd.f32 %v3690, %v3698
        %v3730 = vadd.f32 %v3691, %v3698
        %v3731 = vadd.f32 %v3692, %v3698
        %v3732 = vmax.f32 %v3700, 0.0
        %v3733 = vmax.f32 %v3701, 0.0
        %v3734 = vmax.f32 %v3702, 0.0
        %v3735 = vmax.f32 %v3703, 0.0
        %v3736 = vmax.f32 %v3704, 0.0
        %v3737 = vmax.f32 %v3705, 0.0
        %v3738 = vmax.f32 %v3706, 0.0
        %v3739 = vmax.f32 %v3707, 0.0
        %v3740 = vmax.f32 %v3708, 0.0
        %v3741 = vmax.f32 %v3709, 0.0
        %v3742 = vmax.f32 %v3710, 0.0
        %v3743 = vmax.f32 %v3711, 0.0
        %v3744 = vmax.f32 %v3712, 0.0
        %v3745 = vmax.f32 %v3713, 0.0
        %v3746 = vmax.f32 %v3714, 0.0
        %v3747 = vmax.f32 %v3715, 0.0
        %v3748 = vmax.f32 %v3716, 0.0
        %v3749 = vmax.f32 %v3717, 0.0
        %v3750 = vmax.f32 %v3718, 0.0
        %v3751 = vmax.f32 %v3719, 0.0
        %v3752 = vmax.f32 %v3720, 0.0
        %v3753 = vmax.f32 %v3721, 0.0
        %v3754 = vmax.f32 %v3722, 0.0
        %v3755 = vmax.f32 %v3723, 0.0
        %v3756 = vmax.f32 %v3724, 0.0
        %v3757 = vmax.f32 %v3725, 0.0
        %v3758 = vmax.f32 %v3726, 0.0
        %v3759 = vmax.f32 %v3727, 0.0
        %v3760 = vmax.f32 %v3728, 0.0
        %v3761 = vmax.f32 %v3729, 0.0
        %v3762 = vmax.f32 %v3730, 0.0
        %v3763 = vmax.f32 %v3731, 0.0
        %v3764 = vpack.c.bf16 %v3733, %v3732
        %v3765 = vpack.c.bf16 %v3735, %v3734
        %v3766 = vpack.c.bf16 %v3737, %v3736
        %v3767 = vpack.c.bf16 %v3739, %v3738
        %v3768 = vpack.c.bf16 %v3741, %v3740
        %v3769 = vpack.c.bf16 %v3743, %v3742
        %v3770 = vpack.c.bf16 %v3745, %v3744
        %v3771 = vpack.c.bf16 %v3747, %v3746
        %v3772 = vpack.c.bf16 %v3749, %v3748
        %v3773 = vpack.c.bf16 %v3751, %v3750
        %v3774 = vpack.c.bf16 %v3753, %v3752
        %v3775 = vpack.c.bf16 %v3755, %v3754
        %v3776 = vpack.c.bf16 %v3757, %v3756
        %v3777 = vpack.c.bf16 %v3759, %v3758
        %v3778 = vpack.c.bf16 %v3761, %v3760
        %v3779 = vpack.c.bf16 %v3763, %v3762
        %v3781 = vshrl.u32 %v3764, 16
        %v3783 = vrot.slane %v3781, 7
        %v3784 = vshll.u32 %v3764, 16
        %v3786 = vor.u32 %v3783, %v3784
        %v3788 = vshrl.u32 %v3765, 16
        %v3790 = vrot.slane %v3788, 7
        %v3791 = vshll.u32 %v3765, 16
        %v3793 = vor.u32 %v3790, %v3791
        %v3795 = vshrl.u32 %v3766, 16
        %v3797 = vrot.slane %v3795, 7
        %v3798 = vshll.u32 %v3766, 16
        %v3800 = vor.u32 %v3797, %v3798
        %v3802 = vshrl.u32 %v3767, 16
        %v3804 = vrot.slane %v3802, 7
        %v3805 = vshll.u32 %v3767, 16
        %v3807 = vor.u32 %v3804, %v3805
        %v3809 = vshrl.u32 %v3768, 16
        %v3811 = vrot.slane %v3809, 7
        %v3812 = vshll.u32 %v3768, 16
        %v3814 = vor.u32 %v3811, %v3812
        %v3816 = vshrl.u32 %v3769, 16
        %v3818 = vrot.slane %v3816, 7
        %v3819 = vshll.u32 %v3769, 16
        %v3821 = vor.u32 %v3818, %v3819
        %v3823 = vshrl.u32 %v3770, 16
        %v3825 = vrot.slane %v3823, 7
        %v3826 = vshll.u32 %v3770, 16
        %v3828 = vor.u32 %v3825, %v3826
        %v3830 = vshrl.u32 %v3771, 16
        %v3832 = vrot.slane %v3830, 7
        %v3833 = vshll.u32 %v3771, 16
        %v3835 = vor.u32 %v3832, %v3833
        %v3837 = vshrl.u32 %v3772, 16
        %v3839 = vrot.slane %v3837, 7
        %v3840 = vshll.u32 %v3772, 16
        %v3842 = vor.u32 %v3839, %v3840
        %v3844 = vshrl.u32 %v3773, 16
        %v3846 = vrot.slane %v3844, 7
        %v3847 = vshll.u32 %v3773, 16
        %v3849 = vor.u32 %v3846, %v3847
        %v3851 = vshrl.u32 %v3774, 16
        %v3853 = vrot.slane %v3851, 7
        %v3854 = vshll.u32 %v3774, 16
        %v3856 = vor.u32 %v3853, %v3854
        %v3858 = vshrl.u32 %v3775, 16
        %v3860 = vrot.slane %v3858, 7
        %v3861 = vshll.u32 %v3775, 16
        %v3863 = vor.u32 %v3860, %v3861
        %v3865 = vshrl.u32 %v3776, 16
        %v3867 = vrot.slane %v3865, 7
        %v3868 = vshll.u32 %v3776, 16
        %v3870 = vor.u32 %v3867, %v3868
        %v3872 = vshrl.u32 %v3777, 16
        %v3874 = vrot.slane %v3872, 7
        %v3875 = vshll.u32 %v3777, 16
        %v3877 = vor.u32 %v3874, %v3875
        %v3879 = vshrl.u32 %v3778, 16
        %v3881 = vrot.slane %v3879, 7
        %v3882 = vshll.u32 %v3778, 16
        %v3884 = vor.u32 %v3881, %v3882
        %v3886 = vshrl.u32 %v3779, 16
        %v3888 = vrot.slane %v3886, 7
        %v3889 = vshll.u32 %v3779, 16
        %v3891 = vor.u32 %v3888, %v3889
        %v3924 = vsel %vm1227, 0, %v3786
        %v3925 = vsel %vm1227, 0, %v3793
        %v3926 = vsel %vm1227, 0, %v3800
        %v3927 = vsel %vm1227, 0, %v3807
        %v3928 = vsel %vm1227, 0, %v3814
        %v3929 = vsel %vm1227, 0, %v3821
        %v3930 = vsel %vm1227, 0, %v3828
        %v3931 = vsel %vm1227, 0, %v3835
        %v3932 = vsel %vm1227, 0, %v3842
        %v3933 = vsel %vm1227, 0, %v3849
        %v3934 = vsel %vm1227, 0, %v3856
        %v3935 = vsel %vm1227, 0, %v3863
        %v3936 = vsel %vm1227, 0, %v3870
        %v3937 = vsel %vm1227, 0, %v3877
        %v3938 = vsel %vm1227, 0, %v3884
        %v3939 = vsel %vm1227, 0, %v3891
        %v3940 = vsel %vm1227, %v3783, 0
        %v3941 = vsel %vm1227, %v3790, 0
        %v3942 = vsel %vm1227, %v3797, 0
        %v3943 = vsel %vm1227, %v3804, 0
        %v3944 = vsel %vm1227, %v3811, 0
        %v3945 = vsel %vm1227, %v3818, 0
        %v3946 = vsel %vm1227, %v3825, 0
        %v3947 = vsel %vm1227, %v3832, 0
        %v3948 = vsel %vm1227, %v3839, 0
        %v3949 = vsel %vm1227, %v3846, 0
        %v3950 = vsel %vm1227, %v3853, 0
        %v3951 = vsel %vm1227, %v3860, 0
        %v3952 = vsel %vm1227, %v3867, 0
        %v3953 = vsel %vm1227, %v3874, 0
        %v3954 = vsel %vm1227, %v3881, 0
        %v3955 = vsel %vm1227, %v3888, 0
        %v3957 = vshrl.u32 %v3924, 16
        %v3959 = vshll.u32 %v3924, 16
        %v3961 = vrot.slane %v3959, 1
        %v3962 = vor.u32 %v3957, %v3961
        %v3964 = vshll.u32 %v3940, 16
        %v3966 = vrot.slane %v3964, 1
        %v3967 = vsel %vm1260, %v3962, %v3966
        %v3969 = vshrl.u32 %v3925, 16
        %v3971 = vshll.u32 %v3925, 16
        %v3973 = vrot.slane %v3971, 1
        %v3974 = vor.u32 %v3969, %v3973
        %v3976 = vshll.u32 %v3941, 16
        %v3978 = vrot.slane %v3976, 1
        %v3979 = vsel %vm1260, %v3974, %v3978
        %v3981 = vshrl.u32 %v3926, 16
        %v3983 = vshll.u32 %v3926, 16
        %v3985 = vrot.slane %v3983, 1
        %v3986 = vor.u32 %v3981, %v3985
        %v3988 = vshll.u32 %v3942, 16
        %v3990 = vrot.slane %v3988, 1
        %v3991 = vsel %vm1260, %v3986, %v3990
        %v3993 = vshrl.u32 %v3927, 16
        %v3995 = vshll.u32 %v3927, 16
        %v3997 = vrot.slane %v3995, 1
        %v3998 = vor.u32 %v3993, %v3997
        %v4000 = vshll.u32 %v3943, 16
        %v4002 = vrot.slane %v4000, 1
        %v4003 = vsel %vm1260, %v3998, %v4002
        %v4005 = vshrl.u32 %v3928, 16
        %v4007 = vshll.u32 %v3928, 16
        %v4009 = vrot.slane %v4007, 1
        %v4010 = vor.u32 %v4005, %v4009
        %v4012 = vshll.u32 %v3944, 16
        %v4014 = vrot.slane %v4012, 1
        %v4015 = vsel %vm1260, %v4010, %v4014
        %v4017 = vshrl.u32 %v3929, 16
        %v4019 = vshll.u32 %v3929, 16
        %v4021 = vrot.slane %v4019, 1
        %v4022 = vor.u32 %v4017, %v4021
        %v4024 = vshll.u32 %v3945, 16
        %v4026 = vrot.slane %v4024, 1
        %v4027 = vsel %vm1260, %v4022, %v4026
        %v4029 = vshrl.u32 %v3930, 16
        %v4031 = vshll.u32 %v3930, 16
        %v4033 = vrot.slane %v4031, 1
        %v4034 = vor.u32 %v4029, %v4033
        %v4036 = vshll.u32 %v3946, 16
        %v4038 = vrot.slane %v4036, 1
        %v4039 = vsel %vm1260, %v4034, %v4038
        %v4041 = vshrl.u32 %v3931, 16
        %v4043 = vshll.u32 %v3931, 16
        %v4045 = vrot.slane %v4043, 1
        %v4046 = vor.u32 %v4041, %v4045
        %v4048 = vshll.u32 %v3947, 16
        %v4050 = vrot.slane %v4048, 1
        %v4051 = vsel %vm1260, %v4046, %v4050
        %v4053 = vshrl.u32 %v3932, 16
        %v4055 = vshll.u32 %v3932, 16
        %v4057 = vrot.slane %v4055, 1
        %v4058 = vor.u32 %v4053, %v4057
        %v4060 = vshll.u32 %v3948, 16
        %v4062 = vrot.slane %v4060, 1
        %v4063 = vsel %vm1260, %v4058, %v4062
        %v4065 = vshrl.u32 %v3933, 16
        %v4067 = vshll.u32 %v3933, 16
        %v4069 = vrot.slane %v4067, 1
        %v4070 = vor.u32 %v4065, %v4069
        %v4072 = vshll.u32 %v3949, 16
        %v4074 = vrot.slane %v4072, 1
        %v4075 = vsel %vm1260, %v4070, %v4074
        %v4077 = vshrl.u32 %v3934, 16
        %v4079 = vshll.u32 %v3934, 16
        %v4081 = vrot.slane %v4079, 1
        %v4082 = vor.u32 %v4077, %v4081
        %v4084 = vshll.u32 %v3950, 16
        %v4086 = vrot.slane %v4084, 1
        %v4087 = vsel %vm1260, %v4082, %v4086
        %v4089 = vshrl.u32 %v3935, 16
        %v4091 = vshll.u32 %v3935, 16
        %v4093 = vrot.slane %v4091, 1
        %v4094 = vor.u32 %v4089, %v4093
        %v4096 = vshll.u32 %v3951, 16
        %v4098 = vrot.slane %v4096, 1
        %v4099 = vsel %vm1260, %v4094, %v4098
        %v4101 = vshrl.u32 %v3936, 16
        %v4103 = vshll.u32 %v3936, 16
        %v4105 = vrot.slane %v4103, 1
        %v4106 = vor.u32 %v4101, %v4105
        %v4108 = vshll.u32 %v3952, 16
        %v4110 = vrot.slane %v4108, 1
        %v4111 = vsel %vm1260, %v4106, %v4110
        %v4113 = vshrl.u32 %v3937, 16
        %v4115 = vshll.u32 %v3937, 16
        %v4117 = vrot.slane %v4115, 1
        %v4118 = vor.u32 %v4113, %v4117
        %v4120 = vshll.u32 %v3953, 16
        %v4122 = vrot.slane %v4120, 1
        %v4123 = vsel %vm1260, %v4118, %v4122
        %v4125 = vshrl.u32 %v3938, 16
        %v4127 = vshll.u32 %v3938, 16
        %v4129 = vrot.slane %v4127, 1
        %v4130 = vor.u32 %v4125, %v4129
        %v4132 = vshll.u32 %v3954, 16
        %v4134 = vrot.slane %v4132, 1
        %v4135 = vsel %vm1260, %v4130, %v4134
        %v4137 = vshrl.u32 %v3939, 16
        %v4139 = vshll.u32 %v3939, 16
        %v4141 = vrot.slane %v4139, 1
        %v4142 = vor.u32 %v4137, %v4141
        %v4144 = vshll.u32 %v3955, 16
        %v4146 = vrot.slane %v4144, 1
        %v4147 = vsel %vm1260, %v4142, %v4146
        %4148 = vrot.lane.b32.xlu0 %v3967, 8
        %v4149 = vpop.permute.xlu0 %4148
        %4150 = vrot.lane.b32.xlu0 %v3979, 8
        %v4151 = vpop.permute.xlu0 %4150
        %4152 = vrot.lane.b32.xlu0 %v3991, 8
        %v4153 = vpop.permute.xlu0 %4152
        %4154 = vrot.lane.b32.xlu0 %v4003, 8
        %v4155 = vpop.permute.xlu0 %4154
        %4156 = vrot.lane.b32.xlu0 %v4015, 8
        %v4157 = vpop.permute.xlu0 %4156
        %4158 = vrot.lane.b32.xlu0 %v4027, 8
        %v4159 = vpop.permute.xlu0 %4158
        %4160 = vrot.lane.b32.xlu0 %v4039, 8
        %v4161 = vpop.permute.xlu0 %4160
        %4162 = vrot.lane.b32.xlu0 %v4051, 8
        %v4163 = vpop.permute.xlu0 %4162
        %4164 = vrot.lane.b32.xlu0 %v4063, 8
        %v4165 = vpop.permute.xlu0 %4164
        %4166 = vrot.lane.b32.xlu0 %v4075, 8
        %v4167 = vpop.permute.xlu0 %4166
        %4168 = vrot.lane.b32.xlu0 %v4087, 8
        %v4169 = vpop.permute.xlu0 %4168
        %4170 = vrot.lane.b32.xlu0 %v4099, 8
        %v4171 = vpop.permute.xlu0 %4170
        %4172 = vrot.lane.b32.xlu0 %v4111, 8
        %v4173 = vpop.permute.xlu0 %4172
        %4174 = vrot.lane.b32.xlu0 %v4123, 8
        %v4175 = vpop.permute.xlu0 %4174
        %4176 = vrot.lane.b32.xlu0 %v4135, 8
        %v4177 = vpop.permute.xlu0 %4176
        %4178 = vrot.lane.b32.xlu0 %v4147, 8
        %v4179 = vpop.permute.xlu0 %4178
        %v4212 = vrot.slane %v3924, 1
        %v4213 = vrot.slane %v3940, 1
        %v4214 = vsel %vm1517, %v4212, %v4213
        %v4215 = vrot.slane %v3925, 1
        %v4216 = vrot.slane %v3941, 1
        %v4217 = vsel %vm1517, %v4215, %v4216
        %v4218 = vrot.slane %v3926, 1
        %v4219 = vrot.slane %v3942, 1
        %v4220 = vsel %vm1517, %v4218, %v4219
        %v4221 = vrot.slane %v3927, 1
        %v4222 = vrot.slane %v3943, 1
        %v4223 = vsel %vm1517, %v4221, %v4222
        %v4224 = vrot.slane %v3928, 1
        %v4225 = vrot.slane %v3944, 1
        %v4226 = vsel %vm1517, %v4224, %v4225
        %v4227 = vrot.slane %v3929, 1
        %v4228 = vrot.slane %v3945, 1
        %v4229 = vsel %vm1517, %v4227, %v4228
        %v4230 = vrot.slane %v3930, 1
        %v4231 = vrot.slane %v3946, 1
        %v4232 = vsel %vm1517, %v4230, %v4231
        %v4233 = vrot.slane %v3931, 1
        %v4234 = vrot.slane %v3947, 1
        %v4235 = vsel %vm1517, %v4233, %v4234
        %v4236 = vrot.slane %v3932, 1
        %v4237 = vrot.slane %v3948, 1
        %v4238 = vsel %vm1517, %v4236, %v4237
        %v4239 = vrot.slane %v3933, 1
        %v4240 = vrot.slane %v3949, 1
        %v4241 = vsel %vm1517, %v4239, %v4240
        %v4242 = vrot.slane %v3934, 1
        %v4243 = vrot.slane %v3950, 1
        %v4244 = vsel %vm1517, %v4242, %v4243
        %v4245 = vrot.slane %v3935, 1
        %v4246 = vrot.slane %v3951, 1
        %v4247 = vsel %vm1517, %v4245, %v4246
        %v4248 = vrot.slane %v3936, 1
        %v4249 = vrot.slane %v3952, 1
        %v4250 = vsel %vm1517, %v4248, %v4249
        %v4251 = vrot.slane %v3937, 1
        %v4252 = vrot.slane %v3953, 1
        %v4253 = vsel %vm1517, %v4251, %v4252
        %v4254 = vrot.slane %v3938, 1
        %v4255 = vrot.slane %v3954, 1
        %v4256 = vsel %vm1517, %v4254, %v4255
        %v4257 = vrot.slane %v3939, 1
        %v4258 = vrot.slane %v3955, 1
        %v4259 = vsel %vm1517, %v4257, %v4258
        %4260 = vrot.lane.b32.xlu0 %v4214, 16
        %v4261 = vpop.permute.xlu0 %4260
        %4262 = vrot.lane.b32.xlu0 %v4217, 16
        %v4263 = vpop.permute.xlu0 %4262
        %4264 = vrot.lane.b32.xlu0 %v4220, 16
        %v4265 = vpop.permute.xlu0 %4264
        %4266 = vrot.lane.b32.xlu0 %v4223, 16
        %v4267 = vpop.permute.xlu0 %4266
        %4268 = vrot.lane.b32.xlu0 %v4226, 16
        %v4269 = vpop.permute.xlu0 %4268
        %4270 = vrot.lane.b32.xlu0 %v4229, 16
        %v4271 = vpop.permute.xlu0 %4270
        %4272 = vrot.lane.b32.xlu0 %v4232, 16
        %v4273 = vpop.permute.xlu0 %4272
        %4274 = vrot.lane.b32.xlu0 %v4235, 16
        %v4275 = vpop.permute.xlu0 %4274
        %4276 = vrot.lane.b32.xlu0 %v4238, 16
        %v4277 = vpop.permute.xlu0 %4276
        %4278 = vrot.lane.b32.xlu0 %v4241, 16
        %v4279 = vpop.permute.xlu0 %4278
        %4280 = vrot.lane.b32.xlu0 %v4244, 16
        %v4281 = vpop.permute.xlu0 %4280
        %4282 = vrot.lane.b32.xlu0 %v4247, 16
        %v4283 = vpop.permute.xlu0 %4282
        %4284 = vrot.lane.b32.xlu0 %v4250, 16
        %v4285 = vpop.permute.xlu0 %4284
        %4286 = vrot.lane.b32.xlu0 %v4253, 16
        %v4287 = vpop.permute.xlu0 %4286
        %4288 = vrot.lane.b32.xlu0 %v4256, 16
        %v4289 = vpop.permute.xlu0 %4288
        %4290 = vrot.lane.b32.xlu0 %v4259, 16
        %v4291 = vpop.permute.xlu0 %4290
        %v4293 = vsel %vm1630, %v3924, %v4149
        %v4295 = vsel %vm1630, %v3925, %v4151
        %v4297 = vsel %vm1630, %v3926, %v4153
        %v4299 = vsel %vm1630, %v3927, %v4155
        %v4301 = vsel %vm1630, %v3928, %v4157
        %v4303 = vsel %vm1630, %v3929, %v4159
        %v4305 = vsel %vm1630, %v3930, %v4161
        %v4307 = vsel %vm1630, %v3931, %v4163
        %v4309 = vsel %vm1630, %v3932, %v4165
        %v4311 = vsel %vm1630, %v3933, %v4167
        %v4313 = vsel %vm1630, %v3934, %v4169
        %v4315 = vsel %vm1630, %v3935, %v4171
        %v4317 = vsel %vm1630, %v3936, %v4173
        %v4319 = vsel %vm1630, %v3937, %v4175
        %v4321 = vsel %vm1630, %v3938, %v4177
        %v4323 = vsel %vm1630, %v3939, %v4179
        %vm4324 = vcmask 130048
        %v4326 = vsel %vm4324, %v4293, %v4261
        %v4328 = vsel %vm4324, %v4295, %v4263
        %v4330 = vsel %vm4324, %v4297, %v4265
        %v4332 = vsel %vm4324, %v4299, %v4267
        %v4334 = vsel %vm4324, %v4301, %v4269
        %v4336 = vsel %vm4324, %v4303, %v4271
        %v4338 = vsel %vm4324, %v4305, %v4273
        %v4340 = vsel %vm4324, %v4307, %v4275
        %v4342 = vsel %vm4324, %v4309, %v4277
        %v4344 = vsel %vm4324, %v4311, %v4279
        %v4346 = vsel %vm4324, %v4313, %v4281
        %v4348 = vsel %vm4324, %v4315, %v4283
        %v4350 = vsel %vm4324, %v4317, %v4285
        %v4352 = vsel %vm4324, %v4319, %v4287
        %v4354 = vsel %vm4324, %v4321, %v4289
        %v4356 = vsel %vm4324, %v4323, %v4291
        %v4357 = vld [vmem:[%s11] sm:$0xf]
        %v4358 = vld [vmem:[%s11 + $0x4] sm:$0xf]
        %v4359 = vld [vmem:[%s11 + $0x8] sm:$0xf]
        %s4360 = scalar_lea.vmem %s11, 12
        %v4361 = vld [vmem:[%s4360] sm:$0xf]
        %v4362 = vld [vmem:[%s4360 + $0x4] sm:$0xf]
        %v4363 = vld [vmem:[%s4360 + $0x8] sm:$0xf]
        %v4367 = vunpack.c.l.b16 %v4361
        %v4368 = vunpack.c.l.b16 %v4362
        %v4369 = vunpack.c.l.b16 %v4363
        %v4370 = vpack.c.b16 %v4368, %v4367
        %v4371 = vpack.c.b16 %v4369, %v4369
        %vm4373 = vcmask 195584
        %v4374 = vsel %vm4373, %v4326, 0
        %v4376 = vsel %vm4373, %v4328, 0
        %v4378 = vsel %vm4373, %v4330, 0
        %v4380 = vsel %vm4373, %v4332, 0
        %v4382 = vsel %vm4373, %v4334, 0
        %v4384 = vsel %vm4373, %v4336, 0
        %v4386 = vsel %vm4373, %v4338, 0
        %v4388 = vsel %vm4373, %v4340, 0
        %v4390 = vsel %vm4373, %v4342, 0
        %v4392 = vsel %vm4373, %v4344, 0
        %v4394 = vsel %vm4373, %v4346, 0
        %v4396 = vsel %vm4373, %v4348, 0
        %v4398 = vsel %vm4373, %v4350, 0
        %v4400 = vsel %vm4373, %v4352, 0
        %v4402 = vsel %vm4373, %v4354, 0
        %v4404 = vsel %vm4373, %v4356, 0
        %vm4406 = vcmask 1043456
        %v4408 = vsel %vm4406, %v4371, 0
        %4410 = vmatprep.subr.bf16.mxu0 0
        %4411 = vmatpush1.bf16.msra.mxu0 0
        %4412 = vmatprep.subr.bf16.mxu0 0
        %4413 = vmatpush1.bf16.msra.mxu0 0
        %4414 = vmatprep.subr.bf16.mxu0 0
        %4415 = vmatpush1.bf16.msra.mxu0 0
        %4416 = vmatprep.subr.bf16.mxu0 0
        %4417 = vmatpush1.bf16.msra.mxu0 0
        %4418 = vmatprep.subr.bf16.mxu0 0
        %4419 = vmatpush1.bf16.msra.mxu0 0
        %4420 = vmatprep.subr.bf16.mxu0 0
        %4421 = vmatpush1.bf16.msra.mxu0 0
        %4422 = vmatprep.subr.bf16.mxu0 0
        %4423 = vmatpush1.bf16.msra.mxu0 %v4408
        %4424 = vmatprep.subr.bf16.mxu0 0
        %4425 = vmatpush1.bf16.msra.mxu0 %v4370
        %4426 = vmatprep.subr.bf16.mxu0 0
        %4427 = vmatpush2.bf16.msra.mxu0 0
        %4428 = vmatprep.subr.bf16.mxu0 0
        %4429 = vmatpush2.bf16.msra.mxu0 0
        %4430 = vmatprep.subr.bf16.mxu0 0
        %4431 = vmatpush2.bf16.msra.mxu0 0
        %4432 = vmatprep.subr.bf16.mxu0 0
        %4433 = vmatpush2.bf16.msra.mxu0 0
        %4434 = vmatprep.subr.bf16.mxu0 0
        %4435 = vmatpush2.bf16.msra.mxu0 0
        %4436 = vmatprep.subr.bf16.mxu0 0
        %4437 = vmatpush2.bf16.msra.mxu0 0
        %4438 = vmatprep.subr.bf16.mxu0 0
        %4439 = vmatpush2.bf16.msra.mxu0 0
        %4440 = vmatprep.subr.bf16.mxu0 0
        %4441 = vmatpush2.bf16.msra.mxu0 0
        %4442 = vmatprep.mubr.bf16.mxu0 0
        %4443 = vmatmul.mubr.bf16.gmra.mxu0 %v4374
        %v4444 = vpop.f32.mrf.mxu0
        %v4445 = vadd.f32 0.0, %v4444
        %v4446 = vpop.f32.mrf.mxu0
        %v4447 = vpop.f32.mrf.mxu0
        %v4448 = vadd.f32 0.0, %v4447
        %v4449 = vpop.f32.mrf.mxu0
        %4450 = vmatprep.mubr.bf16.mxu0 0
        %4451 = vmatmul.mubr.bf16.gmra.mxu0 %v4376
        %v4452 = vpop.f32.mrf.mxu0
        %v4453 = vadd.f32 0.0, %v4452
        %v4454 = vpop.f32.mrf.mxu0
        %v4455 = vpop.f32.mrf.mxu0
        %v4456 = vadd.f32 0.0, %v4455
        %v4457 = vpop.f32.mrf.mxu0
        %4458 = vmatprep.mubr.bf16.mxu0 0
        %4459 = vmatmul.mubr.bf16.gmra.mxu0 %v4378
        %v4460 = vpop.f32.mrf.mxu0
        %v4461 = vadd.f32 0.0, %v4460
        %v4462 = vpop.f32.mrf.mxu0
        %v4463 = vpop.f32.mrf.mxu0
        %v4464 = vadd.f32 0.0, %v4463
        %v4465 = vpop.f32.mrf.mxu0
        %4466 = vmatprep.mubr.bf16.mxu0 0
        %4467 = vmatmul.mubr.bf16.gmra.mxu0 %v4380
        %v4468 = vpop.f32.mrf.mxu0
        %v4469 = vadd.f32 0.0, %v4468
        %v4470 = vpop.f32.mrf.mxu0
        %v4471 = vpop.f32.mrf.mxu0
        %v4472 = vadd.f32 0.0, %v4471
        %v4473 = vpop.f32.mrf.mxu0
        %4474 = vmatprep.mubr.bf16.mxu0 0
        %4475 = vmatmul.mubr.bf16.gmra.mxu0 %v4382
        %v4476 = vpop.f32.mrf.mxu0
        %v4477 = vadd.f32 0.0, %v4476
        %v4478 = vpop.f32.mrf.mxu0
        %v4479 = vpop.f32.mrf.mxu0
        %v4480 = vadd.f32 0.0, %v4479
        %v4481 = vpop.f32.mrf.mxu0
        %4482 = vmatprep.mubr.bf16.mxu0 0
        %4483 = vmatmul.mubr.bf16.gmra.mxu0 %v4384
        %v4484 = vpop.f32.mrf.mxu0
        %v4485 = vadd.f32 0.0, %v4484
        %v4486 = vpop.f32.mrf.mxu0
        %v4487 = vpop.f32.mrf.mxu0
        %v4488 = vadd.f32 0.0, %v4487
        %v4489 = vpop.f32.mrf.mxu0
        %4490 = vmatprep.mubr.bf16.mxu0 0
        %4491 = vmatmul.mubr.bf16.gmra.mxu0 %v4386
        %v4492 = vpop.f32.mrf.mxu0
        %v4493 = vadd.f32 0.0, %v4492
        %v4494 = vpop.f32.mrf.mxu0
        %v4495 = vpop.f32.mrf.mxu0
        %v4496 = vadd.f32 0.0, %v4495
        %v4497 = vpop.f32.mrf.mxu0
        %4498 = vmatprep.mubr.bf16.mxu0 0
        %4499 = vmatmul.mubr.bf16.gmra.mxu0 %v4388
        %v4500 = vpop.f32.mrf.mxu0
        %v4501 = vadd.f32 0.0, %v4500
        %v4502 = vpop.f32.mrf.mxu0
        %v4503 = vpop.f32.mrf.mxu0
        %v4504 = vadd.f32 0.0, %v4503
        %v4505 = vpop.f32.mrf.mxu0
        %4506 = vmatprep.mubr.bf16.mxu0 0
        %4507 = vmatmul.mubr.bf16.gmra.mxu0 %v4390
        %v4508 = vpop.f32.mrf.mxu0
        %v4509 = vadd.f32 0.0, %v4508
        %v4510 = vpop.f32.mrf.mxu0
        %v4511 = vpop.f32.mrf.mxu0
        %v4512 = vadd.f32 0.0, %v4511
        %v4513 = vpop.f32.mrf.mxu0
        %4514 = vmatprep.mubr.bf16.mxu0 0
        %4515 = vmatmul.mubr.bf16.gmra.mxu0 %v4392
        %v4516 = vpop.f32.mrf.mxu0
        %v4517 = vadd.f32 0.0, %v4516
        %v4518 = vpop.f32.mrf.mxu0
        %v4519 = vpop.f32.mrf.mxu0
        %v4520 = vadd.f32 0.0, %v4519
        %v4521 = vpop.f32.mrf.mxu0
        %4522 = vmatprep.mubr.bf16.mxu0 0
        %4523 = vmatmul.mubr.bf16.gmra.mxu0 %v4394
        %v4524 = vpop.f32.mrf.mxu0
        %v4525 = vadd.f32 0.0, %v4524
        %v4526 = vpop.f32.mrf.mxu0
        %v4527 = vpop.f32.mrf.mxu0
        %v4528 = vadd.f32 0.0, %v4527
        %v4529 = vpop.f32.mrf.mxu0
        %4530 = vmatprep.mubr.bf16.mxu0 0
        %4531 = vmatmul.mubr.bf16.gmra.mxu0 %v4396
        %v4532 = vpop.f32.mrf.mxu0
        %v4533 = vadd.f32 0.0, %v4532
        %v4534 = vpop.f32.mrf.mxu0
        %v4535 = vpop.f32.mrf.mxu0
        %v4536 = vadd.f32 0.0, %v4535
        %v4537 = vpop.f32.mrf.mxu0
        %4538 = vmatprep.mubr.bf16.mxu0 0
        %4539 = vmatmul.mubr.bf16.gmra.mxu0 %v4398
        %v4540 = vpop.f32.mrf.mxu0
        %v4541 = vadd.f32 0.0, %v4540
        %v4542 = vpop.f32.mrf.mxu0
        %v4543 = vpop.f32.mrf.mxu0
        %v4544 = vadd.f32 0.0, %v4543
        %v4545 = vpop.f32.mrf.mxu0
        %4546 = vmatprep.mubr.bf16.mxu0 0
        %4547 = vmatmul.mubr.bf16.gmra.mxu0 %v4400
        %v4548 = vpop.f32.mrf.mxu0
        %v4549 = vadd.f32 0.0, %v4548
        %v4550 = vpop.f32.mrf.mxu0
        %v4551 = vpop.f32.mrf.mxu0
        %v4552 = vadd.f32 0.0, %v4551
        %v4553 = vpop.f32.mrf.mxu0
        %4554 = vmatprep.mubr.bf16.mxu0 0
        %4555 = vmatmul.mubr.bf16.gmra.mxu0 %v4402
        %v4556 = vpop.f32.mrf.mxu0
        %v4557 = vadd.f32 0.0, %v4556
        %v4558 = vpop.f32.mrf.mxu0
        %v4559 = vpop.f32.mrf.mxu0
        %v4560 = vadd.f32 0.0, %v4559
        %v4561 = vpop.f32.mrf.mxu0
        %4562 = vmatprep.mubr.bf16.mxu0 0
        %4563 = vmatmul.mubr.bf16.gmra.mxu0 %v4404
        %v4564 = vpop.f32.mrf.mxu0
        %v4565 = vadd.f32 0.0, %v4564
        %v4566 = vpop.f32.mrf.mxu0
        %v4567 = vpop.f32.mrf.mxu0
        %v4568 = vadd.f32 0.0, %v4567
        %v4569 = vpop.f32.mrf.mxu0
        %4570 = vdwg.mxu0
        %v4574 = vunpack.c.l.b16 %v4357
        %v4575 = vunpack.c.l.b16 %v4358
        %v4576 = vunpack.c.l.b16 %v4359
        %v4577 = vpack.c.b16 %v4575, %v4574
        %v4578 = vpack.c.b16 %v4576, %v4576
        %v4580 = vsel %vm4373, 0, 0
        %v4583 = vsel %vm4406, %v4578, 0
        %4585 = vmatprep.subr.bf16.mxu0 0
        %4586 = vmatpush1.bf16.msra.mxu0 0
        %4587 = vmatprep.subr.bf16.mxu0 0
        %4588 = vmatpush1.bf16.msra.mxu0 0
        %4589 = vmatprep.subr.bf16.mxu0 0
        %4590 = vmatpush1.bf16.msra.mxu0 0
        %4591 = vmatprep.subr.bf16.mxu0 0
        %4592 = vmatpush1.bf16.msra.mxu0 0
        %4593 = vmatprep.subr.bf16.mxu0 0
        %4594 = vmatpush1.bf16.msra.mxu0 0
        %4595 = vmatprep.subr.bf16.mxu0 0
        %4596 = vmatpush1.bf16.msra.mxu0 0
        %4597 = vmatprep.subr.bf16.mxu0 0
        %4598 = vmatpush1.bf16.msra.mxu0 %v4583
        %4599 = vmatprep.subr.bf16.mxu0 0
        %4600 = vmatpush1.bf16.msra.mxu0 %v4577
        %4601 = vmatprep.subr.bf16.mxu0 0
        %4602 = vmatpush2.bf16.msra.mxu0 0
        %4603 = vmatprep.subr.bf16.mxu0 0
        %4604 = vmatpush2.bf16.msra.mxu0 0
        %4605 = vmatprep.subr.bf16.mxu0 0
        %4606 = vmatpush2.bf16.msra.mxu0 0
        %4607 = vmatprep.subr.bf16.mxu0 0
        %4608 = vmatpush2.bf16.msra.mxu0 0
        %4609 = vmatprep.subr.bf16.mxu0 0
        %4610 = vmatpush2.bf16.msra.mxu0 0
        %4611 = vmatprep.subr.bf16.mxu0 0
        %4612 = vmatpush2.bf16.msra.mxu0 0
        %4613 = vmatprep.subr.bf16.mxu0 0
        %4614 = vmatpush2.bf16.msra.mxu0 0
        %4615 = vmatprep.subr.bf16.mxu0 0
        %4616 = vmatpush2.bf16.msra.mxu0 0
        %4617 = vmatprep.mubr.bf16.mxu0 0
        %4618 = vmatmul.mubr.bf16.gmra.mxu0 %v4580
        %v4619 = vpop.f32.mrf.mxu0
        %v4620 = vadd.f32 %v4445, %v4619
        %v4621 = vpop.f32.mrf.mxu0
        %v4622 = vpop.f32.mrf.mxu0
        %v4623 = vadd.f32 %v4448, %v4622
        %v4624 = vpop.f32.mrf.mxu0
        %4625 = vmatprep.mubr.bf16.mxu0 0
        %4626 = vmatmul.mubr.bf16.gmra.mxu0 %v4374
        %v4627 = vpop.f32.mrf.mxu0
        %v4628 = vadd.f32 %v4453, %v4627
        %v4629 = vpop.f32.mrf.mxu0
        %v4630 = vpop.f32.mrf.mxu0
        %v4631 = vadd.f32 %v4456, %v4630
        %v4632 = vpop.f32.mrf.mxu0
        %4633 = vmatprep.mubr.bf16.mxu0 0
        %4634 = vmatmul.mubr.bf16.gmra.mxu0 %v4376
        %v4635 = vpop.f32.mrf.mxu0
        %v4636 = vadd.f32 %v4461, %v4635
        %v4637 = vpop.f32.mrf.mxu0
        %v4638 = vpop.f32.mrf.mxu0
        %v4639 = vadd.f32 %v4464, %v4638
        %v4640 = vpop.f32.mrf.mxu0
        %4641 = vmatprep.mubr.bf16.mxu0 0
        %4642 = vmatmul.mubr.bf16.gmra.mxu0 %v4378
        %v4643 = vpop.f32.mrf.mxu0
        %v4644 = vadd.f32 %v4469, %v4643
        %v4645 = vpop.f32.mrf.mxu0
        %v4646 = vpop.f32.mrf.mxu0
        %v4647 = vadd.f32 %v4472, %v4646
        %v4648 = vpop.f32.mrf.mxu0
        %4649 = vmatprep.mubr.bf16.mxu0 0
        %4650 = vmatmul.mubr.bf16.gmra.mxu0 %v4380
        %v4651 = vpop.f32.mrf.mxu0
        %v4652 = vadd.f32 %v4477, %v4651
        %v4653 = vpop.f32.mrf.mxu0
        %v4654 = vpop.f32.mrf.mxu0
        %v4655 = vadd.f32 %v4480, %v4654
        %v4656 = vpop.f32.mrf.mxu0
        %4657 = vmatprep.mubr.bf16.mxu0 0
        %4658 = vmatmul.mubr.bf16.gmra.mxu0 %v4382
        %v4659 = vpop.f32.mrf.mxu0
        %v4660 = vadd.f32 %v4485, %v4659
        %v4661 = vpop.f32.mrf.mxu0
        %v4662 = vpop.f32.mrf.mxu0
        %v4663 = vadd.f32 %v4488, %v4662
        %v4664 = vpop.f32.mrf.mxu0
        %4665 = vmatprep.mubr.bf16.mxu0 0
        %4666 = vmatmul.mubr.bf16.gmra.mxu0 %v4384
        %v4667 = vpop.f32.mrf.mxu0
        %v4668 = vadd.f32 %v4493, %v4667
        %v4669 = vpop.f32.mrf.mxu0
        %v4670 = vpop.f32.mrf.mxu0
        %v4671 = vadd.f32 %v4496, %v4670
        %v4672 = vpop.f32.mrf.mxu0
        %4673 = vmatprep.mubr.bf16.mxu0 0
        %4674 = vmatmul.mubr.bf16.gmra.mxu0 %v4386
        %v4675 = vpop.f32.mrf.mxu0
        %v4676 = vadd.f32 %v4501, %v4675
        %v4677 = vpop.f32.mrf.mxu0
        %v4678 = vpop.f32.mrf.mxu0
        %v4679 = vadd.f32 %v4504, %v4678
        %v4680 = vpop.f32.mrf.mxu0
        %4681 = vmatprep.mubr.bf16.mxu0 0
        %4682 = vmatmul.mubr.bf16.gmra.mxu0 %v4388
        %v4683 = vpop.f32.mrf.mxu0
        %v4684 = vadd.f32 %v4509, %v4683
        %v4685 = vpop.f32.mrf.mxu0
        %v4686 = vpop.f32.mrf.mxu0
        %v4687 = vadd.f32 %v4512, %v4686
        %v4688 = vpop.f32.mrf.mxu0
        %4689 = vmatprep.mubr.bf16.mxu0 0
        %4690 = vmatmul.mubr.bf16.gmra.mxu0 %v4390
        %v4691 = vpop.f32.mrf.mxu0
        %v4692 = vadd.f32 %v4517, %v4691
        %v4693 = vpop.f32.mrf.mxu0
        %v4694 = vpop.f32.mrf.mxu0
        %v4695 = vadd.f32 %v4520, %v4694
        %v4696 = vpop.f32.mrf.mxu0
        %4697 = vmatprep.mubr.bf16.mxu0 0
        %4698 = vmatmul.mubr.bf16.gmra.mxu0 %v4392
        %v4699 = vpop.f32.mrf.mxu0
        %v4700 = vadd.f32 %v4525, %v4699
        %v4701 = vpop.f32.mrf.mxu0
        %v4702 = vpop.f32.mrf.mxu0
        %v4703 = vadd.f32 %v4528, %v4702
        %v4704 = vpop.f32.mrf.mxu0
        %4705 = vmatprep.mubr.bf16.mxu0 0
        %4706 = vmatmul.mubr.bf16.gmra.mxu0 %v4394
        %v4707 = vpop.f32.mrf.mxu0
        %v4708 = vadd.f32 %v4533, %v4707
        %v4709 = vpop.f32.mrf.mxu0
        %v4710 = vpop.f32.mrf.mxu0
        %v4711 = vadd.f32 %v4536, %v4710
        %v4712 = vpop.f32.mrf.mxu0
        %4713 = vmatprep.mubr.bf16.mxu0 0
        %4714 = vmatmul.mubr.bf16.gmra.mxu0 %v4396
        %v4715 = vpop.f32.mrf.mxu0
        %v4716 = vadd.f32 %v4541, %v4715
        %v4717 = vpop.f32.mrf.mxu0
        %v4718 = vpop.f32.mrf.mxu0
        %v4719 = vadd.f32 %v4544, %v4718
        %v4720 = vpop.f32.mrf.mxu0
        %4721 = vmatprep.mubr.bf16.mxu0 0
        %4722 = vmatmul.mubr.bf16.gmra.mxu0 %v4398
        %v4723 = vpop.f32.mrf.mxu0
        %v4724 = vadd.f32 %v4549, %v4723
        %v4725 = vpop.f32.mrf.mxu0
        %v4726 = vpop.f32.mrf.mxu0
        %v4727 = vadd.f32 %v4552, %v4726
        %v4728 = vpop.f32.mrf.mxu0
        %4729 = vmatprep.mubr.bf16.mxu0 0
        %4730 = vmatmul.mubr.bf16.gmra.mxu0 %v4400
        %v4731 = vpop.f32.mrf.mxu0
        %v4732 = vadd.f32 %v4557, %v4731
        %v4733 = vpop.f32.mrf.mxu0
        %v4734 = vpop.f32.mrf.mxu0
        %v4735 = vadd.f32 %v4560, %v4734
        %v4736 = vpop.f32.mrf.mxu0
        %4737 = vmatprep.mubr.bf16.mxu0 0
        %4738 = vmatmul.mubr.bf16.gmra.mxu0 %v4402
        %v4739 = vpop.f32.mrf.mxu0
        %v4740 = vadd.f32 %v4565, %v4739
        %v4741 = vpop.f32.mrf.mxu0
        %v4742 = vpop.f32.mrf.mxu0
        %v4743 = vadd.f32 %v4568, %v4742
        %v4744 = vpop.f32.mrf.mxu0
        %4745 = vdwg.mxu0
        %s4746 = scalar_lea.vmem %s11, 24
        %v4747 = vld [vmem:[%s4746] sm:$0xf]
        %v4748 = vld [vmem:[%s4746 + $0x4] sm:$0xf]
        %v4749 = vld [vmem:[%s4746 + $0x8] sm:$0xf]
        %v4753 = vunpack.c.l.b16 %v4747
        %v4754 = vunpack.c.l.b16 %v4748
        %v4755 = vunpack.c.l.b16 %v4749
        %v4756 = vpack.c.b16 %v4754, %v4753
        %v4757 = vpack.c.b16 %v4755, %v4755
        %v4760 = vsel %vm4406, %v4757, 0
        %4762 = vmatprep.subr.bf16.mxu0 0
        %4763 = vmatpush1.bf16.msra.mxu0 0
        %4764 = vmatprep.subr.bf16.mxu0 0
        %4765 = vmatpush1.bf16.msra.mxu0 0
        %4766 = vmatprep.subr.bf16.mxu0 0
        %4767 = vmatpush1.bf16.msra.mxu0 0
        %4768 = vmatprep.subr.bf16.mxu0 0
        %4769 = vmatpush1.bf16.msra.mxu0 0
        %4770 = vmatprep.subr.bf16.mxu0 0
        %4771 = vmatpush1.bf16.msra.mxu0 0
        %4772 = vmatprep.subr.bf16.mxu0 0
        %4773 = vmatpush1.bf16.msra.mxu0 0
        %4774 = vmatprep.subr.bf16.mxu0 0
        %4775 = vmatpush1.bf16.msra.mxu0 %v4760
        %4776 = vmatprep.subr.bf16.mxu0 0
        %4777 = vmatpush1.bf16.msra.mxu0 %v4756
        %4778 = vmatprep.subr.bf16.mxu0 0
        %4779 = vmatpush2.bf16.msra.mxu0 0
        %4780 = vmatprep.subr.bf16.mxu0 0
        %4781 = vmatpush2.bf16.msra.mxu0 0
        %4782 = vmatprep.subr.bf16.mxu0 0
        %4783 = vmatpush2.bf16.msra.mxu0 0
        %4784 = vmatprep.subr.bf16.mxu0 0
        %4785 = vmatpush2.bf16.msra.mxu0 0
        %4786 = vmatprep.subr.bf16.mxu0 0
        %4787 = vmatpush2.bf16.msra.mxu0 0
        %4788 = vmatprep.subr.bf16.mxu0 0
        %4789 = vmatpush2.bf16.msra.mxu0 0
        %4790 = vmatprep.subr.bf16.mxu0 0
        %4791 = vmatpush2.bf16.msra.mxu0 0
        %4792 = vmatprep.subr.bf16.mxu0 0
        %4793 = vmatpush2.bf16.msra.mxu0 0
        %4794 = vmatprep.mubr.bf16.mxu0 0
        %4795 = vmatmul.mubr.bf16.gmra.mxu0 %v4376
        %v4796 = vpop.f32.mrf.mxu0
        %v4797 = vadd.f32 0.0, %v4796
        %v4798 = vpop.f32.mrf.mxu0
        %v4799 = vpop.f32.mrf.mxu0
        %v4800 = vadd.f32 0.0, %v4799
        %v4801 = vpop.f32.mrf.mxu0
        %4802 = vmatprep.mubr.bf16.mxu0 0
        %4803 = vmatmul.mubr.bf16.gmra.mxu0 %v4378
        %v4804 = vpop.f32.mrf.mxu0
        %v4805 = vadd.f32 0.0, %v4804
        %v4806 = vpop.f32.mrf.mxu0
        %v4807 = vpop.f32.mrf.mxu0
        %v4808 = vadd.f32 0.0, %v4807
        %v4809 = vpop.f32.mrf.mxu0
        %4810 = vmatprep.mubr.bf16.mxu0 0
        %4811 = vmatmul.mubr.bf16.gmra.mxu0 %v4380
        %v4812 = vpop.f32.mrf.mxu0
        %v4813 = vadd.f32 0.0, %v4812
        %v4814 = vpop.f32.mrf.mxu0
        %v4815 = vpop.f32.mrf.mxu0
        %v4816 = vadd.f32 0.0, %v4815
        %v4817 = vpop.f32.mrf.mxu0
        %4818 = vmatprep.mubr.bf16.mxu0 0
        %4819 = vmatmul.mubr.bf16.gmra.mxu0 %v4382
        %v4820 = vpop.f32.mrf.mxu0
        %v4821 = vadd.f32 0.0, %v4820
        %v4822 = vpop.f32.mrf.mxu0
        %v4823 = vpop.f32.mrf.mxu0
        %v4824 = vadd.f32 0.0, %v4823
        %v4825 = vpop.f32.mrf.mxu0
        %4826 = vmatprep.mubr.bf16.mxu0 0
        %4827 = vmatmul.mubr.bf16.gmra.mxu0 %v4384
        %v4828 = vpop.f32.mrf.mxu0
        %v4829 = vadd.f32 0.0, %v4828
        %v4830 = vpop.f32.mrf.mxu0
        %v4831 = vpop.f32.mrf.mxu0
        %v4832 = vadd.f32 0.0, %v4831
        %v4833 = vpop.f32.mrf.mxu0
        %4834 = vmatprep.mubr.bf16.mxu0 0
        %4835 = vmatmul.mubr.bf16.gmra.mxu0 %v4386
        %v4836 = vpop.f32.mrf.mxu0
        %v4837 = vadd.f32 0.0, %v4836
        %v4838 = vpop.f32.mrf.mxu0
        %v4839 = vpop.f32.mrf.mxu0
        %v4840 = vadd.f32 0.0, %v4839
        %v4841 = vpop.f32.mrf.mxu0
        %4842 = vmatprep.mubr.bf16.mxu0 0
        %4843 = vmatmul.mubr.bf16.gmra.mxu0 %v4388
        %v4844 = vpop.f32.mrf.mxu0
        %v4845 = vadd.f32 0.0, %v4844
        %v4846 = vpop.f32.mrf.mxu0
        %v4847 = vpop.f32.mrf.mxu0
        %v4848 = vadd.f32 0.0, %v4847
        %v4849 = vpop.f32.mrf.mxu0
        %4850 = vmatprep.mubr.bf16.mxu0 0
        %4851 = vmatmul.mubr.bf16.gmra.mxu0 %v4390
        %v4852 = vpop.f32.mrf.mxu0
        %v4853 = vadd.f32 0.0, %v4852
        %v4854 = vpop.f32.mrf.mxu0
        %v4855 = vpop.f32.mrf.mxu0
        %v4856 = vadd.f32 0.0, %v4855
        %v4857 = vpop.f32.mrf.mxu0
        %4858 = vmatprep.mubr.bf16.mxu0 0
        %4859 = vmatmul.mubr.bf16.gmra.mxu0 %v4392
        %v4860 = vpop.f32.mrf.mxu0
        %v4861 = vadd.f32 0.0, %v4860
        %v4862 = vpop.f32.mrf.mxu0
        %v4863 = vpop.f32.mrf.mxu0
        %v4864 = vadd.f32 0.0, %v4863
        %v4865 = vpop.f32.mrf.mxu0
        %4866 = vmatprep.mubr.bf16.mxu0 0
        %4867 = vmatmul.mubr.bf16.gmra.mxu0 %v4394
        %v4868 = vpop.f32.mrf.mxu0
        %v4869 = vadd.f32 0.0, %v4868
        %v4870 = vpop.f32.mrf.mxu0
        %v4871 = vpop.f32.mrf.mxu0
        %v4872 = vadd.f32 0.0, %v4871
        %v4873 = vpop.f32.mrf.mxu0
        %4874 = vmatprep.mubr.bf16.mxu0 0
        %4875 = vmatmul.mubr.bf16.gmra.mxu0 %v4396
        %v4876 = vpop.f32.mrf.mxu0
        %v4877 = vadd.f32 0.0, %v4876
        %v4878 = vpop.f32.mrf.mxu0
        %v4879 = vpop.f32.mrf.mxu0
        %v4880 = vadd.f32 0.0, %v4879
        %v4881 = vpop.f32.mrf.mxu0
        %4882 = vmatprep.mubr.bf16.mxu0 0
        %4883 = vmatmul.mubr.bf16.gmra.mxu0 %v4398
        %v4884 = vpop.f32.mrf.mxu0
        %v4885 = vadd.f32 0.0, %v4884
        %v4886 = vpop.f32.mrf.mxu0
        %v4887 = vpop.f32.mrf.mxu0
        %v4888 = vadd.f32 0.0, %v4887
        %v4889 = vpop.f32.mrf.mxu0
        %4890 = vmatprep.mubr.bf16.mxu0 0
        %4891 = vmatmul.mubr.bf16.gmra.mxu0 %v4400
        %v4892 = vpop.f32.mrf.mxu0
        %v4893 = vadd.f32 0.0, %v4892
        %v4894 = vpop.f32.mrf.mxu0
        %v4895 = vpop.f32.mrf.mxu0
        %v4896 = vadd.f32 0.0, %v4895
        %v4897 = vpop.f32.mrf.mxu0
        %4898 = vmatprep.mubr.bf16.mxu0 0
        %4899 = vmatmul.mubr.bf16.gmra.mxu0 %v4402
        %v4900 = vpop.f32.mrf.mxu0
        %v4901 = vadd.f32 0.0, %v4900
        %v4902 = vpop.f32.mrf.mxu0
        %v4903 = vpop.f32.mrf.mxu0
        %v4904 = vadd.f32 0.0, %v4903
        %v4905 = vpop.f32.mrf.mxu0
        %4906 = vmatprep.mubr.bf16.mxu0 0
        %4907 = vmatmul.mubr.bf16.gmra.mxu0 %v4404
        %v4908 = vpop.f32.mrf.mxu0
        %v4909 = vadd.f32 0.0, %v4908
        %v4910 = vpop.f32.mrf.mxu0
        %v4911 = vpop.f32.mrf.mxu0
        %v4912 = vadd.f32 0.0, %v4911
        %v4913 = vpop.f32.mrf.mxu0
        %4914 = vmatprep.mubr.bf16.mxu0 0
        %4915 = vmatmul.mubr.bf16.gmra.mxu0 %v4580
        %v4916 = vpop.f32.mrf.mxu0
        %v4917 = vadd.f32 0.0, %v4916
        %v4918 = vpop.f32.mrf.mxu0
        %v4919 = vpop.f32.mrf.mxu0
        %v4920 = vadd.f32 0.0, %v4919
        %v4921 = vpop.f32.mrf.mxu0
        %4922 = vdwg.mxu0
        %v4923 = vadd.f32 %v4620, %v4797
        %v4924 = vadd.f32 %v4623, %v4800
        %v4925 = vadd.f32 %v4628, %v4805
        %v4926 = vadd.f32 %v4631, %v4808
        %v4927 = vadd.f32 %v4636, %v4813
        %v4928 = vadd.f32 %v4639, %v4816
        %v4929 = vadd.f32 %v4644, %v4821
        %v4930 = vadd.f32 %v4647, %v4824
        %v4931 = vadd.f32 %v4652, %v4829
        %v4932 = vadd.f32 %v4655, %v4832
        %v4933 = vadd.f32 %v4660, %v4837
        %v4934 = vadd.f32 %v4663, %v4840
        %v4935 = vadd.f32 %v4668, %v4845
        %v4936 = vadd.f32 %v4671, %v4848
        %v4937 = vadd.f32 %v4676, %v4853
        %v4938 = vadd.f32 %v4679, %v4856
        %v4939 = vadd.f32 %v4684, %v4861
        %v4940 = vadd.f32 %v4687, %v4864
        %v4941 = vadd.f32 %v4692, %v4869
        %v4942 = vadd.f32 %v4695, %v4872
        %v4943 = vadd.f32 %v4700, %v4877
        %v4944 = vadd.f32 %v4703, %v4880
        %v4945 = vadd.f32 %v4708, %v4885
        %v4946 = vadd.f32 %v4711, %v4888
        %v4947 = vadd.f32 %v4716, %v4893
        %v4948 = vadd.f32 %v4719, %v4896
        %v4949 = vadd.f32 %v4724, %v4901
        %v4950 = vadd.f32 %v4727, %v4904
        %v4951 = vadd.f32 %v4732, %v4909
        %v4952 = vadd.f32 %v4735, %v4912
        %v4953 = vadd.f32 %v4740, %v4917
        %v4954 = vadd.f32 %v4743, %v4920
        %v4955 = vld [vmem:[%s12] sm:$0x1]
        %v4957 = vlaneseq
        %v4958 = vshrl.u32 %v4957, 7
        %v4959 = vsub.s32 0, %v4958
        %v4960 = vrot.slane %v4955, %v4959
        %v4962 = vadd.f32 %v4923, %v4960
        %v4963 = vadd.f32 %v4924, %v4960
        %v4964 = vadd.f32 %v4925, %v4960
        %v4965 = vadd.f32 %v4926, %v4960
        %v4966 = vadd.f32 %v4927, %v4960
        %v4967 = vadd.f32 %v4928, %v4960
        %v4968 = vadd.f32 %v4929, %v4960
        %v4969 = vadd.f32 %v4930, %v4960
        %v4970 = vadd.f32 %v4931, %v4960
        %v4971 = vadd.f32 %v4932, %v4960
        %v4972 = vadd.f32 %v4933, %v4960
        %v4973 = vadd.f32 %v4934, %v4960
        %v4974 = vadd.f32 %v4935, %v4960
        %v4975 = vadd.f32 %v4936, %v4960
        %v4976 = vadd.f32 %v4937, %v4960
        %v4977 = vadd.f32 %v4938, %v4960
        %v4978 = vadd.f32 %v4939, %v4960
        %v4979 = vadd.f32 %v4940, %v4960
        %v4980 = vadd.f32 %v4941, %v4960
        %v4981 = vadd.f32 %v4942, %v4960
        %v4982 = vadd.f32 %v4943, %v4960
        %v4983 = vadd.f32 %v4944, %v4960
        %v4984 = vadd.f32 %v4945, %v4960
        %v4985 = vadd.f32 %v4946, %v4960
        %v4986 = vadd.f32 %v4947, %v4960
        %v4987 = vadd.f32 %v4948, %v4960
        %v4988 = vadd.f32 %v4949, %v4960
        %v4989 = vadd.f32 %v4950, %v4960
        %v4990 = vadd.f32 %v4951, %v4960
        %v4991 = vadd.f32 %v4952, %v4960
        %v4992 = vadd.f32 %v4953, %v4960
        %v4993 = vadd.f32 %v4954, %v4960
        %v4994 = vmax.f32 %v4962, 0.0
        %v4995 = vmax.f32 %v4963, 0.0
        %v4996 = vmax.f32 %v4964, 0.0
        %v4997 = vmax.f32 %v4965, 0.0
        %v4998 = vmax.f32 %v4966, 0.0
        %v4999 = vmax.f32 %v4967, 0.0
        %v5000 = vmax.f32 %v4968, 0.0
        %v5001 = vmax.f32 %v4969, 0.0
        %v5002 = vmax.f32 %v4970, 0.0
        %v5003 = vmax.f32 %v4971, 0.0
        %v5004 = vmax.f32 %v4972, 0.0
        %v5005 = vmax.f32 %v4973, 0.0
        %v5006 = vmax.f32 %v4974, 0.0
        %v5007 = vmax.f32 %v4975, 0.0
        %v5008 = vmax.f32 %v4976, 0.0
        %v5009 = vmax.f32 %v4977, 0.0
        %v5010 = vmax.f32 %v4978, 0.0
        %v5011 = vmax.f32 %v4979, 0.0
        %v5012 = vmax.f32 %v4980, 0.0
        %v5013 = vmax.f32 %v4981, 0.0
        %v5014 = vmax.f32 %v4982, 0.0
        %v5015 = vmax.f32 %v4983, 0.0
        %v5016 = vmax.f32 %v4984, 0.0
        %v5017 = vmax.f32 %v4985, 0.0
        %v5018 = vmax.f32 %v4986, 0.0
        %v5019 = vmax.f32 %v4987, 0.0
        %v5020 = vmax.f32 %v4988, 0.0
        %v5021 = vmax.f32 %v4989, 0.0
        %v5022 = vmax.f32 %v4990, 0.0
        %v5023 = vmax.f32 %v4991, 0.0
        %v5024 = vmax.f32 %v4992, 0.0
        %v5025 = vmax.f32 %v4993, 0.0
        %v5026 = vshrl.u32 %v599, 16
        %v5028 = vrot.slane %v5026, 7
        %v5029 = vshll.u32 %v599, 16
        %v5031 = vor.u32 %v5028, %v5029
        %v5032 = vshrl.u32 %v600, 16
        %v5034 = vrot.slane %v5032, 7
        %v5035 = vshll.u32 %v600, 16
        %v5037 = vor.u32 %v5034, %v5035
        %v5038 = vshrl.u32 %v601, 16
        %v5040 = vrot.slane %v5038, 7
        %v5041 = vshll.u32 %v601, 16
        %v5043 = vor.u32 %v5040, %v5041
        %v5044 = vshrl.u32 %v602, 16
        %v5046 = vrot.slane %v5044, 7
        %v5047 = vshll.u32 %v602, 16
        %v5049 = vor.u32 %v5046, %v5047
        %v5050 = vshrl.u32 %v603, 16
        %v5052 = vrot.slane %v5050, 7
        %v5053 = vshll.u32 %v603, 16
        %v5055 = vor.u32 %v5052, %v5053
        %v5056 = vshrl.u32 %v604, 16
        %v5058 = vrot.slane %v5056, 7
        %v5059 = vshll.u32 %v604, 16
        %v5061 = vor.u32 %v5058, %v5059
        %v5062 = vshrl.u32 %v605, 16
        %v5064 = vrot.slane %v5062, 7
        %v5065 = vshll.u32 %v605, 16
        %v5067 = vor.u32 %v5064, %v5065
        %v5068 = vshrl.u32 %v606, 16
        %v5070 = vrot.slane %v5068, 7
        %v5071 = vshll.u32 %v606, 16
        %v5073 = vor.u32 %v5070, %v5071
        %v5074 = vshrl.u32 %v607, 16
        %v5076 = vrot.slane %v5074, 7
        %v5077 = vshll.u32 %v607, 16
        %v5079 = vor.u32 %v5076, %v5077
        %v5080 = vshrl.u32 %v608, 16
        %v5082 = vrot.slane %v5080, 7
        %v5083 = vshll.u32 %v608, 16
        %v5085 = vor.u32 %v5082, %v5083
        %v5086 = vshrl.u32 %v609, 16
        %v5088 = vrot.slane %v5086, 7
        %v5089 = vshll.u32 %v609, 16
        %v5091 = vor.u32 %v5088, %v5089
        %v5092 = vshrl.u32 %v610, 16
        %v5094 = vrot.slane %v5092, 7
        %v5095 = vshll.u32 %v610, 16
        %v5097 = vor.u32 %v5094, %v5095
        %v5098 = vshrl.u32 %v611, 16
        %v5100 = vrot.slane %v5098, 7
        %v5101 = vshll.u32 %v611, 16
        %v5103 = vor.u32 %v5100, %v5101
        %v5104 = vshrl.u32 %v612, 16
        %v5106 = vrot.slane %v5104, 7
        %v5107 = vshll.u32 %v612, 16
        %v5109 = vor.u32 %v5106, %v5107
        %v5110 = vshrl.u32 %v613, 16
        %v5112 = vrot.slane %v5110, 7
        %v5113 = vshll.u32 %v613, 16
        %v5115 = vor.u32 %v5112, %v5113
        %v5116 = vshrl.u32 %v614, 16
        %v5118 = vrot.slane %v5116, 7
        %v5119 = vshll.u32 %v614, 16
        %v5121 = vor.u32 %v5118, %v5119
        %v5154 = vsel %vm1227, 4286644096, %v5031
        %v5155 = vsel %vm1227, 4286644096, %v5037
        %v5156 = vsel %vm1227, 4286644096, %v5043
        %v5157 = vsel %vm1227, 4286644096, %v5049
        %v5158 = vsel %vm1227, 4286644096, %v5055
        %v5159 = vsel %vm1227, 4286644096, %v5061
        %v5160 = vsel %vm1227, 4286644096, %v5067
        %v5161 = vsel %vm1227, 4286644096, %v5073
        %v5162 = vsel %vm1227, 4286644096, %v5079
        %v5163 = vsel %vm1227, 4286644096, %v5085
        %v5164 = vsel %vm1227, 4286644096, %v5091
        %v5165 = vsel %vm1227, 4286644096, %v5097
        %v5166 = vsel %vm1227, 4286644096, %v5103
        %v5167 = vsel %vm1227, 4286644096, %v5109
        %v5168 = vsel %vm1227, 4286644096, %v5115
        %v5169 = vsel %vm1227, 4286644096, %v5121
        %v5170 = vsel %vm1227, %v5028, 4286644096
        %v5171 = vsel %vm1227, %v5034, 4286644096
        %v5172 = vsel %vm1227, %v5040, 4286644096
        %v5173 = vsel %vm1227, %v5046, 4286644096
        %v5174 = vsel %vm1227, %v5052, 4286644096
        %v5175 = vsel %vm1227, %v5058, 4286644096
        %v5176 = vsel %vm1227, %v5064, 4286644096
        %v5177 = vsel %vm1227, %v5070, 4286644096
        %v5178 = vsel %vm1227, %v5076, 4286644096
        %v5179 = vsel %vm1227, %v5082, 4286644096
        %v5180 = vsel %vm1227, %v5088, 4286644096
        %v5181 = vsel %vm1227, %v5094, 4286644096
        %v5182 = vsel %vm1227, %v5100, 4286644096
        %v5183 = vsel %vm1227, %v5106, 4286644096
        %v5184 = vsel %vm1227, %v5112, 4286644096
        %v5185 = vsel %vm1227, %v5118, 4286644096
        %v5187 = vshrl.u32 %v5154, 16
        %v5189 = vshll.u32 %v5154, 16
        %v5191 = vrot.slane %v5189, 1
        %v5192 = vor.u32 %v5187, %v5191
        %v5194 = vshll.u32 %v5170, 16
        %v5196 = vrot.slane %v5194, 1
        %v5197 = vsel %vm1260, %v5192, %v5196
        %v5199 = vshrl.u32 %v5155, 16
        %v5201 = vshll.u32 %v5155, 16
        %v5203 = vrot.slane %v5201, 1
        %v5204 = vor.u32 %v5199, %v5203
        %v5206 = vshll.u32 %v5171, 16
        %v5208 = vrot.slane %v5206, 1
        %v5209 = vsel %vm1260, %v5204, %v5208
        %v5211 = vshrl.u32 %v5156, 16
        %v5213 = vshll.u32 %v5156, 16
        %v5215 = vrot.slane %v5213, 1
        %v5216 = vor.u32 %v5211, %v5215
        %v5218 = vshll.u32 %v5172, 16
        %v5220 = vrot.slane %v5218, 1
        %v5221 = vsel %vm1260, %v5216, %v5220
        %v5223 = vshrl.u32 %v5157, 16
        %v5225 = vshll.u32 %v5157, 16
        %v5227 = vrot.slane %v5225, 1
        %v5228 = vor.u32 %v5223, %v5227
        %v5230 = vshll.u32 %v5173, 16
        %v5232 = vrot.slane %v5230, 1
        %v5233 = vsel %vm1260, %v5228, %v5232
        %v5235 = vshrl.u32 %v5158, 16
        %v5237 = vshll.u32 %v5158, 16
        %v5239 = vrot.slane %v5237, 1
        %v5240 = vor.u32 %v5235, %v5239
        %v5242 = vshll.u32 %v5174, 16
        %v5244 = vrot.slane %v5242, 1
        %v5245 = vsel %vm1260, %v5240, %v5244
        %v5247 = vshrl.u32 %v5159, 16
        %v5249 = vshll.u32 %v5159, 16
        %v5251 = vrot.slane %v5249, 1
        %v5252 = vor.u32 %v5247, %v5251
        %v5254 = vshll.u32 %v5175, 16
        %v5256 = vrot.slane %v5254, 1
        %v5257 = vsel %vm1260, %v5252, %v5256
        %v5259 = vshrl.u32 %v5160, 16
        %v5261 = vshll.u32 %v5160, 16
        %v5263 = vrot.slane %v5261, 1
        %v5264 = vor.u32 %v5259, %v5263
        %v5266 = vshll.u32 %v5176, 16
        %v5268 = vrot.slane %v5266, 1
        %v5269 = vsel %vm1260, %v5264, %v5268
        %v5271 = vshrl.u32 %v5161, 16
        %v5273 = vshll.u32 %v5161, 16
        %v5275 = vrot.slane %v5273, 1
        %v5276 = vor.u32 %v5271, %v5275
        %v5278 = vshll.u32 %v5177, 16
        %v5280 = vrot.slane %v5278, 1
        %v5281 = vsel %vm1260, %v5276, %v5280
        %v5283 = vshrl.u32 %v5162, 16
        %v5285 = vshll.u32 %v5162, 16
        %v5287 = vrot.slane %v5285, 1
        %v5288 = vor.u32 %v5283, %v5287
        %v5290 = vshll.u32 %v5178, 16
        %v5292 = vrot.slane %v5290, 1
        %v5293 = vsel %vm1260, %v5288, %v5292
        %v5295 = vshrl.u32 %v5163, 16
        %v5297 = vshll.u32 %v5163, 16
        %v5299 = vrot.slane %v5297, 1
        %v5300 = vor.u32 %v5295, %v5299
        %v5302 = vshll.u32 %v5179, 16
        %v5304 = vrot.slane %v5302, 1
        %v5305 = vsel %vm1260, %v5300, %v5304
        %v5307 = vshrl.u32 %v5164, 16
        %v5309 = vshll.u32 %v5164, 16
        %v5311 = vrot.slane %v5309, 1
        %v5312 = vor.u32 %v5307, %v5311
        %v5314 = vshll.u32 %v5180, 16
        %v5316 = vrot.slane %v5314, 1
        %v5317 = vsel %vm1260, %v5312, %v5316
        %v5319 = vshrl.u32 %v5165, 16
        %v5321 = vshll.u32 %v5165, 16
        %v5323 = vrot.slane %v5321, 1
        %v5324 = vor.u32 %v5319, %v5323
        %v5326 = vshll.u32 %v5181, 16
        %v5328 = vrot.slane %v5326, 1
        %v5329 = vsel %vm1260, %v5324, %v5328
        %v5331 = vshrl.u32 %v5166, 16
        %v5333 = vshll.u32 %v5166, 16
        %v5335 = vrot.slane %v5333, 1
        %v5336 = vor.u32 %v5331, %v5335
        %v5338 = vshll.u32 %v5182, 16
        %v5340 = vrot.slane %v5338, 1
        %v5341 = vsel %vm1260, %v5336, %v5340
        %v5343 = vshrl.u32 %v5167, 16
        %v5345 = vshll.u32 %v5167, 16
        %v5347 = vrot.slane %v5345, 1
        %v5348 = vor.u32 %v5343, %v5347
        %v5350 = vshll.u32 %v5183, 16
        %v5352 = vrot.slane %v5350, 1
        %v5353 = vsel %vm1260, %v5348, %v5352
        %v5355 = vshrl.u32 %v5168, 16
        %v5357 = vshll.u32 %v5168, 16
        %v5359 = vrot.slane %v5357, 1
        %v5360 = vor.u32 %v5355, %v5359
        %v5362 = vshll.u32 %v5184, 16
        %v5364 = vrot.slane %v5362, 1
        %v5365 = vsel %vm1260, %v5360, %v5364
        %v5367 = vshrl.u32 %v5169, 16
        %v5369 = vshll.u32 %v5169, 16
        %v5371 = vrot.slane %v5369, 1
        %v5372 = vor.u32 %v5367, %v5371
        %v5374 = vshll.u32 %v5185, 16
        %v5376 = vrot.slane %v5374, 1
        %v5377 = vsel %vm1260, %v5372, %v5376
        %v5394 = vmax.bf16 %v5154, %v5197
        %v5395 = vmax.bf16 %v5155, %v5209
        %v5396 = vmax.bf16 %v5156, %v5221
        %v5397 = vmax.bf16 %v5157, %v5233
        %v5398 = vmax.bf16 %v5158, %v5245
        %v5399 = vmax.bf16 %v5159, %v5257
        %v5400 = vmax.bf16 %v5160, %v5269
        %v5401 = vmax.bf16 %v5161, %v5281
        %v5402 = vmax.bf16 %v5162, %v5293
        %v5403 = vmax.bf16 %v5163, %v5305
        %v5404 = vmax.bf16 %v5164, %v5317
        %v5405 = vmax.bf16 %v5165, %v5329
        %v5406 = vmax.bf16 %v5166, %v5341
        %v5407 = vmax.bf16 %v5167, %v5353
        %v5408 = vmax.bf16 %v5168, %v5365
        %v5409 = vmax.bf16 %v5169, %v5377
        %v5442 = vrot.slane %v5154, 1
        %v5443 = vrot.slane %v5170, 1
        %v5444 = vsel %vm1517, %v5442, %v5443
        %v5445 = vrot.slane %v5155, 1
        %v5446 = vrot.slane %v5171, 1
        %v5447 = vsel %vm1517, %v5445, %v5446
        %v5448 = vrot.slane %v5156, 1
        %v5449 = vrot.slane %v5172, 1
        %v5450 = vsel %vm1517, %v5448, %v5449
        %v5451 = vrot.slane %v5157, 1
        %v5452 = vrot.slane %v5173, 1
        %v5453 = vsel %vm1517, %v5451, %v5452
        %v5454 = vrot.slane %v5158, 1
        %v5455 = vrot.slane %v5174, 1
        %v5456 = vsel %vm1517, %v5454, %v5455
        %v5457 = vrot.slane %v5159, 1
        %v5458 = vrot.slane %v5175, 1
        %v5459 = vsel %vm1517, %v5457, %v5458
        %v5460 = vrot.slane %v5160, 1
        %v5461 = vrot.slane %v5176, 1
        %v5462 = vsel %vm1517, %v5460, %v5461
        %v5463 = vrot.slane %v5161, 1
        %v5464 = vrot.slane %v5177, 1
        %v5465 = vsel %vm1517, %v5463, %v5464
        %v5466 = vrot.slane %v5162, 1
        %v5467 = vrot.slane %v5178, 1
        %v5468 = vsel %vm1517, %v5466, %v5467
        %v5469 = vrot.slane %v5163, 1
        %v5470 = vrot.slane %v5179, 1
        %v5471 = vsel %vm1517, %v5469, %v5470
        %v5472 = vrot.slane %v5164, 1
        %v5473 = vrot.slane %v5180, 1
        %v5474 = vsel %vm1517, %v5472, %v5473
        %v5475 = vrot.slane %v5165, 1
        %v5476 = vrot.slane %v5181, 1
        %v5477 = vsel %vm1517, %v5475, %v5476
        %v5478 = vrot.slane %v5166, 1
        %v5479 = vrot.slane %v5182, 1
        %v5480 = vsel %vm1517, %v5478, %v5479
        %v5481 = vrot.slane %v5167, 1
        %v5482 = vrot.slane %v5183, 1
        %v5483 = vsel %vm1517, %v5481, %v5482
        %v5484 = vrot.slane %v5168, 1
        %v5485 = vrot.slane %v5184, 1
        %v5486 = vsel %vm1517, %v5484, %v5485
        %v5487 = vrot.slane %v5169, 1
        %v5488 = vrot.slane %v5185, 1
        %v5489 = vsel %vm1517, %v5487, %v5488
        %v5506 = vmax.bf16 %v5394, %v5444
        %v5507 = vmax.bf16 %v5395, %v5447
        %v5508 = vmax.bf16 %v5396, %v5450
        %v5509 = vmax.bf16 %v5397, %v5453
        %v5510 = vmax.bf16 %v5398, %v5456
        %v5511 = vmax.bf16 %v5399, %v5459
        %v5512 = vmax.bf16 %v5400, %v5462
        %v5513 = vmax.bf16 %v5401, %v5465
        %v5514 = vmax.bf16 %v5402, %v5468
        %v5515 = vmax.bf16 %v5403, %v5471
        %v5516 = vmax.bf16 %v5404, %v5474
        %v5517 = vmax.bf16 %v5405, %v5477
        %v5518 = vmax.bf16 %v5406, %v5480
        %v5519 = vmax.bf16 %v5407, %v5483
        %v5520 = vmax.bf16 %v5408, %v5486
        %v5521 = vmax.bf16 %v5409, %v5489
        %v5522 = vmax.bf16 %v5506, %v5507
        %v5523 = vmax.bf16 %v5507, %v5508
        %v5524 = vmax.bf16 %v5508, %v5509
        %v5525 = vmax.bf16 %v5509, %v5510
        %v5526 = vmax.bf16 %v5510, %v5511
        %v5527 = vmax.bf16 %v5511, %v5512
        %v5528 = vmax.bf16 %v5512, %v5513
        %v5529 = vmax.bf16 %v5513, %v5514
        %v5530 = vmax.bf16 %v5514, %v5515
        %v5531 = vmax.bf16 %v5515, %v5516
        %v5532 = vmax.bf16 %v5516, %v5517
        %v5533 = vmax.bf16 %v5517, %v5518
        %v5534 = vmax.bf16 %v5518, %v5519
        %v5535 = vmax.bf16 %v5519, %v5520
        %v5536 = vmax.bf16 %v5520, %v5521
        %v5537 = vmax.bf16 %v5522, %v5508
        %v5538 = vmax.bf16 %v5523, %v5509
        %v5539 = vmax.bf16 %v5524, %v5510
        %v5540 = vmax.bf16 %v5525, %v5511
        %v5541 = vmax.bf16 %v5526, %v5512
        %v5542 = vmax.bf16 %v5527, %v5513
        %v5543 = vmax.bf16 %v5528, %v5514
        %v5544 = vmax.bf16 %v5529, %v5515
        %v5545 = vmax.bf16 %v5530, %v5516
        %v5546 = vmax.bf16 %v5531, %v5517
        %v5547 = vmax.bf16 %v5532, %v5518
        %v5548 = vmax.bf16 %v5533, %v5519
        %v5549 = vmax.bf16 %v5534, %v5520
        %v5550 = vmax.bf16 %v5535, %v5521
        %v5551 = vld [vmem:[%s13] sm:$0x3]
        %v5552 = vld [vmem:[%s14] sm:$0x1]
        %v5554 = vlaneseq
        %v5555 = vshrl.u32 %v5554, 7
        %v5556 = vsub.s32 0, %v5555
        %v5557 = vrot.slane %v5552, %v5556
        %v5560 = vsel %vm615, %v5522, 0
        %v5563 = vsel %vm615, %v5537, 0
        %v5566 = vsel %vm615, %v5538, 0
        %v5569 = vsel %vm615, %v5539, 0
        %v5572 = vsel %vm615, %v5540, 0
        %v5575 = vsel %vm615, %v5541, 0
        %v5578 = vsel %vm615, %v5542, 0
        %v5581 = vsel %vm615, %v5543, 0
        %v5584 = vsel %vm615, %v5544, 0
        %v5587 = vsel %vm615, %v5545, 0
        %v5590 = vsel %vm615, %v5546, 0
        %v5593 = vsel %vm615, %v5547, 0
        %v5596 = vsel %vm615, %v5548, 0
        %v5599 = vsel %vm615, %v5549, 0
        %v5602 = vsel %vm615, %v5550, 0
        %v5605 = vsel %vm615, %v5536, 0
        %v5608 = vsel %vm664, %v5551, 0
        %5610 = vmatprep.subr.bf16.mxu0 0
        %5611 = vmatpush1.bf16.msra.mxu0 0
        %5612 = vmatprep.subr.bf16.mxu0 0
        %5613 = vmatpush1.bf16.msra.mxu0 0
        %5614 = vmatprep.subr.bf16.mxu0 0
        %5615 = vmatpush1.bf16.msra.mxu0 0
        %5616 = vmatprep.subr.bf16.mxu0 0
        %5617 = vmatpush1.bf16.msra.mxu0 0
        %5618 = vmatprep.subr.bf16.mxu0 0
        %5619 = vmatpush1.bf16.msra.mxu0 0
        %5620 = vmatprep.subr.bf16.mxu0 0
        %5621 = vmatpush1.bf16.msra.mxu0 0
        %5622 = vmatprep.subr.bf16.mxu0 0
        %5623 = vmatpush1.bf16.msra.mxu0 0
        %5624 = vmatprep.subr.bf16.mxu0 0
        %5625 = vmatpush1.bf16.msra.mxu0 %v5608
        %5626 = vmatprep.subr.bf16.mxu0 0
        %5627 = vmatpush2.bf16.msra.mxu0 0
        %5628 = vmatprep.subr.bf16.mxu0 0
        %5629 = vmatpush2.bf16.msra.mxu0 0
        %5630 = vmatprep.subr.bf16.mxu0 0
        %5631 = vmatpush2.bf16.msra.mxu0 0
        %5632 = vmatprep.subr.bf16.mxu0 0
        %5633 = vmatpush2.bf16.msra.mxu0 0
        %5634 = vmatprep.subr.bf16.mxu0 0
        %5635 = vmatpush2.bf16.msra.mxu0 0
        %5636 = vmatprep.subr.bf16.mxu0 0
        %5637 = vmatpush2.bf16.msra.mxu0 0
        %5638 = vmatprep.subr.bf16.mxu0 0
        %5639 = vmatpush2.bf16.msra.mxu0 0
        %5640 = vmatprep.subr.bf16.mxu0 0
        %5641 = vmatpush2.bf16.msra.mxu0 0
        %5642 = vmatprep.mubr.bf16.mxu0 0
        %5643 = vmatmul.mubr.bf16.gmra.mxu0 %v5560
        %v5644 = vpop.f32.mrf.mxu0
        %v5645 = vadd.f32 %v5557, %v5644
        %v5646 = vpop.f32.mrf.mxu0
        %v5647 = vpop.f32.mrf.mxu0
        %v5648 = vadd.f32 %v5557, %v5647
        %v5649 = vpop.f32.mrf.mxu0
        %5650 = vmatprep.mubr.bf16.mxu0 0
        %5651 = vmatmul.mubr.bf16.gmra.mxu0 %v5563
        %v5652 = vpop.f32.mrf.mxu0
        %v5653 = vadd.f32 %v5557, %v5652
        %v5654 = vpop.f32.mrf.mxu0
        %v5655 = vpop.f32.mrf.mxu0
        %v5656 = vadd.f32 %v5557, %v5655
        %v5657 = vpop.f32.mrf.mxu0
        %5658 = vmatprep.mubr.bf16.mxu0 0
        %5659 = vmatmul.mubr.bf16.gmra.mxu0 %v5566
        %v5660 = vpop.f32.mrf.mxu0
        %v5661 = vadd.f32 %v5557, %v5660
        %v5662 = vpop.f32.mrf.mxu0
        %v5663 = vpop.f32.mrf.mxu0
        %v5664 = vadd.f32 %v5557, %v5663
        %v5665 = vpop.f32.mrf.mxu0
        %5666 = vmatprep.mubr.bf16.mxu0 0
        %5667 = vmatmul.mubr.bf16.gmra.mxu0 %v5569
        %v5668 = vpop.f32.mrf.mxu0
        %v5669 = vadd.f32 %v5557, %v5668
        %v5670 = vpop.f32.mrf.mxu0
        %v5671 = vpop.f32.mrf.mxu0
        %v5672 = vadd.f32 %v5557, %v5671
        %v5673 = vpop.f32.mrf.mxu0
        %5674 = vmatprep.mubr.bf16.mxu0 0
        %5675 = vmatmul.mubr.bf16.gmra.mxu0 %v5572
        %v5676 = vpop.f32.mrf.mxu0
        %v5677 = vadd.f32 %v5557, %v5676
        %v5678 = vpop.f32.mrf.mxu0
        %v5679 = vpop.f32.mrf.mxu0
        %v5680 = vadd.f32 %v5557, %v5679
        %v5681 = vpop.f32.mrf.mxu0
        %5682 = vmatprep.mubr.bf16.mxu0 0
        %5683 = vmatmul.mubr.bf16.gmra.mxu0 %v5575
        %v5684 = vpop.f32.mrf.mxu0
        %v5685 = vadd.f32 %v5557, %v5684
        %v5686 = vpop.f32.mrf.mxu0
        %v5687 = vpop.f32.mrf.mxu0
        %v5688 = vadd.f32 %v5557, %v5687
        %v5689 = vpop.f32.mrf.mxu0
        %5690 = vmatprep.mubr.bf16.mxu0 0
        %5691 = vmatmul.mubr.bf16.gmra.mxu0 %v5578
        %v5692 = vpop.f32.mrf.mxu0
        %v5693 = vadd.f32 %v5557, %v5692
        %v5694 = vpop.f32.mrf.mxu0
        %v5695 = vpop.f32.mrf.mxu0
        %v5696 = vadd.f32 %v5557, %v5695
        %v5697 = vpop.f32.mrf.mxu0
        %5698 = vmatprep.mubr.bf16.mxu0 0
        %5699 = vmatmul.mubr.bf16.gmra.mxu0 %v5581
        %v5700 = vpop.f32.mrf.mxu0
        %v5701 = vadd.f32 %v5557, %v5700
        %v5702 = vpop.f32.mrf.mxu0
        %v5703 = vpop.f32.mrf.mxu0
        %v5704 = vadd.f32 %v5557, %v5703
        %v5705 = vpop.f32.mrf.mxu0
        %5706 = vmatprep.mubr.bf16.mxu0 0
        %5707 = vmatmul.mubr.bf16.gmra.mxu0 %v5584
        %v5708 = vpop.f32.mrf.mxu0
        %v5709 = vadd.f32 %v5557, %v5708
        %v5710 = vpop.f32.mrf.mxu0
        %v5711 = vpop.f32.mrf.mxu0
        %v5712 = vadd.f32 %v5557, %v5711
        %v5713 = vpop.f32.mrf.mxu0
        %5714 = vmatprep.mubr.bf16.mxu0 0
        %5715 = vmatmul.mubr.bf16.gmra.mxu0 %v5587
        %v5716 = vpop.f32.mrf.mxu0
        %v5717 = vadd.f32 %v5557, %v5716
        %v5718 = vpop.f32.mrf.mxu0
        %v5719 = vpop.f32.mrf.mxu0
        %v5720 = vadd.f32 %v5557, %v5719
        %v5721 = vpop.f32.mrf.mxu0
        %5722 = vmatprep.mubr.bf16.mxu0 0
        %5723 = vmatmul.mubr.bf16.gmra.mxu0 %v5590
        %v5724 = vpop.f32.mrf.mxu0
        %v5725 = vadd.f32 %v5557, %v5724
        %v5726 = vpop.f32.mrf.mxu0
        %v5727 = vpop.f32.mrf.mxu0
        %v5728 = vadd.f32 %v5557, %v5727
        %v5729 = vpop.f32.mrf.mxu0
        %5730 = vmatprep.mubr.bf16.mxu0 0
        %5731 = vmatmul.mubr.bf16.gmra.mxu0 %v5593
        %v5732 = vpop.f32.mrf.mxu0
        %v5733 = vadd.f32 %v5557, %v5732
        %v5734 = vpop.f32.mrf.mxu0
        %v5735 = vpop.f32.mrf.mxu0
        %v5736 = vadd.f32 %v5557, %v5735
        %v5737 = vpop.f32.mrf.mxu0
        %5738 = vmatprep.mubr.bf16.mxu0 0
        %5739 = vmatmul.mubr.bf16.gmra.mxu0 %v5596
        %v5740 = vpop.f32.mrf.mxu0
        %v5741 = vadd.f32 %v5557, %v5740
        %v5742 = vpop.f32.mrf.mxu0
        %v5743 = vpop.f32.mrf.mxu0
        %v5744 = vadd.f32 %v5557, %v5743
        %v5745 = vpop.f32.mrf.mxu0
        %5746 = vmatprep.mubr.bf16.mxu0 0
        %5747 = vmatmul.mubr.bf16.gmra.mxu0 %v5599
        %v5748 = vpop.f32.mrf.mxu0
        %v5749 = vadd.f32 %v5557, %v5748
        %v5750 = vpop.f32.mrf.mxu0
        %v5751 = vpop.f32.mrf.mxu0
        %v5752 = vadd.f32 %v5557, %v5751
        %v5753 = vpop.f32.mrf.mxu0
        %5754 = vmatprep.mubr.bf16.mxu0 0
        %5755 = vmatmul.mubr.bf16.gmra.mxu0 %v5602
        %v5756 = vpop.f32.mrf.mxu0
        %v5757 = vadd.f32 %v5557, %v5756
        %v5758 = vpop.f32.mrf.mxu0
        %v5759 = vpop.f32.mrf.mxu0
        %v5760 = vadd.f32 %v5557, %v5759
        %v5761 = vpop.f32.mrf.mxu0
        %5762 = vmatprep.mubr.bf16.mxu0 0
        %5763 = vmatmul.mubr.bf16.gmra.mxu0 %v5605
        %v5764 = vpop.f32.mrf.mxu0
        %v5765 = vadd.f32 %v5557, %v5764
        %v5766 = vpop.f32.mrf.mxu0
        %v5767 = vpop.f32.mrf.mxu0
        %v5768 = vadd.f32 %v5557, %v5767
        %v5769 = vpop.f32.mrf.mxu0
        %5770 = vdwg.mxu0
        %v5771 = vmax.f32 %v5645, 0.0
        %v5772 = vmax.f32 %v5648, 0.0
        %v5773 = vmax.f32 %v5653, 0.0
        %v5774 = vmax.f32 %v5656, 0.0
        %v5775 = vmax.f32 %v5661, 0.0
        %v5776 = vmax.f32 %v5664, 0.0
        %v5777 = vmax.f32 %v5669, 0.0
        %v5778 = vmax.f32 %v5672, 0.0
        %v5779 = vmax.f32 %v5677, 0.0
        %v5780 = vmax.f32 %v5680, 0.0
        %v5781 = vmax.f32 %v5685, 0.0
        %v5782 = vmax.f32 %v5688, 0.0
        %v5783 = vmax.f32 %v5693, 0.0
        %v5784 = vmax.f32 %v5696, 0.0
        %v5785 = vmax.f32 %v5701, 0.0
        %v5786 = vmax.f32 %v5704, 0.0
        %v5787 = vmax.f32 %v5709, 0.0
        %v5788 = vmax.f32 %v5712, 0.0
        %v5789 = vmax.f32 %v5717, 0.0
        %v5790 = vmax.f32 %v5720, 0.0
        %v5791 = vmax.f32 %v5725, 0.0
        %v5792 = vmax.f32 %v5728, 0.0
        %v5793 = vmax.f32 %v5733, 0.0
        %v5794 = vmax.f32 %v5736, 0.0
        %v5795 = vmax.f32 %v5741, 0.0
        %v5796 = vmax.f32 %v5744, 0.0
        %v5797 = vmax.f32 %v5749, 0.0
        %v5798 = vmax.f32 %v5752, 0.0
        %v5799 = vmax.f32 %v5757, 0.0
        %v5800 = vmax.f32 %v5760, 0.0
        %v5801 = vmax.f32 %v5765, 0.0
        %v5802 = vmax.f32 %v5768, 0.0
        %5835 = vrot.lane.b32.xlu0 %v2286, 8
        %v5836 = vpop.permute.xlu0 %5835
        %5837 = vrot.lane.b32.xlu0 %v2287, 8
        %v5838 = vpop.permute.xlu0 %5837
        %5839 = vrot.lane.b32.xlu0 %v2288, 8
        %v5840 = vpop.permute.xlu0 %5839
        %5841 = vrot.lane.b32.xlu0 %v2289, 8
        %v5842 = vpop.permute.xlu0 %5841
        %5843 = vrot.lane.b32.xlu0 %v2290, 8
        %v5844 = vpop.permute.xlu0 %5843
        %5845 = vrot.lane.b32.xlu0 %v2291, 8
        %v5846 = vpop.permute.xlu0 %5845
        %5847 = vrot.lane.b32.xlu0 %v2292, 8
        %v5848 = vpop.permute.xlu0 %5847
        %5849 = vrot.lane.b32.xlu0 %v2293, 8
        %v5850 = vpop.permute.xlu0 %5849
        %5851 = vrot.lane.b32.xlu0 %v2294, 8
        %v5852 = vpop.permute.xlu0 %5851
        %5853 = vrot.lane.b32.xlu0 %v2295, 8
        %v5854 = vpop.permute.xlu0 %5853
        %5855 = vrot.lane.b32.xlu0 %v2296, 8
        %v5856 = vpop.permute.xlu0 %5855
        %5857 = vrot.lane.b32.xlu0 %v2297, 8
        %v5858 = vpop.permute.xlu0 %5857
        %5859 = vrot.lane.b32.xlu0 %v2298, 8
        %v5860 = vpop.permute.xlu0 %5859
        %5861 = vrot.lane.b32.xlu0 %v2299, 8
        %v5862 = vpop.permute.xlu0 %5861
        %5863 = vrot.lane.b32.xlu0 %v2300, 8
        %v5864 = vpop.permute.xlu0 %5863
        %5865 = vrot.lane.b32.xlu0 %v2301, 8
        %v5866 = vpop.permute.xlu0 %5865
        %5867 = vrot.lane.b32.xlu0 %v2302, 8
        %v5868 = vpop.permute.xlu0 %5867
        %5869 = vrot.lane.b32.xlu0 %v2303, 8
        %v5870 = vpop.permute.xlu0 %5869
        %5871 = vrot.lane.b32.xlu0 %v2304, 8
        %v5872 = vpop.permute.xlu0 %5871
        %5873 = vrot.lane.b32.xlu0 %v2305, 8
        %v5874 = vpop.permute.xlu0 %5873
        %5875 = vrot.lane.b32.xlu0 %v2306, 8
        %v5876 = vpop.permute.xlu0 %5875
        %5877 = vrot.lane.b32.xlu0 %v2307, 8
        %v5878 = vpop.permute.xlu0 %5877
        %5879 = vrot.lane.b32.xlu0 %v2308, 8
        %v5880 = vpop.permute.xlu0 %5879
        %5881 = vrot.lane.b32.xlu0 %v2309, 8
        %v5882 = vpop.permute.xlu0 %5881
        %5883 = vrot.lane.b32.xlu0 %v2310, 8
        %v5884 = vpop.permute.xlu0 %5883
        %5885 = vrot.lane.b32.xlu0 %v2311, 8
        %v5886 = vpop.permute.xlu0 %5885
        %5887 = vrot.lane.b32.xlu0 %v2312, 8
        %v5888 = vpop.permute.xlu0 %5887
        %5889 = vrot.lane.b32.xlu0 %v2313, 8
        %v5890 = vpop.permute.xlu0 %5889
        %5891 = vrot.lane.b32.xlu0 %v2314, 8
        %v5892 = vpop.permute.xlu0 %5891
        %5893 = vrot.lane.b32.xlu0 %v2315, 8
        %v5894 = vpop.permute.xlu0 %5893
        %5895 = vrot.lane.b32.xlu0 %v2316, 8
        %v5896 = vpop.permute.xlu0 %5895
        %5897 = vrot.lane.b32.xlu0 %v2317, 8
        %v5898 = vpop.permute.xlu0 %5897
        %5963 = vrot.lane.b32.xlu0 %v4994, 16
        %v5964 = vpop.permute.xlu0 %5963
        %5965 = vrot.lane.b32.xlu0 %v4995, 16
        %v5966 = vpop.permute.xlu0 %5965
        %5967 = vrot.lane.b32.xlu0 %v4996, 16
        %v5968 = vpop.permute.xlu0 %5967
        %5969 = vrot.lane.b32.xlu0 %v4997, 16
        %v5970 = vpop.permute.xlu0 %5969
        %5971 = vrot.lane.b32.xlu0 %v4998, 16
        %v5972 = vpop.permute.xlu0 %5971
        %5973 = vrot.lane.b32.xlu0 %v4999, 16
        %v5974 = vpop.permute.xlu0 %5973
        %5975 = vrot.lane.b32.xlu0 %v5000, 16
        %v5976 = vpop.permute.xlu0 %5975
        %5977 = vrot.lane.b32.xlu0 %v5001, 16
        %v5978 = vpop.permute.xlu0 %5977
        %5979 = vrot.lane.b32.xlu0 %v5002, 16
        %v5980 = vpop.permute.xlu0 %5979
        %5981 = vrot.lane.b32.xlu0 %v5003, 16
        %v5982 = vpop.permute.xlu0 %5981
        %5983 = vrot.lane.b32.xlu0 %v5004, 16
        %v5984 = vpop.permute.xlu0 %5983
        %5985 = vrot.lane.b32.xlu0 %v5005, 16
        %v5986 = vpop.permute.xlu0 %5985
        %5987 = vrot.lane.b32.xlu0 %v5006, 16
        %v5988 = vpop.permute.xlu0 %5987
        %5989 = vrot.lane.b32.xlu0 %v5007, 16
        %v5990 = vpop.permute.xlu0 %5989
        %5991 = vrot.lane.b32.xlu0 %v5008, 16
        %v5992 = vpop.permute.xlu0 %5991
        %5993 = vrot.lane.b32.xlu0 %v5009, 16
        %v5994 = vpop.permute.xlu0 %5993
        %5995 = vrot.lane.b32.xlu0 %v5010, 16
        %v5996 = vpop.permute.xlu0 %5995
        %5997 = vrot.lane.b32.xlu0 %v5011, 16
        %v5998 = vpop.permute.xlu0 %5997
        %5999 = vrot.lane.b32.xlu0 %v5012, 16
        %v6000 = vpop.permute.xlu0 %5999
        %6001 = vrot.lane.b32.xlu0 %v5013, 16
        %v6002 = vpop.permute.xlu0 %6001
        %6003 = vrot.lane.b32.xlu0 %v5014, 16
        %v6004 = vpop.permute.xlu0 %6003
        %6005 = vrot.lane.b32.xlu0 %v5015, 16
        %v6006 = vpop.permute.xlu0 %6005
        %6007 = vrot.lane.b32.xlu0 %v5016, 16
        %v6008 = vpop.permute.xlu0 %6007
        %6009 = vrot.lane.b32.xlu0 %v5017, 16
        %v6010 = vpop.permute.xlu0 %6009
        %6011 = vrot.lane.b32.xlu0 %v5018, 16
        %v6012 = vpop.permute.xlu0 %6011
        %6013 = vrot.lane.b32.xlu0 %v5019, 16
        %v6014 = vpop.permute.xlu0 %6013
        %6015 = vrot.lane.b32.xlu0 %v5020, 16
        %v6016 = vpop.permute.xlu0 %6015
        %6017 = vrot.lane.b32.xlu0 %v5021, 16
        %v6018 = vpop.permute.xlu0 %6017
        %6019 = vrot.lane.b32.xlu0 %v5022, 16
        %v6020 = vpop.permute.xlu0 %6019
        %6021 = vrot.lane.b32.xlu0 %v5023, 16
        %v6022 = vpop.permute.xlu0 %6021
        %6023 = vrot.lane.b32.xlu0 %v5024, 16
        %v6024 = vpop.permute.xlu0 %6023
        %6025 = vrot.lane.b32.xlu0 %v5025, 16
        %v6026 = vpop.permute.xlu0 %6025
        %6091 = vrot.lane.b32.xlu0 %v5771, 24
        %v6092 = vpop.permute.xlu0 %6091
        %6093 = vrot.lane.b32.xlu0 %v5772, 24
        %v6094 = vpop.permute.xlu0 %6093
        %6095 = vrot.lane.b32.xlu0 %v5773, 24
        %v6096 = vpop.permute.xlu0 %6095
        %6097 = vrot.lane.b32.xlu0 %v5774, 24
        %v6098 = vpop.permute.xlu0 %6097
        %6099 = vrot.lane.b32.xlu0 %v5775, 24
        %v6100 = vpop.permute.xlu0 %6099
        %6101 = vrot.lane.b32.xlu0 %v5776, 24
        %v6102 = vpop.permute.xlu0 %6101
        %6103 = vrot.lane.b32.xlu0 %v5777, 24
        %v6104 = vpop.permute.xlu0 %6103
        %6105 = vrot.lane.b32.xlu0 %v5778, 24
        %v6106 = vpop.permute.xlu0 %6105
        %6107 = vrot.lane.b32.xlu0 %v5779, 24
        %v6108 = vpop.permute.xlu0 %6107
        %6109 = vrot.lane.b32.xlu0 %v5780, 24
        %v6110 = vpop.permute.xlu0 %6109
        %6111 = vrot.lane.b32.xlu0 %v5781, 24
        %v6112 = vpop.permute.xlu0 %6111
        %6113 = vrot.lane.b32.xlu0 %v5782, 24
        %v6114 = vpop.permute.xlu0 %6113
        %6115 = vrot.lane.b32.xlu0 %v5783, 24
        %v6116 = vpop.permute.xlu0 %6115
        %6117 = vrot.lane.b32.xlu0 %v5784, 24
        %v6118 = vpop.permute.xlu0 %6117
        %6119 = vrot.lane.b32.xlu0 %v5785, 24
        %v6120 = vpop.permute.xlu0 %6119
        %6121 = vrot.lane.b32.xlu0 %v5786, 24
        %v6122 = vpop.permute.xlu0 %6121
        %6123 = vrot.lane.b32.xlu0 %v5787, 24
        %v6124 = vpop.permute.xlu0 %6123
        %6125 = vrot.lane.b32.xlu0 %v5788, 24
        %v6126 = vpop.permute.xlu0 %6125
        %6127 = vrot.lane.b32.xlu0 %v5789, 24
        %v6128 = vpop.permute.xlu0 %6127
        %6129 = vrot.lane.b32.xlu0 %v5790, 24
        %v6130 = vpop.permute.xlu0 %6129
        %6131 = vrot.lane.b32.xlu0 %v5791, 24
        %v6132 = vpop.permute.xlu0 %6131
        %6133 = vrot.lane.b32.xlu0 %v5792, 24
        %v6134 = vpop.permute.xlu0 %6133
        %6135 = vrot.lane.b32.xlu0 %v5793, 24
        %v6136 = vpop.permute.xlu0 %6135
        %6137 = vrot.lane.b32.xlu0 %v5794, 24
        %v6138 = vpop.permute.xlu0 %6137
        %6139 = vrot.lane.b32.xlu0 %v5795, 24
        %v6140 = vpop.permute.xlu0 %6139
        %6141 = vrot.lane.b32.xlu0 %v5796, 24
        %v6142 = vpop.permute.xlu0 %6141
        %6143 = vrot.lane.b32.xlu0 %v5797, 24
        %v6144 = vpop.permute.xlu0 %6143
        %6145 = vrot.lane.b32.xlu0 %v5798, 24
        %v6146 = vpop.permute.xlu0 %6145
        %6147 = vrot.lane.b32.xlu0 %v5799, 24
        %v6148 = vpop.permute.xlu0 %6147
        %6149 = vrot.lane.b32.xlu0 %v5800, 24
        %v6150 = vpop.permute.xlu0 %6149
        %6151 = vrot.lane.b32.xlu0 %v5801, 24
        %v6152 = vpop.permute.xlu0 %6151
        %6153 = vrot.lane.b32.xlu0 %v5802, 24
        %v6154 = vpop.permute.xlu0 %6153
        %v6187 = vsel %vm1630, %v829, %v5836
        %v6188 = vsel %vm1630, %v830, %v5838
        %v6189 = vsel %vm1630, %v831, %v5840
        %v6190 = vsel %vm1630, %v832, %v5842
        %v6191 = vsel %vm1630, %v833, %v5844
        %v6192 = vsel %vm1630, %v834, %v5846
        %v6193 = vsel %vm1630, %v835, %v5848
        %v6194 = vsel %vm1630, %v836, %v5850
        %v6195 = vsel %vm1630, %v837, %v5852
        %v6196 = vsel %vm1630, %v838, %v5854
        %v6197 = vsel %vm1630, %v839, %v5856
        %v6198 = vsel %vm1630, %v840, %v5858
        %v6199 = vsel %vm1630, %v841, %v5860
        %v6200 = vsel %vm1630, %v842, %v5862
        %v6201 = vsel %vm1630, %v843, %v5864
        %v6202 = vsel %vm1630, %v844, %v5866
        %v6203 = vsel %vm1630, %v845, %v5868
        %v6204 = vsel %vm1630, %v846, %v5870
        %v6205 = vsel %vm1630, %v847, %v5872
        %v6206 = vsel %vm1630, %v848, %v5874
        %v6207 = vsel %vm1630, %v849, %v5876
        %v6208 = vsel %vm1630, %v850, %v5878
        %v6209 = vsel %vm1630, %v851, %v5880
        %v6210 = vsel %vm1630, %v852, %v5882
        %v6211 = vsel %vm1630, %v853, %v5884
        %v6212 = vsel %vm1630, %v854, %v5886
        %v6213 = vsel %vm1630, %v855, %v5888
        %v6214 = vsel %vm1630, %v856, %v5890
        %v6215 = vsel %vm1630, %v857, %v5892
        %v6216 = vsel %vm1630, %v858, %v5894
        %v6217 = vsel %vm1630, %v859, %v5896
        %v6218 = vsel %vm1630, %v860, %v5898
        %v6219 = vsel %vm4324, %v6187, %v5964
        %v6220 = vsel %vm4324, %v6188, %v5966
        %v6221 = vsel %vm4324, %v6189, %v5968
        %v6222 = vsel %vm4324, %v6190, %v5970
        %v6223 = vsel %vm4324, %v6191, %v5972
        %v6224 = vsel %vm4324, %v6192, %v5974
        %v6225 = vsel %vm4324, %v6193, %v5976
        %v6226 = vsel %vm4324, %v6194, %v5978
        %v6227 = vsel %vm4324, %v6195, %v5980
        %v6228 = vsel %vm4324, %v6196, %v5982
        %v6229 = vsel %vm4324, %v6197, %v5984
        %v6230 = vsel %vm4324, %v6198, %v5986
        %v6231 = vsel %vm4324, %v6199, %v5988
        %v6232 = vsel %vm4324, %v6200, %v5990
        %v6233 = vsel %vm4324, %v6201, %v5992
        %v6234 = vsel %vm4324, %v6202, %v5994
        %v6235 = vsel %vm4324, %v6203, %v5996
        %v6236 = vsel %vm4324, %v6204, %v5998
        %v6237 = vsel %vm4324, %v6205, %v6000
        %v6238 = vsel %vm4324, %v6206, %v6002
        %v6239 = vsel %vm4324, %v6207, %v6004
        %v6240 = vsel %vm4324, %v6208, %v6006
        %v6241 = vsel %vm4324, %v6209, %v6008
        %v6242 = vsel %vm4324, %v6210, %v6010
        %v6243 = vsel %vm4324, %v6211, %v6012
        %v6244 = vsel %vm4324, %v6212, %v6014
        %v6245 = vsel %vm4324, %v6213, %v6016
        %v6246 = vsel %vm4324, %v6214, %v6018
        %v6247 = vsel %vm4324, %v6215, %v6020
        %v6248 = vsel %vm4324, %v6216, %v6022
        %v6249 = vsel %vm4324, %v6217, %v6024
        %v6250 = vsel %vm4324, %v6218, %v6026
        %v6251 = vsel %vm4373, %v6219, %v6092
        %v6252 = vsel %vm4373, %v6220, %v6094
        %v6253 = vsel %vm4373, %v6221, %v6096
        %v6254 = vsel %vm4373, %v6222, %v6098
        %v6255 = vsel %vm4373, %v6223, %v6100
        %v6256 = vsel %vm4373, %v6224, %v6102
        %v6257 = vsel %vm4373, %v6225, %v6104
        %v6258 = vsel %vm4373, %v6226, %v6106
        %v6259 = vsel %vm4373, %v6227, %v6108
        %v6260 = vsel %vm4373, %v6228, %v6110
        %v6261 = vsel %vm4373, %v6229, %v6112
        %v6262 = vsel %vm4373, %v6230, %v6114
        %v6263 = vsel %vm4373, %v6231, %v6116
        %v6264 = vsel %vm4373, %v6232, %v6118
        %v6265 = vsel %vm4373, %v6233, %v6120
        %v6266 = vsel %vm4373, %v6234, %v6122
        %v6267 = vsel %vm4373, %v6235, %v6124
        %v6268 = vsel %vm4373, %v6236, %v6126
        %v6269 = vsel %vm4373, %v6237, %v6128
        %v6270 = vsel %vm4373, %v6238, %v6130
        %v6271 = vsel %vm4373, %v6239, %v6132
        %v6272 = vsel %vm4373, %v6240, %v6134
        %v6273 = vsel %vm4373, %v6241, %v6136
        %v6274 = vsel %vm4373, %v6242, %v6138
        %v6275 = vsel %vm4373, %v6243, %v6140
        %v6276 = vsel %vm4373, %v6244, %v6142
        %v6277 = vsel %vm4373, %v6245, %v6144
        %v6278 = vsel %vm4373, %v6246, %v6146
        %v6279 = vsel %vm4373, %v6247, %v6148
        %v6280 = vsel %vm4373, %v6248, %v6150
        %v6281 = vsel %vm4373, %v6249, %v6152
        %v6282 = vsel %vm4373, %v6250, %v6154
        %vm6283 = vcmask 261120
        %6284 = vst.msk [vmem:[%s487] sm:$0xff] %vm6283, %v6251
        %6285 = vst.msk [vmem:[%s487 + $0x8] sm:$0xff] %vm6283, %v6252
        %6286 = vst.msk [vmem:[%s487 + $0x10] sm:$0xff] %vm6283, %v6253
        %6287 = vst.msk [vmem:[%s487 + $0x18] sm:$0xff] %vm6283, %v6254
        %6288 = vst.msk [vmem:[%s487 + $0x20] sm:$0xff] %vm6283, %v6255
        %6289 = vst.msk [vmem:[%s487 + $0x28] sm:$0xff] %vm6283, %v6256
        %6290 = vst.msk [vmem:[%s487 + $0x30] sm:$0xff] %vm6283, %v6257
        %6291 = vst.msk [vmem:[%s487 + $0x38] sm:$0xff] %vm6283, %v6258
        %6292 = vst.msk [vmem:[%s487 + $0x40] sm:$0xff] %vm6283, %v6259
        %6293 = vst.msk [vmem:[%s487 + $0x48] sm:$0xff] %vm6283, %v6260
        %6294 = vst.msk [vmem:[%s487 + $0x50] sm:$0xff] %vm6283, %v6261
        %6295 = vst.msk [vmem:[%s487 + $0x58] sm:$0xff] %vm6283, %v6262
        %6296 = vst.msk [vmem:[%s487 + $0x60] sm:$0xff] %vm6283, %v6263
        %6297 = vst.msk [vmem:[%s487 + $0x68] sm:$0xff] %vm6283, %v6264
        %6298 = vst.msk [vmem:[%s487 + $0x70] sm:$0xff] %vm6283, %v6265
        %6299 = vst.msk [vmem:[%s487 + $0x78] sm:$0xff] %vm6283, %v6266
        %6300 = vst.msk [vmem:[%s487 + $0x80] sm:$0xff] %vm6283, %v6267
        %6301 = vst.msk [vmem:[%s487 + $0x88] sm:$0xff] %vm6283, %v6268
        %6302 = vst.msk [vmem:[%s487 + $0x90] sm:$0xff] %vm6283, %v6269
        %6303 = vst.msk [vmem:[%s487 + $0x98] sm:$0xff] %vm6283, %v6270
        %6304 = vst.msk [vmem:[%s487 + $0xa0] sm:$0xff] %vm6283, %v6271
        %6305 = vst.msk [vmem:[%s487 + $0xa8] sm:$0xff] %vm6283, %v6272
        %6306 = vst.msk [vmem:[%s487 + $0xb0] sm:$0xff] %vm6283, %v6273
        %6307 = vst.msk [vmem:[%s487 + $0xb8] sm:$0xff] %vm6283, %v6274
        %6308 = vst.msk [vmem:[%s487 + $0xc0] sm:$0xff] %vm6283, %v6275
        %6309 = vst.msk [vmem:[%s487 + $0xc8] sm:$0xff] %vm6283, %v6276
        %6310 = vst.msk [vmem:[%s487 + $0xd0] sm:$0xff] %vm6283, %v6277
        %6311 = vst.msk [vmem:[%s487 + $0xd8] sm:$0xff] %vm6283, %v6278
        %6312 = vst.msk [vmem:[%s487 + $0xe0] sm:$0xff] %vm6283, %v6279
        %6313 = vst.msk [vmem:[%s487 + $0xe8] sm:$0xff] %vm6283, %v6280
        %6314 = vst.msk [vmem:[%s487 + $0xf0] sm:$0xff] %vm6283, %v6281
        %6315 = vst.msk [vmem:[%s487 + $0xf8] sm:$0xff] %vm6283, %v6282
        %s6316 = sand.u32 %s357, 1
        %s6317 = scalar_lea.sflag [#allocation3], %s6316
        %s6318 = sand.u32 %s357, 1
        %s6319 = smul.addr %s6318, 256
        %s6320 = scalar_lea.vmem [#allocation2], %s6319
        // Predicated region
        $region81: #{inception_forward.1} parent=79 // pred_check
          %p6321 = pneg %p367
        $region82: #{inception_forward.1} parent=79 // pred_check_branch
          %6323 = sbr.rel (%p6321) target = $region84
        $region83: #{inception_forward.1} parent=79 // pred_region
          %s6325 = ssub.s32 4096, 4096
          %6326 = vsyncadd %s6317, %s6325
          %s6327 = smul.addr %s29, 32
          %s6328 = smul.addr %s6327, 128
          %s6329 = scalar_lea.hbm %s15, %s6328
          %s6330 = sshll.u32 %s6320, 4
          %s6331 = int_to_ptr.vmem [resolvable:$true] %s6330
          %6336 = dma.vmem_to_hbm [thread:$0]  %s6331, 4096, %s6329, %s6317, 128, 128, 8
        $region84: #{inception_forward.1} parent=79 // pred_fallthru
          _
      $region80: #{inception_forward.1} parent=5 // pred_fallthru
        _
      %p6337 = scmp.le.s32.totalorder 2, %s24
      // Predicated region
      $region85: #{inception_forward.1} parent=5 // pred_check
        %p6338 = pneg %p6337
      $region86: #{inception_forward.1} parent=5 // pred_check_branch
        %6340 = sbr.rel (%p6338) target = $region88
      $region87: #{inception_forward.1} parent=5 // pred_region
        %s6341 = ssub.s32 %s24, 2
        // Predicated region
        $region89: #{inception_forward.1} parent=87 // pred_check
          %p6342 = pneg %p373
        $region90: #{inception_forward.1} parent=87 // pred_check_branch
          %6344 = sbr.rel (%p6342) target = $region92
        $region91: #{inception_forward.1} parent=87 // pred_region
          %s6345 = sand.u32 %s358, 1
          %s6346 = scalar_lea.sflag [#allocation3], %s6345
          %s6347 = sand.u32 %s358, 1
          %s6348 = smul.addr %s6347, 256
          %s6349 = scalar_lea.vmem [#allocation2], %s6348
          %6350 = dma.done %s6346, 4096
        $region92: #{inception_forward.1} parent=87 // pred_fallthru
          _
      $region88: #{inception_forward.1} parent=5 // pred_fallthru
        _
    $region6: #{inception_forward.1} parent=1 // loop_footer
      %s28 = sadd.s32 1, %s24
    $region7: #{inception_forward.1} parent=1 // loop_footer_branch
      %23 = sbr.rel target = $region3
    $region8: #{inception_forward.1} parent=1 // loop_exit
      _
    %6351 = vsyncpa [#allocation3], 1
    %s6352 = scalar_lea.sflag [#allocation3], 1
    %6353 = vsyncpa %s6352, 1

</llo_original>
